<compile_context>
chip_gen: v7x
topology: tpu7x:2x2x1
jax: 0.10.0
libtpu: 0.0.40
codegen_flags: <defaults>
</compile_context>

<pallas_src>
import functools
import math
from typing import NamedTuple, Optional

import jax
import jax.numpy as jnp
from jax import lax
from jax.experimental import pallas as pl
from jax.experimental.pallas import tpu as pltpu

EPS = 1e-5
ACT_DTYPE = jnp.bfloat16          # inter-layer activations in HBM


def _default_vmem_limit():
    # Generation-aware scoped-VMEM budget: ~3/4 of physical, capped at 100 MiB.
    # (v5e/v6e: 128 MiB -> 96 MiB; v7x: 64 MiB -> 48 MiB.)
    try:
        get_info = getattr(pltpu, "get_tpu_info", None)
        if get_info is not None:
            cap = getattr(get_info(), "vmem_capacity_bytes", None)
            if cap:
                return int(min(cap * 3 // 4, 100 * 1024 * 1024))
    except Exception:
        pass
    return 48 * 1024 * 1024


VMEM_LIMIT = _default_vmem_limit()


def _compiler_params(dimension_semantics):
    return pltpu.CompilerParams(dimension_semantics=dimension_semantics,
                                vmem_limit_bytes=VMEM_LIMIT)


def _largest_divisor_leq(n, target):
    target = int(max(1, min(n, target)))
    for t in range(target, 0, -1):
        if n % t == 0:
            return t
    return 1


def _pow2_divisor(n, cap):
    k = 1
    while k * 2 <= cap and n % (k * 2) == 0:
        k *= 2
    return k


# ----------------------------------------------------------------------------
# Lazy activation: logical value = data * scale + shift  (per channel)
# ----------------------------------------------------------------------------
class Act(NamedTuple):
    data: jnp.ndarray                       # (N, H, W, C) bf16
    scale: Optional[jnp.ndarray] = None     # (C,) f32 or None (identity)
    shift: Optional[jnp.ndarray] = None     # (C,) f32 or None


def _eff_scale(a, c):
    return a.scale.astype(jnp.float32) if a.scale is not None else jnp.ones((c,), jnp.float32)


def _eff_shift(a, c):
    return a.shift.astype(jnp.float32) if a.shift is not None else jnp.zeros((c,), jnp.float32)


# ----------------------------------------------------------------------------
# Kernel 1: conv (+ fused input affine, in-kernel zero padding, bias, ReLU,
#                 per-channel sum / sum-of-squares for the following BN)
# ----------------------------------------------------------------------------
def _conv_kernel(x_ref, s_ref, t_ref, w_ref, b_ref,
                 y_ref, su_ref, sq_ref, xpad_ref, *,
                 KH, KW, dh, dw, pt, pb, pleft, pright, th, apply_relu):
    H, W, Cin = x_ref.shape[1], x_ref.shape[2], x_ref.shape[3]
    Hout, Wout, Cout = y_ref.shape[1], y_ref.shape[2], y_ref.shape[3]
    Hp, Wp = xpad_ref.shape[0], xpad_ref.shape[1]
    K = KH * KW * Cin
    th_in = th + dh * (KH - 1)
    n_tiles = Hout // th

    # ---- build the BN-applied, zero-padded input slab in VMEM ---------------
    # Pending BatchNorm of the producer layer is applied here (x*scale+shift);
    # padding stays exactly zero, matching pad(BatchNorm(x)) semantics.
    xv = x_ref[...].reshape(H, W, Cin).astype(jnp.float32)
    xv = xv * s_ref[...].reshape(1, 1, Cin) + t_ref[...].reshape(1, 1, Cin)
    xv = xv.astype(xpad_ref.dtype)
    if pt:
        xpad_ref[0:pt, :, :] = jnp.zeros((pt, Wp, Cin), xpad_ref.dtype)
    if pb:
        xpad_ref[pt + H:Hp, :, :] = jnp.zeros((pb, Wp, Cin), xpad_ref.dtype)
    if pleft:
        xpad_ref[:, 0:pleft, :] = jnp.zeros((Hp, pleft, Cin), xpad_ref.dtype)
    if pright:
        xpad_ref[:, pleft + W:Wp, :] = jnp.zeros((Hp, pright, Cin), xpad_ref.dtype)
    xpad_ref[pt:pt + H, pleft:pleft + W, :] = xv

    wv = w_ref[...]          # (K, Cout) bf16, resident
    bv = b_ref[...]          # (1, Cout) f32

    def tile_body(s, carry):
        zsum, zsq = carry
        r0 = s * th
        if not isinstance(s, int):
            r0 = pl.multiple_of(r0, th)
        win = xpad_ref[pl.ds(r0, th_in)]                       # (th_in, Wp, Cin)
        # im2col gather in VMEM: one (rows, KH*KW*Cin) operand, ONE MXU matmul.
        taps = [win[kh * dh:kh * dh + th, kw * dw:kw * dw + Wout, :]
                for kh in range(KH) for kw in range(KW)]
        col = taps[0] if len(taps) == 1 else jnp.concatenate(taps, axis=-1)
        col2 = col.reshape(th * Wout, K)
        acc = jnp.dot(col2, wv, preferred_element_type=jnp.float32)
        acc = acc + bv
        if apply_relu:
            acc = jnp.maximum(acc, 0.0)
        yb = acc.astype(y_ref.dtype)                           # (rows, Cout)
        y_ref[:, pl.ds(r0, th), :, :] = yb.reshape(1, th, Wout, Cout)
        # BN statistics from the bf16 value that is actually stored/consumed.
        yf = yb.astype(jnp.float32)
        zsum = zsum + jnp.sum(yf, axis=0, keepdims=True)
        zsq = zsq + jnp.sum(yf * yf, axis=0, keepdims=True)
        return zsum, zsq

    carry = (jnp.zeros((1, Cout), jnp.float32), jnp.zeros((1, Cout), jnp.float32))
    if n_tiles <= 8:
        for s in range(n_tiles):
            carry = tile_body(s, carry)
    else:
        carry = lax.fori_loop(0, n_tiles, tile_body, carry)
    zsum, zsq = carry
    su_ref[...] = zsum.reshape(1, 1, Cout)
    sq_ref[...] = zsq.reshape(1, 1, Cout)


def conv2d_relu(act, weight, bias, *, dilation=(1, 1),
                padding=((0, 0), (0, 0)), apply_relu=True):
    """act: Act with NHWC bf16 data (pending per-channel affine fused in-kernel).
    weight: PyTorch layout (Cout, Cin, KH, KW) f32.  Stride-1 convolution with
    zero padding done inside the kernel.  Returns (Act, (csum, csq, count))."""
    x = act.data
    N, H, W, Cin = x.shape
    Cout, _, KH, KW = weight.shape
    dh, dw = dilation
    (pt, pb), (pleft, pright) = padding
    Hp, Wp = H + pt + pb, W + pleft + pright
    Hout = Hp - dh * (KH - 1)
    Wout = Wp - dw * (KW - 1)
    K = KH * KW * Cin

    wmat = jnp.transpose(weight, (2, 3, 1, 0)).reshape(K, Cout).astype(ACT_DTYPE)
    b2 = bias.reshape(1, Cout).astype(jnp.float32)
    s_in = _eff_scale(act, Cin).reshape(1, Cin)
    t_in = _eff_shift(act, Cin).reshape(1, Cin)

    # Inner row tile: bound the f32 accumulator (<=128 KiB) and the bf16
    # im2col value (<=3 MiB) so neither spills / blows VMEM.
    rows_cap = min((128 * 1024) // (4 * max(Cout, 1)),
                   (3 << 20) // (2 * max(K, 1)))
    th = _largest_divisor_leq(Hout, max(1, rows_cap // max(Wout, 1)))

    kernel = functools.partial(
        _conv_kernel, KH=KH, KW=KW, dh=dh, dw=dw,
        pt=pt, pb=pb, pleft=pleft, pright=pright, th=th, apply_relu=apply_relu)

    # TODO(synk): per-image VMEM residency assumes H*W*C activations fit VMEM
    # (true for DUCK-Net scale); very large images would need a row-tiled grid.
    y, psum, psq = pl.pallas_call(
        kernel,
        out_shape=(jax.ShapeDtypeStruct((N, Hout, Wout, Cout), ACT_DTYPE),
                   jax.ShapeDtypeStruct((N, 1, Cout), jnp.float32),
                   jax.ShapeDtypeStruct((N, 1, Cout), jnp.float32)),
        grid=(N,),
        in_specs=[
            pl.BlockSpec((1, H, W, Cin), lambda n: (n, 0, 0, 0)),   # auto-pipelined
            pl.BlockSpec((1, Cin), lambda n: (0, 0)),               # pending scale
            pl.BlockSpec((1, Cin), lambda n: (0, 0)),               # pending shift
            pl.BlockSpec((K, Cout), lambda n: (0, 0)),              # weights resident
            pl.BlockSpec((1, Cout), lambda n: (0, 0)),              # bias
        ],
        out_specs=(pl.BlockSpec((1, Hout, Wout, Cout), lambda n: (n, 0, 0, 0)),
                   pl.BlockSpec((1, 1, Cout), lambda n: (n, 0, 0)),
                   pl.BlockSpec((1, 1, Cout), lambda n: (n, 0, 0))),
        scratch_shapes=[pltpu.VMEM((Hp, Wp, Cin), ACT_DTYPE)],       # padded slab
        compiler_params=_compiler_params(("parallel",)),
    )(x, s_in, t_in, wmat, b2)

    csum = psum.sum(axis=(0, 1))
    csq = psq.sum(axis=(0, 1))
    return Act(y, None, None), (csum, csq, N * Hout * Wout)


# ----------------------------------------------------------------------------
# Kernel 2: fused (multi-way) scaled add + per-channel stats, lane-dense layout
# ----------------------------------------------------------------------------
def _sum_stats_kernel(*refs, n_in, write_out):
    xs = refs[:n_in]
    ss = refs[n_in:2 * n_in]
    ts = refs[2 * n_in:3 * n_in]
    pos = 3 * n_in
    z_ref = None
    if write_out:
        z_ref = refs[pos]
        pos += 1
    su_ref, sq_ref = refs[pos], refs[pos + 1]

    acc = xs[0][...].astype(jnp.float32) * ss[0][...] + ts[0][...]
    for i in range(1, n_in):
        acc = acc + xs[i][...].astype(jnp.float32) * ss[i][...] + ts[i][...]
    if write_out:
        zb = acc.astype(z_ref.dtype)
        z_ref[...] = zb
        acc = zb.astype(jnp.float32)     # stats of exactly what is stored
    kc = acc.shape[-1]
    su_ref[...] = jnp.sum(acc, axis=0, keepdims=True).reshape(1, 1, kc)
    sq_ref[...] = jnp.sum(acc * acc, axis=0, keepdims=True).reshape(1, 1, kc)


def _sum_and_stats(acts, write_out):
    """Computes z = sum_i (x_i*scale_i + shift_i) and its per-channel stats.
    Lane-dense: the flat (M, C) view is reshaped (free) to (M/k, k*C)."""
    N, H, W, C = acts[0].data.shape
    M = N * H * W
    n_in = len(acts)
    k = _pow2_divisor(M, max(1, 1024 // max(C, 1)))
    kC = k * C
    R = M // k

    streams = n_in + (1 if write_out else 0)
    target_rows = max(8, (6 << 20) // max(1, streams * kC * 4))
    tm = _largest_divisor_leq(R, target_rows)
    G = R // tm

    xs = [a.data.reshape(R, kC) for a in acts]
    ss = [jnp.tile(_eff_scale(a, C), k).reshape(1, kC) for a in acts]
    ts = [jnp.tile(_eff_shift(a, C), k).reshape(1, kC) for a in acts]

    out_shapes = []
    out_specs = []
    if write_out:
        out_shapes.append(jax.ShapeDtypeStruct((R, kC), ACT_DTYPE))
        out_specs.append(pl.BlockSpec((tm, kC), lambda i: (i, 0)))
    out_shapes += [jax.ShapeDtypeStruct((G, 1, kC), jnp.float32)] * 2
    out_specs += [pl.BlockSpec((1, 1, kC), lambda i: (i, 0, 0))] * 2

    in_specs = ([pl.BlockSpec((tm, kC), lambda i: (i, 0))] * n_in
                + [pl.BlockSpec((1, kC), lambda i: (0, 0))] * (2 * n_in))

    kernel = functools.partial(_sum_stats_kernel, n_in=n_in, write_out=write_out)
    res = pl.pallas_call(
        kernel,
        out_shape=tuple(out_shapes),
        grid=(G,),
        in_specs=in_specs,
        out_specs=tuple(out_specs),
        compiler_params=_compiler_params(("parallel",)),
    )(*xs, *ss, *ts)

    if write_out:
        z, psum, psq = res
        data = z.reshape(N, H, W, C)
    else:
        psum, psq = res
        data = acts[0].data
    csum = psum.sum(axis=(0, 1)).reshape(k, C).sum(axis=0)
    csq = psq.sum(axis=(0, 1)).reshape(k, C).sum(axis=0)
    return data, (csum, csq, M)


# ----------------------------------------------------------------------------
# Kernel 3: materialize a pending per-channel affine (only at module output)
# ----------------------------------------------------------------------------
def _affine_kernel(x_ref, s_ref, t_ref, o_ref):
    o_ref[...] = (x_ref[...].astype(jnp.float32) * s_ref[...]
                  + t_ref[...]).astype(o_ref.dtype)


def materialize(act, out_dtype=jnp.float32):
    if act.scale is None:
        return act.data.astype(out_dtype)
    N, H, W, C = act.data.shape
    M = N * H * W
    k = _pow2_divisor(M, max(1, 1024 // max(C, 1)))
    kC = k * C
    R = M // k
    tm = _largest_divisor_leq(R, max(8, (8 << 20) // max(1, kC * 6)))
    G = R // tm
    s = jnp.tile(act.scale.astype(jnp.float32), k).reshape(1, kC)
    t = jnp.tile(act.shift.astype(jnp.float32), k).reshape(1, kC)
    out = pl.pallas_call(
        _affine_kernel,
        out_shape=jax.ShapeDtypeStruct((R, kC), out_dtype),
        grid=(G,),
        in_specs=[pl.BlockSpec((tm, kC), lambda i: (i, 0)),
                  pl.BlockSpec((1, kC), lambda i: (0, 0)),
                  pl.BlockSpec((1, kC), lambda i: (0, 0))],
        out_specs=pl.BlockSpec((tm, kC), lambda i: (i, 0)),
        compiler_params=_compiler_params(("parallel",)),
    )(act.data.reshape(R, kC), s, t)
    return out.reshape(N, H, W, C)


# ----------------------------------------------------------------------------
# BatchNorm bookkeeping (training-mode batch statistics, biased variance)
# ----------------------------------------------------------------------------
def _bn_scale_shift(stats, gamma, beta):
    csum, csq, count = stats
    mean = csum / count
    var = jnp.maximum(csq / count - mean * mean, 0.0)
    # NOTE: E[x^2]-E[x]^2 in f32; fine for post-ReLU activations near zero.
    s = gamma.astype(jnp.float32) * lax.rsqrt(var + EPS)
    t = beta.astype(jnp.float32) - mean * s
    return s, t
    # TODO(synk): running_mean/running_var/num_batches_tracked buffer updates
    # (training-side state) are not materialized; only the batch-statistics
    # forward normalization is computed.


def bn_from_conv(act, stats, gamma, beta):
    """BN of a conv output whose stats were already fused into the conv call;
    deferred as a pending (scale, shift) folded into the next consumer."""
    s, t = _bn_scale_shift(stats, gamma, beta)
    return Act(act.data, s, t)


def bn_act(act_or_list, gamma, beta):
    """bn_act([a, b, ...]) == BatchNorm(a + b + ...); the add is fused with the
    stats pass.  A single-input BN never materializes (transforms compose)."""
    acts = [act_or_list] if isinstance(act_or_list, Act) else list(act_or_list)
    multi = len(acts) > 1
    data, stats = _sum_and_stats(acts, write_out=multi)
    s, t = _bn_scale_shift(stats, gamma, beta)
    if multi:
        return Act(data, s, t)
    a = acts[0]
    if a.scale is None:
        return Act(a.data, s, t)
    return Act(a.data, s * a.scale, s * a.shift + t)   # compose affine maps


# ----------------------------------------------------------------------------
# Parameter init (matches PyTorch init distributions in shape/scale)
# ----------------------------------------------------------------------------
def init_conv(key, cin, cout, kh, kw):
    kwt, kbt = jax.random.split(key)
    fan_in = cin * kh * kw
    w_bound = math.sqrt(6.0 / fan_in)            # kaiming_uniform, relu gain
    b_bound = 1.0 / math.sqrt(fan_in)            # default Conv2d bias init
    w = jax.random.uniform(kwt, (cout, cin, kh, kw), jnp.float32, -w_bound, w_bound)
    b = jax.random.uniform(kbt, (cout,), jnp.float32, -b_bound, b_bound)
    return {"w": w, "b": b}


def init_bn(c):
    return {"gamma": jnp.ones((c,), jnp.float32), "beta": jnp.zeros((c,), jnp.float32)}


def _same_pad(kernel, dilation):
    total = dilation * (kernel - 1)
    before = total // 2
    return (before, total - before)


# ----------------------------------------------------------------------------
# Block definitions mirroring the PyTorch modules (operate on Act, NHWC bf16)
# ----------------------------------------------------------------------------
class ConvBlock:
    def __init__(self, key, in_channels, size=3):
        self.size = size
        self.conv1 = init_conv(key, in_channels, in_channels, size, size)

    def __call__(self, x):
        p = _same_pad(self.size, 1)
        out, _ = conv2d_relu(x, self.conv1["w"], self.conv1["b"], padding=(p, p))
        return out


class MidScopeConv2DBlock:
    def __init__(self, key, in_channels, size=3, down=False):
        half = in_channels // 2 if down else in_channels
        k1, k2 = jax.random.split(key)
        self.size = size
        self.conv1 = init_conv(k1, in_channels, half, size, size)
        self.bn1 = init_bn(half)
        self.conv2 = init_conv(k2, half, half, size, size)
        self.bn2 = init_bn(half)

    def __call__(self, x):
        p1 = _same_pad(self.size, 1)
        x, st = conv2d_relu(x, self.conv1["w"], self.conv1["b"], dilation=(1, 1),
                            padding=(p1, p1))
        x = bn_from_conv(x, st, self.bn1["gamma"], self.bn1["beta"])
        p2 = _same_pad(self.size, 2)
        x, st = conv2d_relu(x, self.conv2["w"], self.conv2["b"], dilation=(2, 2),
                            padding=(p2, p2))
        return bn_from_conv(x, st, self.bn2["gamma"], self.bn2["beta"])


class WideScopeConv2DBlock:
    def __init__(self, key, in_channels, size=3, down=False):
        half = in_channels // 2 if down else in_channels
        k1, k2, k3 = jax.random.split(key, 3)
        self.size = size
        self.conv1 = init_conv(k1, in_channels, half, size, size)
        self.bn1 = init_bn(half)
        self.conv2 = init_conv(k2, half, half, size, size)
        self.bn2 = init_bn(half)
        self.conv3 = init_conv(k3, half, half, size, size)
        self.bn3 = init_bn(half)

    def __call__(self, x):
        for d, conv, bn in ((1, self.conv1, self.bn1),
                            (2, self.conv2, self.bn2),
                            (3, self.conv3, self.bn3)):
            p = _same_pad(self.size, d)
            x, st = conv2d_relu(x, conv["w"], conv["b"], dilation=(d, d), padding=(p, p))
            x = bn_from_conv(x, st, bn["gamma"], bn["beta"])
        return x


class SeparatedConv2DBlock:
    def __init__(self, key, in_channels, size=3, down=False):
        half = in_channels // 2 if down else in_channels
        k1, k2 = jax.random.split(key)
        self.size = size
        self.conv1 = init_conv(k1, in_channels, half, 1, size)
        self.bn1 = init_bn(half)
        self.conv2 = init_conv(k2, half, half, size, 1)
        self.bn2 = init_bn(half)

    def __call__(self, x):
        s = self.size
        if s % 2 == 0:
            wpad = ((s - 1) // 2, s // 2)
            hpad = ((s - 1) // 2, s // 2)
        else:
            wpad = (s // 2, s // 2)
            hpad = (s // 2, s // 2)
        x, st = conv2d_relu(x, self.conv1["w"], self.conv1["b"], padding=((0, 0), wpad))
        x = bn_from_conv(x, st, self.bn1["gamma"], self.bn1["beta"])
        x, st = conv2d_relu(x, self.conv2["w"], self.conv2["b"], padding=(hpad, (0, 0)))
        return bn_from_conv(x, st, self.bn2["gamma"], self.bn2["beta"])


class ResNetConv2DBlock:
    def __init__(self, key, in_channels, dilation=1, down=False):
        half = in_channels // 2 if down else in_channels
        k0, k1, k2 = jax.random.split(key, 3)
        self.dilation = dilation
        self.conv_ = init_conv(k0, in_channels, half, 1, 1)
        self.conv1 = init_conv(k1, in_channels, half, 3, 3)
        self.bn1 = init_bn(half)
        self.conv2 = init_conv(k2, half, half, 3, 3)
        self.bn2 = init_bn(half)
        self.bn3 = init_bn(half)

    def __call__(self, x):
        d = self.dilation
        x1, _ = conv2d_relu(x, self.conv_["w"], self.conv_["b"], dilation=(d, d))
        y, st = conv2d_relu(x, self.conv1["w"], self.conv1["b"], dilation=(d, d),
                            padding=((1, 1), (1, 1)))
        y = bn_from_conv(y, st, self.bn1["gamma"], self.bn1["beta"])
        y, st = conv2d_relu(y, self.conv2["w"], self.conv2["b"], dilation=(d, d),
                            padding=((1, 1), (1, 1)))
        y = bn_from_conv(y, st, self.bn2["gamma"], self.bn2["beta"])
        # bn3(x + x1): residual add fused with the BN stats kernel
        return bn_act([y, x1], self.bn3["gamma"], self.bn3["beta"])


class DuckV2Conv2DBlock:
    def __init__(self, key, in_channels, size=3, down=False):
        ks = iter(jax.random.split(key, 16))
        half = in_channels // 2
        self.bn1 = init_bn(in_channels)
        self.widescope = WideScopeConv2DBlock(next(ks), in_channels, size, down=down)
        self.midscope = MidScopeConv2DBlock(next(ks), in_channels, size, down=down)
        self.block1 = [ConvBlock2D(next(ks), in_channels, 'resnet', repeat=1, down=down)]
        if down:
            self.block2 = [ConvBlock2D(next(ks), in_channels, 'resnet', repeat=1, down=down),
                           ConvBlock2D(next(ks), half, 'resnet', repeat=1)]
            self.block3 = [ConvBlock2D(next(ks), in_channels, 'resnet', repeat=1, down=down),
                           ConvBlock2D(next(ks), half, 'resnet', repeat=1),
                           ConvBlock2D(next(ks), half, 'resnet', repeat=1)]
        else:
            self.block2 = [ConvBlock2D(next(ks), in_channels, 'resnet', repeat=2, down=down)]
            self.block3 = [ConvBlock2D(next(ks), in_channels, 'resnet', repeat=3, down=down)]
        self.separated = SeparatedConv2DBlock(next(ks), in_channels, size=6, down=down)
        self.bn2 = init_bn(in_channels if not down else half)

    @staticmethod
    def _seq(blocks, x):
        for b in blocks:
            x = b(x)
        return x

    def __call__(self, x):
        x = bn_act(x, self.bn1["gamma"], self.bn1["beta"])   # composed, no HBM pass
        x1 = self.widescope(x)
        x2 = self.midscope(x)
        x3 = self._seq(self.block1, x)
        x4 = self._seq(self.block2, x)
        x5 = self._seq(self.block3, x)
        x6 = self.separated(x)
        # six-way branch sum fused with the final BN's stats kernel
        return bn_act([x1, x2, x3, x4, x5, x6], self.bn2["gamma"], self.bn2["beta"])


class ConvBlock2D:
    def __init__(self, key, in_channels, block_type, repeat=1, dilation=1,
                 size=3, padding='same', down=False):
        self.layers = []
        keys = jax.random.split(key, max(repeat, 1))
        for i in range(repeat):
            k = keys[i]
            if block_type == 'separated':
                layer = SeparatedConv2DBlock(k, in_channels, size)
            elif block_type == 'duckv2':
                layer = DuckV2Conv2DBlock(k, in_channels, size, down=down)
            elif block_type == 'widescope':
                layer = WideScopeConv2DBlock(k, in_channels)
            elif block_type == 'midscope':
                layer = MidScopeConv2DBlock(k, in_channels)
            elif block_type == 'resnet':
                layer = ResNetConv2DBlock(k, in_channels, dilation, down=down)
            elif block_type == 'conv':
                layer = ConvBlock(k, in_channels, size)
            else:
                raise ValueError(f"unknown block_type {block_type}")
            self.layers.append(layer)

    def __call__(self, x):
        for layer in self.layers:
            x = layer(x)
        return x


def conv_block2d_forward(model, x_nchw):
    # external NCHW f32 -> internal NHWC bf16 -> external NCHW f32
    x = jnp.transpose(x_nchw, (0, 2, 3, 1)).astype(ACT_DTYPE)
    y_act = model(Act(x, None, None))
    y = materialize(y_act, jnp.float32)           # apply any pending BN (Pallas)
    return jnp.transpose(y, (0, 3, 1, 2))


# ----------------------------------------------------------------------------
if __name__ == "__main__":
    key = jax.random.PRNGKey(0)
    kx, kp = jax.random.split(key)

    # small deterministic input, NCHW like the PyTorch module
    x = jax.random.normal(kx, (2, 4, 16, 16), jnp.float32)

    # ConvBlock2D(in_channels=4, block_type='resnet', repeat=2)
    model = ConvBlock2D(kp, 4, 'resnet', repeat=2)

    fwd = jax.jit(lambda inp: conv_block2d_forward(model, inp))
    y = fwd(x)
    jax.block_until_ready(y)

    assert y.shape == x.shape, (y.shape, x.shape)
    assert y.dtype == jnp.float32
    print("KERNEL_OK")
</pallas_src>

<mosaic_0001>
module attributes {stable_mosaic.version = 11 : i64} {
  func.func @_conv_kernel(%arg0: i32, %arg1: memref<1x16x16x4xbf16, #tpu.memory_space<vmem>>, %arg2: memref<1x4xf32, #tpu.memory_space<vmem>>, %arg3: memref<1x4xf32, #tpu.memory_space<vmem>>, %arg4: memref<36x4xbf16, #tpu.memory_space<vmem>>, %arg5: memref<1x4xf32, #tpu.memory_space<vmem>>, %arg6: memref<1x16x16x4xbf16, #tpu.memory_space<vmem>>, %arg7: memref<1x1x4xf32, #tpu.memory_space<vmem>>, %arg8: memref<1x1x4xf32, #tpu.memory_space<vmem>>, %arg9: memref<18x18x4xbf16, #tpu.memory_space<vmem>>) attributes {dimension_semantics = [#tpu.dimension_semantics<parallel>], iteration_bounds = array<i64: 2>, scalar_prefetch = 0 : i64, scratch_operands = 1 : i64, tpu.core_type = #tpu.core_type<tc>, window_params = [{transform_indices = @transform_0, window_bounds = array<i64: 1, 16, 16, 4>}, {pipeline_mode = #tpu.pipeline_mode<synchronous>, transform_indices = @transform_1, window_bounds = array<i64: 1, 4>}, {pipeline_mode = #tpu.pipeline_mode<synchronous>, transform_indices = @transform_2, window_bounds = array<i64: 1, 4>}, {pipeline_mode = #tpu.pipeline_mode<synchronous>, transform_indices = @transform_3, window_bounds = array<i64: 36, 4>}, {pipeline_mode = #tpu.pipeline_mode<synchronous>, transform_indices = @transform_4, window_bounds = array<i64: 1, 4>}, {transform_indices = @transform_5, window_bounds = array<i64: 1, 16, 16, 4>}, {transform_indices = @transform_6, window_bounds = array<i64: 1, 1, 4>}, {transform_indices = @transform_7, window_bounds = array<i64: 1, 1, 4>}]} {
    %c0 = arith.constant 0 : index
    %c0_0 = arith.constant 0 : index
    %c0_1 = arith.constant 0 : index
    %c0_2 = arith.constant 0 : index
    %0 = vector.load %arg1[%c0, %c0_0, %c0_1, %c0_2] : memref<1x16x16x4xbf16, #tpu.memory_space<vmem>>, vector<1x16x16x4xbf16>
    %1 = vector.shape_cast %0 : vector<1x16x16x4xbf16> to vector<16x16x4xbf16>
    %2 = arith.extf %1 : vector<16x16x4xbf16> to vector<16x16x4xf32>
    %c0_3 = arith.constant 0 : index
    %c0_4 = arith.constant 0 : index
    %3 = vector.load %arg2[%c0_3, %c0_4] : memref<1x4xf32, #tpu.memory_space<vmem>>, vector<1x4xf32>
    %4 = vector.shape_cast %3 : vector<1x4xf32> to vector<1x1x4xf32>
    %5 = vector.broadcast %4 : vector<1x1x4xf32> to vector<16x16x4xf32>
    %6 = arith.mulf %2, %5 : vector<16x16x4xf32>
    %c0_5 = arith.constant 0 : index
    %c0_6 = arith.constant 0 : index
    %7 = vector.load %arg3[%c0_5, %c0_6] : memref<1x4xf32, #tpu.memory_space<vmem>>, vector<1x4xf32>
    %8 = vector.shape_cast %7 : vector<1x4xf32> to vector<1x1x4xf32>
    %9 = vector.broadcast %8 : vector<1x1x4xf32> to vector<16x16x4xf32>
    %10 = arith.addf %6, %9 : vector<16x16x4xf32>
    %11 = arith.truncf %10 : vector<16x16x4xf32> to vector<16x16x4xbf16>
    %cst = arith.constant 0.000000e+00 : bf16
    %12 = vector.broadcast %cst : bf16 to vector<1x18x4xbf16>
    %c0_7 = arith.constant 0 : index
    %c0_8 = arith.constant 0 : index
    %c0_9 = arith.constant 0 : index
    %13 = vector.load %arg9[%c0_7, %c0_8, %c0_9] : memref<18x18x4xbf16, #tpu.memory_space<vmem>>, vector<1x18x4xbf16>
    tpu.vector_store %arg9[%c0_7, %c0_8, %c0_9], %12 {strides = array<i32>} : memref<18x18x4xbf16, #tpu.memory_space<vmem>>, vector<1x18x4xbf16>,
    %cst_10 = arith.constant 0.000000e+00 : bf16
    %14 = vector.broadcast %cst_10 : bf16 to vector<1x18x4xbf16>
    %c17 = arith.constant 17 : index
    %c0_11 = arith.constant 0 : index
    %c0_12 = arith.constant 0 : index
    %15 = vector.load %arg9[%c17, %c0_11, %c0_12] : memref<18x18x4xbf16, #tpu.memory_space<vmem>>, vector<1x18x4xbf16>
    tpu.vector_store %arg9[%c17, %c0_11, %c0_12], %14 {strides = array<i32>} : memref<18x18x4xbf16, #tpu.memory_space<vmem>>, vector<1x18x4xbf16>,
    %cst_13 = arith.constant 0.000000e+00 : bf16
    %16 = vector.broadcast %cst_13 : bf16 to vector<18x1x4xbf16>
    %c0_14 = arith.constant 0 : index
    %c0_15 = arith.constant 0 : index
    %c0_16 = arith.constant 0 : index
    %17 = vector.load %arg9[%c0_14, %c0_15, %c0_16] : memref<18x18x4xbf16, #tpu.memory_space<vmem>>, vector<18x1x4xbf16>
    tpu.vector_store %arg9[%c0_14, %c0_15, %c0_16], %16 {strides = array<i32>} : memref<18x18x4xbf16, #tpu.memory_space<vmem>>, vector<18x1x4xbf16>,
    %cst_17 = arith.constant 0.000000e+00 : bf16
    %18 = vector.broadcast %cst_17 : bf16 to vector<18x1x4xbf16>
    %c0_18 = arith.constant 0 : index
    %c17_19 = arith.constant 17 : index
    %c0_20 = arith.constant 0 : index
    %19 = vector.load %arg9[%c0_18, %c17_19, %c0_20] : memref<18x18x4xbf16, #tpu.memory_space<vmem>>, vector<18x1x4xbf16>
    tpu.vector_store %arg9[%c0_18, %c17_19, %c0_20], %18 {strides = array<i32>} : memref<18x18x4xbf16, #tpu.memory_space<vmem>>, vector<18x1x4xbf16>,
    %c1 = arith.constant 1 : index
    %c1_21 = arith.constant 1 : index
    %c0_22 = arith.constant 0 : index
    %20 = vector.load %arg9[%c1, %c1_21, %c0_22] : memref<18x18x4xbf16, #tpu.memory_space<vmem>>, vector<16x16x4xbf16>
    tpu.vector_store %arg9[%c1, %c1_21, %c0_22], %11 {strides = array<i32>} : memref<18x18x4xbf16, #tpu.memory_space<vmem>>, vector<16x16x4xbf16>,
    %c0_23 = arith.constant 0 : index
    %c0_24 = arith.constant 0 : index
    %21 = vector.load %arg4[%c0_23, %c0_24] : memref<36x4xbf16, #tpu.memory_space<vmem>>, vector<36x4xbf16>
    %c0_25 = arith.constant 0 : index
    %c0_26 = arith.constant 0 : index
    %22 = vector.load %arg5[%c0_25, %c0_26] : memref<1x4xf32, #tpu.memory_space<vmem>>, vector<1x4xf32>
    %cst_27 = arith.constant 0.000000e+00 : f32
    %23 = vector.broadcast %cst_27 : f32 to vector<1x4xf32>
    %cst_28 = arith.constant 0.000000e+00 : f32
    %24 = vector.broadcast %cst_28 : f32 to vector<1x4xf32>
    %c0_29 = arith.constant 0 : index
    %c0_30 = arith.constant 0 : index
    %c0_31 = arith.constant 0 : index
    %25 = vector.load %arg9[%c0_29, %c0_30, %c0_31] : memref<18x18x4xbf16, #tpu.memory_space<vmem>>, vector<18x18x4xbf16>
    %26 = vector.extract_strided_slice %25 {offsets = [0, 0, 0], sizes = [16, 16, 4], strides = [1, 1, 1]} : vector<18x18x4xbf16> to vector<16x16x4xbf16>
    %27 = vector.extract_strided_slice %25 {offsets = [0, 1, 0], sizes = [16, 16, 4], strides = [1, 1, 1]} : vector<18x18x4xbf16> to vector<16x16x4xbf16>
    %28 = vector.extract_strided_slice %25 {offsets = [0, 2, 0], sizes = [16, 16, 4], strides = [1, 1, 1]} : vector<18x18x4xbf16> to vector<16x16x4xbf16>
    %29 = vector.extract_strided_slice %25 {offsets = [1, 0, 0], sizes = [16, 16, 4], strides = [1, 1, 1]} : vector<18x18x4xbf16> to vector<16x16x4xbf16>
    %30 = vector.extract_strided_slice %25 {offsets = [1, 1, 0], sizes = [16, 16, 4], strides = [1, 1, 1]} : vector<18x18x4xbf16> to vector<16x16x4xbf16>
    %31 = vector.extract_strided_slice %25 {offsets = [1, 2, 0], sizes = [16, 16, 4], strides = [1, 1, 1]} : vector<18x18x4xbf16> to vector<16x16x4xbf16>
    %32 = vector.extract_strided_slice %25 {offsets = [2, 0, 0], sizes = [16, 16, 4], strides = [1, 1, 1]} : vector<18x18x4xbf16> to vector<16x16x4xbf16>
    %33 = vector.extract_strided_slice %25 {offsets = [2, 1, 0], sizes = [16, 16, 4], strides = [1, 1, 1]} : vector<18x18x4xbf16> to vector<16x16x4xbf16>
    %34 = vector.extract_strided_slice %25 {offsets = [2, 2, 0], sizes = [16, 16, 4], strides = [1, 1, 1]} : vector<18x18x4xbf16> to vector<16x16x4xbf16>
    %35 = tpu.concatenate %26, %27, %28, %29, %30, %31, %32, %33, %34 in 2 : vector<16x16x4xbf16>, vector<16x16x4xbf16>, vector<16x16x4xbf16>, vector<16x16x4xbf16>, vector<16x16x4xbf16>, vector<16x16x4xbf16>, vector<16x16x4xbf16>, vector<16x16x4xbf16>, vector<16x16x4xbf16> -> vector<16x16x36xbf16>
    %36 = vector.shape_cast %35 : vector<16x16x36xbf16> to vector<256x36xbf16>
    %cst_32 = arith.constant dense<0.000000e+00> : vector<256x4xf32>
    %37 = tpu.matmul %36, %21, %cst_32 {dimension_numbers = #tpu.dot_dimension_numbers<[1], [0], [0], [1], [0, 0, 1, 1], [], []>} : vector<256x36xbf16>, vector<36x4xbf16>, vector<256x4xf32> -> vector<256x4xf32>
    %38 = vector.broadcast %22 : vector<1x4xf32> to vector<256x4xf32>
    %39 = arith.addf %37, %38 : vector<256x4xf32>
    %cst_33 = arith.constant 0.000000e+00 : f32
    %40 = vector.broadcast %cst_33 : f32 to vector<256x4xf32>
    %41 = arith.maximumf %39, %40 : vector<256x4xf32>
    %42 = arith.truncf %41 : vector<256x4xf32> to vector<256x4xbf16>
    %43 = vector.shape_cast %42 : vector<256x4xbf16> to vector<1x16x16x4xbf16>
    %c0_34 = arith.constant 0 : index
    %c0_35 = arith.constant 0 : index
    %c0_36 = arith.constant 0 : index
    %c0_37 = arith.constant 0 : index
    %44 = vector.load %arg6[%c0_34, %c0_35, %c0_36, %c0_37] : memref<1x16x16x4xbf16, #tpu.memory_space<vmem>>, vector<1x16x16x4xbf16>
    tpu.vector_store %arg6[%c0_34, %c0_35, %c0_36, %c0_37], %43 {strides = array<i32>} : memref<1x16x16x4xbf16, #tpu.memory_space<vmem>>, vector<1x16x16x4xbf16>,
    %45 = arith.extf %42 : vector<256x4xbf16> to vector<256x4xf32>
    %cst_38 = arith.constant dense<0.000000e+00> : vector<4xf32>
    %46 = vector.multi_reduction <add>, %45, %cst_38 [0] : vector<256x4xf32> to vector<4xf32>
    %47 = vector.shape_cast %46 : vector<4xf32> to vector<1x4xf32>
    %48 = arith.addf %23, %47 : vector<1x4xf32>
    %49 = arith.mulf %45, %45 : vector<256x4xf32>
    %cst_39 = arith.constant dense<0.000000e+00> : vector<4xf32>
    %50 = vector.multi_reduction <add>, %49, %cst_39 [0] : vector<256x4xf32> to vector<4xf32>
    %51 = vector.shape_cast %50 : vector<4xf32> to vector<1x4xf32>
    %52 = arith.addf %24, %51 : vector<1x4xf32>
    %53 = vector.shape_cast %48 : vector<1x4xf32> to vector<1x1x4xf32>
    %c0_40 = arith.constant 0 : index
    %c0_41 = arith.constant 0 : index
    %c0_42 = arith.constant 0 : index
    %54 = vector.load %arg7[%c0_40, %c0_41, %c0_42] : memref<1x1x4xf32, #tpu.memory_space<vmem>>, vector<1x1x4xf32>
    tpu.vector_store %arg7[%c0_40, %c0_41, %c0_42], %53 {strides = array<i32>} : memref<1x1x4xf32, #tpu.memory_space<vmem>>, vector<1x1x4xf32>,
    %55 = vector.shape_cast %52 : vector<1x4xf32> to vector<1x1x4xf32>
    %c0_43 = arith.constant 0 : index
    %c0_44 = arith.constant 0 : index
    %c0_45 = arith.constant 0 : index
    %56 = vector.load %arg8[%c0_43, %c0_44, %c0_45] : memref<1x1x4xf32, #tpu.memory_space<vmem>>, vector<1x1x4xf32>
    tpu.vector_store %arg8[%c0_43, %c0_44, %c0_45], %55 {strides = array<i32>} : memref<1x1x4xf32, #tpu.memory_space<vmem>>, vector<1x1x4xf32>,
    return
  }
  func.func @transform_0(%arg0: i32) -> (i32, i32, i32, i32) {
    %c0_i32 = arith.constant 0 : i32
    %c0_i32_0 = arith.constant 0 : i32
    %c0_i32_1 = arith.constant 0 : i32
    %c0_i32_2 = arith.constant 0 : i32
    return %arg0, %c0_i32, %c0_i32_0, %c0_i32_1 : i32, i32, i32, i32
  }
  func.func @transform_1(%arg0: i32) -> (i32, i32) {
    %c0_i32 = arith.constant 0 : i32
    %c0_i32_0 = arith.constant 0 : i32
    %c0_i32_1 = arith.constant 0 : i32
    return %c0_i32, %c0_i32_0 : i32, i32
  }
  func.func @transform_2(%arg0: i32) -> (i32, i32) {
    %c0_i32 = arith.constant 0 : i32
    %c0_i32_0 = arith.constant 0 : i32
    %c0_i32_1 = arith.constant 0 : i32
    return %c0_i32, %c0_i32_0 : i32, i32
  }
  func.func @transform_3(%arg0: i32) -> (i32, i32) {
    %c0_i32 = arith.constant 0 : i32
    %c0_i32_0 = arith.constant 0 : i32
    %c0_i32_1 = arith.constant 0 : i32
    return %c0_i32, %c0_i32_0 : i32, i32
  }
  func.func @transform_4(%arg0: i32) -> (i32, i32) {
    %c0_i32 = arith.constant 0 : i32
    %c0_i32_0 = arith.constant 0 : i32
    %c0_i32_1 = arith.constant 0 : i32
    return %c0_i32, %c0_i32_0 : i32, i32
  }
  func.func @transform_5(%arg0: i32) -> (i32, i32, i32, i32) {
    %c0_i32 = arith.constant 0 : i32
    %c0_i32_0 = arith.constant 0 : i32
    %c0_i32_1 = arith.constant 0 : i32
    %c0_i32_2 = arith.constant 0 : i32
    return %arg0, %c0_i32, %c0_i32_0, %c0_i32_1 : i32, i32, i32, i32
  }
  func.func @transform_6(%arg0: i32) -> (i32, i32, i32) {
    %c0_i32 = arith.constant 0 : i32
    %c0_i32_0 = arith.constant 0 : i32
    %c0_i32_1 = arith.constant 0 : i32
    return %arg0, %c0_i32, %c0_i32_0 : i32, i32, i32
  }
  func.func @transform_7(%arg0: i32) -> (i32, i32, i32) {
    %c0_i32 = arith.constant 0 : i32
    %c0_i32_0 = arith.constant 0 : i32
    %c0_i32_1 = arith.constant 0 : i32
    return %arg0, %c0_i32, %c0_i32_0 : i32, i32, i32
  }
}

module attributes {stable_mosaic.version = 11 : i64} {
  func.func @_conv_kernel(%arg0: i32, %arg1: memref<1x16x16x4xbf16, #tpu.memory_space<vmem>>, %arg2: memref<1x4xf32, #tpu.memory_space<vmem>>, %arg3: memref<1x4xf32, #tpu.memory_space<vmem>>, %arg4: memref<4x4xbf16, #tpu.memory_space<vmem>>, %arg5: memref<1x4xf32, #tpu.memory_space<vmem>>, %arg6: memref<1x16x16x4xbf16, #tpu.memory_space<vmem>>, %arg7: memref<1x1x4xf32, #tpu.memory_space<vmem>>, %arg8: memref<1x1x4xf32, #tpu.memory_space<vmem>>, %arg9: memref<16x16x4xbf16, #tpu.memory_space<vmem>>) attributes {dimension_semantics = [#tpu.dimension_semantics<parallel>], iteration_bounds = array<i64: 2>, scalar_prefetch = 0 : i64, scratch_operands = 1 : i64, tpu.core_type = #tpu.core_type<tc>, window_params = [{transform_indices = @transform_0, window_bounds = array<i64: 1, 16, 16, 4>}, {pipeline_mode = #tpu.pipeline_mode<synchronous>, transform_indices = @transform_1, window_bounds = array<i64: 1, 4>}, {pipeline_mode = #tpu.pipeline_mode<synchronous>, transform_indices = @transform_2, window_bounds = array<i64: 1, 4>}, {pipeline_mode = #tpu.pipeline_mode<synchronous>, transform_indices = @transform_3, window_bounds = array<i64: 4, 4>}, {pipeline_mode = #tpu.pipeline_mode<synchronous>, transform_indices = @transform_4, window_bounds = array<i64: 1, 4>}, {transform_indices = @transform_5, window_bounds = array<i64: 1, 16, 16, 4>}, {transform_indices = @transform_6, window_bounds = array<i64: 1, 1, 4>}, {transform_indices = @transform_7, window_bounds = array<i64: 1, 1, 4>}]} {
    %c0 = arith.constant 0 : index
    %c0_0 = arith.constant 0 : index
    %c0_1 = arith.constant 0 : index
    %c0_2 = arith.constant 0 : index
    %0 = vector.load %arg1[%c0, %c0_0, %c0_1, %c0_2] : memref<1x16x16x4xbf16, #tpu.memory_space<vmem>>, vector<1x16x16x4xbf16>
    %1 = vector.shape_cast %0 : vector<1x16x16x4xbf16> to vector<16x16x4xbf16>
    %2 = arith.extf %1 : vector<16x16x4xbf16> to vector<16x16x4xf32>
    %c0_3 = arith.constant 0 : index
    %c0_4 = arith.constant 0 : index
    %3 = vector.load %arg2[%c0_3, %c0_4] : memref<1x4xf32, #tpu.memory_space<vmem>>, vector<1x4xf32>
    %4 = vector.shape_cast %3 : vector<1x4xf32> to vector<1x1x4xf32>
    %5 = vector.broadcast %4 : vector<1x1x4xf32> to vector<16x16x4xf32>
    %6 = arith.mulf %2, %5 : vector<16x16x4xf32>
    %c0_5 = arith.constant 0 : index
    %c0_6 = arith.constant 0 : index
    %7 = vector.load %arg3[%c0_5, %c0_6] : memref<1x4xf32, #tpu.memory_space<vmem>>, vector<1x4xf32>
    %8 = vector.shape_cast %7 : vector<1x4xf32> to vector<1x1x4xf32>
    %9 = vector.broadcast %8 : vector<1x1x4xf32> to vector<16x16x4xf32>
    %10 = arith.addf %6, %9 : vector<16x16x4xf32>
    %11 = arith.truncf %10 : vector<16x16x4xf32> to vector<16x16x4xbf16>
    %c0_7 = arith.constant 0 : index
    %c0_8 = arith.constant 0 : index
    %c0_9 = arith.constant 0 : index
    %12 = vector.load %arg9[%c0_7, %c0_8, %c0_9] : memref<16x16x4xbf16, #tpu.memory_space<vmem>>, vector<16x16x4xbf16>
    tpu.vector_store %arg9[%c0_7, %c0_8, %c0_9], %11 {strides = array<i32>} : memref<16x16x4xbf16, #tpu.memory_space<vmem>>, vector<16x16x4xbf16>,
    %c0_10 = arith.constant 0 : index
    %c0_11 = arith.constant 0 : index
    %13 = vector.load %arg4[%c0_10, %c0_11] : memref<4x4xbf16, #tpu.memory_space<vmem>>, vector<4x4xbf16>
    %c0_12 = arith.constant 0 : index
    %c0_13 = arith.constant 0 : index
    %14 = vector.load %arg5[%c0_12, %c0_13] : memref<1x4xf32, #tpu.memory_space<vmem>>, vector<1x4xf32>
    %cst = arith.constant 0.000000e+00 : f32
    %15 = vector.broadcast %cst : f32 to vector<1x4xf32>
    %cst_14 = arith.constant 0.000000e+00 : f32
    %16 = vector.broadcast %cst_14 : f32 to vector<1x4xf32>
    %c0_15 = arith.constant 0 : index
    %c0_16 = arith.constant 0 : index
    %c0_17 = arith.constant 0 : index
    %17 = vector.load %arg9[%c0_15, %c0_16, %c0_17] : memref<16x16x4xbf16, #tpu.memory_space<vmem>>, vector<16x16x4xbf16>
    %18 = vector.shape_cast %17 : vector<16x16x4xbf16> to vector<256x4xbf16>
    %cst_18 = arith.constant dense<0.000000e+00> : vector<256x4xf32>
    %19 = tpu.matmul %18, %13, %cst_18 {dimension_numbers = #tpu.dot_dimension_numbers<[1], [0], [0], [1], [0, 0, 1, 1], [], []>} : vector<256x4xbf16>, vector<4x4xbf16>, vector<256x4xf32> -> vector<256x4xf32>
    %20 = vector.broadcast %14 : vector<1x4xf32> to vector<256x4xf32>
    %21 = arith.addf %19, %20 : vector<256x4xf32>
    %cst_19 = arith.constant 0.000000e+00 : f32
    %22 = vector.broadcast %cst_19 : f32 to vector<256x4xf32>
    %23 = arith.maximumf %21, %22 : vector<256x4xf32>
    %24 = arith.truncf %23 : vector<256x4xf32> to vector<256x4xbf16>
    %25 = vector.shape_cast %24 : vector<256x4xbf16> to vector<1x16x16x4xbf16>
    %c0_20 = arith.constant 0 : index
    %c0_21 = arith.constant 0 : index
    %c0_22 = arith.constant 0 : index
    %c0_23 = arith.constant 0 : index
    %26 = vector.load %arg6[%c0_20, %c0_21, %c0_22, %c0_23] : memref<1x16x16x4xbf16, #tpu.memory_space<vmem>>, vector<1x16x16x4xbf16>
    tpu.vector_store %arg6[%c0_20, %c0_21, %c0_22, %c0_23], %25 {strides = array<i32>} : memref<1x16x16x4xbf16, #tpu.memory_space<vmem>>, vector<1x16x16x4xbf16>,
    %27 = arith.extf %24 : vector<256x4xbf16> to vector<256x4xf32>
    %cst_24 = arith.constant dense<0.000000e+00> : vector<4xf32>
    %28 = vector.multi_reduction <add>, %27, %cst_24 [0] : vector<256x4xf32> to vector<4xf32>
    %29 = vector.shape_cast %28 : vector<4xf32> to vector<1x4xf32>
    %30 = arith.addf %15, %29 : vector<1x4xf32>
    %31 = arith.mulf %27, %27 : vector<256x4xf32>
    %cst_25 = arith.constant dense<0.000000e+00> : vector<4xf32>
    %32 = vector.multi_reduction <add>, %31, %cst_25 [0] : vector<256x4xf32> to vector<4xf32>
    %33 = vector.shape_cast %32 : vector<4xf32> to vector<1x4xf32>
    %34 = arith.addf %16, %33 : vector<1x4xf32>
    %35 = vector.shape_cast %30 : vector<1x4xf32> to vector<1x1x4xf32>
    %c0_26 = arith.constant 0 : index
    %c0_27 = arith.constant 0 : index
    %c0_28 = arith.constant 0 : index
    %36 = vector.load %arg7[%c0_26, %c0_27, %c0_28] : memref<1x1x4xf32, #tpu.memory_space<vmem>>, vector<1x1x4xf32>
    tpu.vector_store %arg7[%c0_26, %c0_27, %c0_28], %35 {strides = array<i32>} : memref<1x1x4xf32, #tpu.memory_space<vmem>>, vector<1x1x4xf32>,
    %37 = vector.shape_cast %34 : vector<1x4xf32> to vector<1x1x4xf32>
    %c0_29 = arith.constant 0 : index
    %c0_30 = arith.constant 0 : index
    %c0_31 = arith.constant 0 : index
    %38 = vector.load %arg8[%c0_29, %c0_30, %c0_31] : memref<1x1x4xf32, #tpu.memory_space<vmem>>, vector<1x1x4xf32>
    tpu.vector_store %arg8[%c0_29, %c0_30, %c0_31], %37 {strides = array<i32>} : memref<1x1x4xf32, #tpu.memory_space<vmem>>, vector<1x1x4xf32>,
    return
  }
  func.func @transform_0(%arg0: i32) -> (i32, i32, i32, i32) {
    %c0_i32 = arith.constant 0 : i32
    %c0_i32_0 = arith.constant 0 : i32
    %c0_i32_1 = arith.constant 0 : i32
    %c0_i32_2 = arith.constant 0 : i32
    return %arg0, %c0_i32, %c0_i32_0, %c0_i32_1 : i32, i32, i32, i32
  }
  func.func @transform_1(%arg0: i32) -> (i32, i32) {
    %c0_i32 = arith.constant 0 : i32
    %c0_i32_0 = arith.constant 0 : i32
    %c0_i32_1 = arith.constant 0 : i32
    return %c0_i32, %c0_i32_0 : i32, i32
  }
  func.func @transform_2(%arg0: i32) -> (i32, i32) {
    %c0_i32 = arith.constant 0 : i32
    %c0_i32_0 = arith.constant 0 : i32
    %c0_i32_1 = arith.constant 0 : i32
    return %c0_i32, %c0_i32_0 : i32, i32
  }
  func.func @transform_3(%arg0: i32) -> (i32, i32) {
    %c0_i32 = arith.constant 0 : i32
    %c0_i32_0 = arith.constant 0 : i32
    %c0_i32_1 = arith.constant 0 : i32
    return %c0_i32, %c0_i32_0 : i32, i32
  }
  func.func @transform_4(%arg0: i32) -> (i32, i32) {
    %c0_i32 = arith.constant 0 : i32
    %c0_i32_0 = arith.constant 0 : i32
    %c0_i32_1 = arith.constant 0 : i32
    return %c0_i32, %c0_i32_0 : i32, i32
  }
  func.func @transform_5(%arg0: i32) -> (i32, i32, i32, i32) {
    %c0_i32 = arith.constant 0 : i32
    %c0_i32_0 = arith.constant 0 : i32
    %c0_i32_1 = arith.constant 0 : i32
    %c0_i32_2 = arith.constant 0 : i32
    return %arg0, %c0_i32, %c0_i32_0, %c0_i32_1 : i32, i32, i32, i32
  }
  func.func @transform_6(%arg0: i32) -> (i32, i32, i32) {
    %c0_i32 = arith.constant 0 : i32
    %c0_i32_0 = arith.constant 0 : i32
    %c0_i32_1 = arith.constant 0 : i32
    return %arg0, %c0_i32, %c0_i32_0 : i32, i32, i32
  }
  func.func @transform_7(%arg0: i32) -> (i32, i32, i32) {
    %c0_i32 = arith.constant 0 : i32
    %c0_i32_0 = arith.constant 0 : i32
    %c0_i32_1 = arith.constant 0 : i32
    return %arg0, %c0_i32, %c0_i32_0 : i32, i32, i32
  }
}

module attributes {stable_mosaic.version = 11 : i64} {
  func.func @_sum_stats_kernel(%arg0: i32, %arg1: memref<2x1024xbf16, #tpu.memory_space<vmem>>, %arg2: memref<2x1024xbf16, #tpu.memory_space<vmem>>, %arg3: memref<1x1024xf32, #tpu.memory_space<vmem>>, %arg4: memref<1x1024xf32, #tpu.memory_space<vmem>>, %arg5: memref<1x1024xf32, #tpu.memory_space<vmem>>, %arg6: memref<1x1024xf32, #tpu.memory_space<vmem>>, %arg7: memref<2x1024xbf16, #tpu.memory_space<vmem>>, %arg8: memref<1x1x1024xf32, #tpu.memory_space<vmem>>, %arg9: memref<1x1x1024xf32, #tpu.memory_space<vmem>>) attributes {dimension_semantics = [#tpu.dimension_semantics<parallel>], iteration_bounds = array<i64: 1>, scalar_prefetch = 0 : i64, scratch_operands = 0 : i64, tpu.core_type = #tpu.core_type<tc>, window_params = [{transform_indices = @transform_0, window_bounds = array<i64: 2, 1024>}, {transform_indices = @transform_1, window_bounds = array<i64: 2, 1024>}, {pipeline_mode = #tpu.pipeline_mode<synchronous>, transform_indices = @transform_2, window_bounds = array<i64: 1, 1024>}, {pipeline_mode = #tpu.pipeline_mode<synchronous>, transform_indices = @transform_3, window_bounds = array<i64: 1, 1024>}, {pipeline_mode = #tpu.pipeline_mode<synchronous>, transform_indices = @transform_4, window_bounds = array<i64: 1, 1024>}, {pipeline_mode = #tpu.pipeline_mode<synchronous>, transform_indices = @transform_5, window_bounds = array<i64: 1, 1024>}, {transform_indices = @transform_6, window_bounds = array<i64: 2, 1024>}, {transform_indices = @transform_7, window_bounds = array<i64: 1, 1, 1024>}, {transform_indices = @transform_8, window_bounds = array<i64: 1, 1, 1024>}]} {
    %c0 = arith.constant 0 : index
    %c0_0 = arith.constant 0 : index
    %0 = vector.load %arg1[%c0, %c0_0] : memref<2x1024xbf16, #tpu.memory_space<vmem>>, vector<2x1024xbf16>
    %1 = arith.extf %0 : vector<2x1024xbf16> to vector<2x1024xf32>
    %c0_1 = arith.constant 0 : index
    %c0_2 = arith.constant 0 : index
    %2 = vector.load %arg3[%c0_1, %c0_2] : memref<1x1024xf32, #tpu.memory_space<vmem>>, vector<1x1024xf32>
    %3 = vector.broadcast %2 : vector<1x1024xf32> to vector<2x1024xf32>
    %4 = arith.mulf %1, %3 : vector<2x1024xf32>
    %c0_3 = arith.constant 0 : index
    %c0_4 = arith.constant 0 : index
    %5 = vector.load %arg5[%c0_3, %c0_4] : memref<1x1024xf32, #tpu.memory_space<vmem>>, vector<1x1024xf32>
    %6 = vector.broadcast %5 : vector<1x1024xf32> to vector<2x1024xf32>
    %7 = arith.addf %4, %6 : vector<2x1024xf32>
    %c0_5 = arith.constant 0 : index
    %c0_6 = arith.constant 0 : index
    %8 = vector.load %arg2[%c0_5, %c0_6] : memref<2x1024xbf16, #tpu.memory_space<vmem>>, vector<2x1024xbf16>
    %9 = arith.extf %8 : vector<2x1024xbf16> to vector<2x1024xf32>
    %c0_7 = arith.constant 0 : index
    %c0_8 = arith.constant 0 : index
    %10 = vector.load %arg4[%c0_7, %c0_8] : memref<1x1024xf32, #tpu.memory_space<vmem>>, vector<1x1024xf32>
    %11 = vector.broadcast %10 : vector<1x1024xf32> to vector<2x1024xf32>
    %12 = arith.mulf %9, %11 : vector<2x1024xf32>
    %13 = arith.addf %7, %12 : vector<2x1024xf32>
    %c0_9 = arith.constant 0 : index
    %c0_10 = arith.constant 0 : index
    %14 = vector.load %arg6[%c0_9, %c0_10] : memref<1x1024xf32, #tpu.memory_space<vmem>>, vector<1x1024xf32>
    %15 = vector.broadcast %14 : vector<1x1024xf32> to vector<2x1024xf32>
    %16 = arith.addf %13, %15 : vector<2x1024xf32>
    %17 = arith.truncf %16 : vector<2x1024xf32> to vector<2x1024xbf16>
    %c0_11 = arith.constant 0 : index
    %c0_12 = arith.constant 0 : index
    %18 = vector.load %arg7[%c0_11, %c0_12] : memref<2x1024xbf16, #tpu.memory_space<vmem>>, vector<2x1024xbf16>
    tpu.vector_store %arg7[%c0_11, %c0_12], %17 {strides = array<i32>} : memref<2x1024xbf16, #tpu.memory_space<vmem>>, vector<2x1024xbf16>,
    %19 = arith.extf %17 : vector<2x1024xbf16> to vector<2x1024xf32>
    %cst = arith.constant dense<0.000000e+00> : vector<1024xf32>
    %20 = vector.multi_reduction <add>, %19, %cst [0] : vector<2x1024xf32> to vector<1024xf32>
    %21 = vector.shape_cast %20 : vector<1024xf32> to vector<1x1024xf32>
    %22 = vector.shape_cast %21 : vector<1x1024xf32> to vector<1x1x1024xf32>
    %c0_13 = arith.constant 0 : index
    %c0_14 = arith.constant 0 : index
    %c0_15 = arith.constant 0 : index
    %23 = vector.load %arg8[%c0_13, %c0_14, %c0_15] : memref<1x1x1024xf32, #tpu.memory_space<vmem>>, vector<1x1x1024xf32>
    tpu.vector_store %arg8[%c0_13, %c0_14, %c0_15], %22 {strides = array<i32>} : memref<1x1x1024xf32, #tpu.memory_space<vmem>>, vector<1x1x1024xf32>,
    %24 = arith.mulf %19, %19 : vector<2x1024xf32>
    %cst_16 = arith.constant dense<0.000000e+00> : vector<1024xf32>
    %25 = vector.multi_reduction <add>, %24, %cst_16 [0] : vector<2x1024xf32> to vector<1024xf32>
    %26 = vector.shape_cast %25 : vector<1024xf32> to vector<1x1024xf32>
    %27 = vector.shape_cast %26 : vector<1x1024xf32> to vector<1x1x1024xf32>
    %c0_17 = arith.constant 0 : index
    %c0_18 = arith.constant 0 : index
    %c0_19 = arith.constant 0 : index
    %28 = vector.load %arg9[%c0_17, %c0_18, %c0_19] : memref<1x1x1024xf32, #tpu.memory_space<vmem>>, vector<1x1x1024xf32>
    tpu.vector_store %arg9[%c0_17, %c0_18, %c0_19], %27 {strides = array<i32>} : memref<1x1x1024xf32, #tpu.memory_space<vmem>>, vector<1x1x1024xf32>,
    return
  }
  func.func @transform_0(%arg0: i32) -> (i32, i32) {
    %c0_i32 = arith.constant 0 : i32
    %c0_i32_0 = arith.constant 0 : i32
    return %arg0, %c0_i32 : i32, i32
  }
  func.func @transform_1(%arg0: i32) -> (i32, i32) {
    %c0_i32 = arith.constant 0 : i32
    %c0_i32_0 = arith.constant 0 : i32
    return %arg0, %c0_i32 : i32, i32
  }
  func.func @transform_2(%arg0: i32) -> (i32, i32) {
    %c0_i32 = arith.constant 0 : i32
    %c0_i32_0 = arith.constant 0 : i32
    %c0_i32_1 = arith.constant 0 : i32
    return %c0_i32, %c0_i32_0 : i32, i32
  }
  func.func @transform_3(%arg0: i32) -> (i32, i32) {
    %c0_i32 = arith.constant 0 : i32
    %c0_i32_0 = arith.constant 0 : i32
    %c0_i32_1 = arith.constant 0 : i32
    return %c0_i32, %c0_i32_0 : i32, i32
  }
  func.func @transform_4(%arg0: i32) -> (i32, i32) {
    %c0_i32 = arith.constant 0 : i32
    %c0_i32_0 = arith.constant 0 : i32
    %c0_i32_1 = arith.constant 0 : i32
    return %c0_i32, %c0_i32_0 : i32, i32
  }
  func.func @transform_5(%arg0: i32) -> (i32, i32) {
    %c0_i32 = arith.constant 0 : i32
    %c0_i32_0 = arith.constant 0 : i32
    %c0_i32_1 = arith.constant 0 : i32
    return %c0_i32, %c0_i32_0 : i32, i32
  }
  func.func @transform_6(%arg0: i32) -> (i32, i32) {
    %c0_i32 = arith.constant 0 : i32
    %c0_i32_0 = arith.constant 0 : i32
    return %arg0, %c0_i32 : i32, i32
  }
  func.func @transform_7(%arg0: i32) -> (i32, i32, i32) {
    %c0_i32 = arith.constant 0 : i32
    %c0_i32_0 = arith.constant 0 : i32
    %c0_i32_1 = arith.constant 0 : i32
    return %arg0, %c0_i32, %c0_i32_0 : i32, i32, i32
  }
  func.func @transform_8(%arg0: i32) -> (i32, i32, i32) {
    %c0_i32 = arith.constant 0 : i32
    %c0_i32_0 = arith.constant 0 : i32
    %c0_i32_1 = arith.constant 0 : i32
    return %arg0, %c0_i32, %c0_i32_0 : i32, i32, i32
  }
}

module attributes {stable_mosaic.version = 11 : i64} {
  func.func @_affine_kernel(%arg0: i32, %arg1: memref<2x1024xbf16, #tpu.memory_space<vmem>>, %arg2: memref<1x1024xf32, #tpu.memory_space<vmem>>, %arg3: memref<1x1024xf32, #tpu.memory_space<vmem>>, %arg4: memref<2x1024xf32, #tpu.memory_space<vmem>>) attributes {dimension_semantics = [#tpu.dimension_semantics<parallel>], iteration_bounds = array<i64: 1>, scalar_prefetch = 0 : i64, scratch_operands = 0 : i64, tpu.core_type = #tpu.core_type<tc>, window_params = [{transform_indices = @transform_0, window_bounds = array<i64: 2, 1024>}, {pipeline_mode = #tpu.pipeline_mode<synchronous>, transform_indices = @transform_1, window_bounds = array<i64: 1, 1024>}, {pipeline_mode = #tpu.pipeline_mode<synchronous>, transform_indices = @transform_2, window_bounds = array<i64: 1, 1024>}, {transform_indices = @transform_3, window_bounds = array<i64: 2, 1024>}]} {
    %c0 = arith.constant 0 : index
    %c0_0 = arith.constant 0 : index
    %0 = vector.load %arg1[%c0, %c0_0] : memref<2x1024xbf16, #tpu.memory_space<vmem>>, vector<2x1024xbf16>
    %1 = arith.extf %0 : vector<2x1024xbf16> to vector<2x1024xf32>
    %c0_1 = arith.constant 0 : index
    %c0_2 = arith.constant 0 : index
    %2 = vector.load %arg2[%c0_1, %c0_2] : memref<1x1024xf32, #tpu.memory_space<vmem>>, vector<1x1024xf32>
    %3 = vector.broadcast %2 : vector<1x1024xf32> to vector<2x1024xf32>
    %4 = arith.mulf %1, %3 : vector<2x1024xf32>
    %c0_3 = arith.constant 0 : index
    %c0_4 = arith.constant 0 : index
    %5 = vector.load %arg3[%c0_3, %c0_4] : memref<1x1024xf32, #tpu.memory_space<vmem>>, vector<1x1024xf32>
    %6 = vector.broadcast %5 : vector<1x1024xf32> to vector<2x1024xf32>
    %7 = arith.addf %4, %6 : vector<2x1024xf32>
    %c0_5 = arith.constant 0 : index
    %c0_6 = arith.constant 0 : index
    %8 = vector.load %arg4[%c0_5, %c0_6] : memref<2x1024xf32, #tpu.memory_space<vmem>>, vector<2x1024xf32>
    tpu.vector_store %arg4[%c0_5, %c0_6], %7 {strides = array<i32>} : memref<2x1024xf32, #tpu.memory_space<vmem>>, vector<2x1024xf32>,
    return
  }
  func.func @transform_0(%arg0: i32) -> (i32, i32) {
    %c0_i32 = arith.constant 0 : i32
    %c0_i32_0 = arith.constant 0 : i32
    return %arg0, %c0_i32 : i32, i32
  }
  func.func @transform_1(%arg0: i32) -> (i32, i32) {
    %c0_i32 = arith.constant 0 : i32
    %c0_i32_0 = arith.constant 0 : i32
    %c0_i32_1 = arith.constant 0 : i32
    return %c0_i32, %c0_i32_0 : i32, i32
  }
  func.func @transform_2(%arg0: i32) -> (i32, i32) {
    %c0_i32 = arith.constant 0 : i32
    %c0_i32_0 = arith.constant 0 : i32
    %c0_i32_1 = arith.constant 0 : i32
    return %c0_i32, %c0_i32_0 : i32, i32
  }
  func.func @transform_3(%arg0: i32) -> (i32, i32) {
    %c0_i32 = arith.constant 0 : i32
    %c0_i32_0 = arith.constant 0 : i32
    return %arg0, %c0_i32 : i32, i32
  }
}

</mosaic_0001>

<llo_original>
// kernel: tile.38
$region0: #{tile.38}
  #allocation0 [shape = 's32[1]{0}', space=sflag, size = 0x4, scoped, tag = 'scoped memory for tile.38']
  %s0 = inlined_call_operand.vmem [shape: f32[4], index: 0, kind: input, shape index: {}]
  %s1 = inlined_call_operand.vmem [shape: f32[256,4], index: 1, kind: output, shape index: {}]
  // Predicated region
  $region2: #{tile.38} parent=0 // pred_check
    _
  $region3: #{tile.38} parent=0 // pred_check_branch
    %3 = sbr.rel (0) target = $region5
  $region4: #{tile.38} parent=0 // pred_region
    _
  $region5: #{tile.38} parent=0 // pred_fallthru
    _
  %v4 = vld [vmem:[%s0] ss:$0 sm:$0xff]
  %5 = vst [vmem:[%s1] sm:$0xff] %v4
  %s6 = scalar_lea.vmem %s1, 8
  %7 = vst [vmem:[%s6] sm:$0xff] %v4
  %s8 = scalar_lea.vmem %s1, 16
  %9 = vst [vmem:[%s8] sm:$0xff] %v4
  %s10 = scalar_lea.vmem %s1, 24
  %11 = vst [vmem:[%s10] sm:$0xff] %v4
  %s12 = scalar_lea.vmem %s1, 32
  %13 = vst [vmem:[%s12] sm:$0xff] %v4
  %s14 = scalar_lea.vmem %s1, 40
  %15 = vst [vmem:[%s14] sm:$0xff] %v4
  %s16 = scalar_lea.vmem %s1, 48
  %17 = vst [vmem:[%s16] sm:$0xff] %v4
  %s18 = scalar_lea.vmem %s1, 56
  %19 = vst [vmem:[%s18] sm:$0xff] %v4
  %s20 = scalar_lea.vmem %s1, 64
  %21 = vst [vmem:[%s20] sm:$0xff] %v4
  %s22 = scalar_lea.vmem %s1, 72
  %23 = vst [vmem:[%s22] sm:$0xff] %v4
  %s24 = scalar_lea.vmem %s1, 80
  %25 = vst [vmem:[%s24] sm:$0xff] %v4
  %s26 = scalar_lea.vmem %s1, 88
  %27 = vst [vmem:[%s26] sm:$0xff] %v4
  %s28 = scalar_lea.vmem %s1, 96
  %29 = vst [vmem:[%s28] sm:$0xff] %v4
  %s30 = scalar_lea.vmem %s1, 104
  %31 = vst [vmem:[%s30] sm:$0xff] %v4
  %s32 = scalar_lea.vmem %s1, 112
  %33 = vst [vmem:[%s32] sm:$0xff] %v4
  %s34 = scalar_lea.vmem %s1, 120
  %35 = vst [vmem:[%s34] sm:$0xff] %v4
  %s36 = scalar_lea.vmem %s1, 128
  %37 = vst [vmem:[%s36] sm:$0xff] %v4
  %s38 = scalar_lea.vmem %s1, 136
  %39 = vst [vmem:[%s38] sm:$0xff] %v4
  %s40 = scalar_lea.vmem %s1, 144
  %41 = vst [vmem:[%s40] sm:$0xff] %v4
  %s42 = scalar_lea.vmem %s1, 152
  %43 = vst [vmem:[%s42] sm:$0xff] %v4
  %s44 = scalar_lea.vmem %s1, 160
  %45 = vst [vmem:[%s44] sm:$0xff] %v4
  %s46 = scalar_lea.vmem %s1, 168
  %47 = vst [vmem:[%s46] sm:$0xff] %v4
  %s48 = scalar_lea.vmem %s1, 176
  %49 = vst [vmem:[%s48] sm:$0xff] %v4
  %s50 = scalar_lea.vmem %s1, 184
  %51 = vst [vmem:[%s50] sm:$0xff] %v4
  %s52 = scalar_lea.vmem %s1, 192
  %53 = vst [vmem:[%s52] sm:$0xff] %v4
  %s54 = scalar_lea.vmem %s1, 200
  %55 = vst [vmem:[%s54] sm:$0xff] %v4
  %s56 = scalar_lea.vmem %s1, 208
  %57 = vst [vmem:[%s56] sm:$0xff] %v4
  %s58 = scalar_lea.vmem %s1, 216
  %59 = vst [vmem:[%s58] sm:$0xff] %v4
  %s60 = scalar_lea.vmem %s1, 224
  %61 = vst [vmem:[%s60] sm:$0xff] %v4
  %s62 = scalar_lea.vmem %s1, 232
  %63 = vst [vmem:[%s62] sm:$0xff] %v4
  %s64 = scalar_lea.vmem %s1, 240
  %65 = vst [vmem:[%s64] sm:$0xff] %v4
  %s66 = scalar_lea.vmem %s1, 248
  %67 = vst [vmem:[%s66] sm:$0xff] %v4

// kernel: tile.39
$region0: #{tile.39}
  %s0 = inlined_call_operand.vmem [shape: f32[256,4], index: 0, kind: input, shape index: {}]
  %s1 = inlined_call_operand.vmem [shape: f32[1,1024], index: 1, kind: output, shape index: {}]
  $region1: #{tile.39} parent=0
    #allocation0 [shape = 'u8[32768]{0}', space=vmem, size = 0x8000, scoped, tag = 'scoped mem for output reshape']
    %v2 = vld [vmem:[%s0] sm:$0x1]
    %s3 = scalar_lea.vmem %s0, 31
    %v4 = vld [vmem:[%s3] sm:$0x2]
    %vm5 = vcmask 1041409
    %v6 = vsel %vm5, %v4, %v2
    %s7 = scalar_lea.vmem %s0, 62
    %v8 = vld [vmem:[%s7] sm:$0x4]
    %vm9 = vcmask 1042434
    %v10 = vsel %vm9, %v8, %v6
    %s11 = scalar_lea.vmem %s0, 93
    %v12 = vld [vmem:[%s11] sm:$0x8]
    %vm13 = vcmask 1043459
    %v14 = vsel %vm13, %v12, %v10
    %s15 = scalar_lea.vmem %s0, 124
    %v16 = vld [vmem:[%s15] sm:$0x10]
    %vm17 = vcmask 1044484
    %v18 = vsel %vm17, %v16, %v14
    %s19 = scalar_lea.vmem %s0, 155
    %v20 = vld [vmem:[%s19] sm:$0x20]
    %vm21 = vcmask 1045509
    %v22 = vsel %vm21, %v20, %v18
    %s23 = scalar_lea.vmem %s0, 186
    %v24 = vld [vmem:[%s23] sm:$0x40]
    %vm25 = vcmask 1046534
    %v26 = vsel %vm25, %v24, %v22
    %s27 = scalar_lea.vmem %s0, 217
    %v28 = vld [vmem:[%s27] sm:$0x80]
    %vm29 = vcmask 1047559
    %v30 = vsel %vm29, %v28, %v26
    %vm31 = vcmask 31744
    %32 = vst.msk [vmem:[#allocation0] ss:$8 sm:$0xf] %vm31, %v30
    %33 = vst.msk [vmem:[#allocation0] ss:$8 sm:$0xf0] %vm31, %v30
    %s34 = scalar_lea.vmem %s0, 31
    %v35 = vld [vmem:[%s34] sm:$0x1]
    %s36 = scalar_lea.vmem %s0, 62
    %v37 = vld [vmem:[%s36] sm:$0x2]
    %vm38 = vcmask 1041409
    %v39 = vsel %vm38, %v37, %v35
    %s40 = scalar_lea.vmem %s0, 93
    %v41 = vld [vmem:[%s40] sm:$0x4]
    %vm42 = vcmask 1042434
    %v43 = vsel %vm42, %v41, %v39
    %s44 = scalar_lea.vmem %s0, 124
    %v45 = vld [vmem:[%s44] sm:$0x8]
    %vm46 = vcmask 1043459
    %v47 = vsel %vm46, %v45, %v43
    %s48 = scalar_lea.vmem %s0, 155
    %v49 = vld [vmem:[%s48] sm:$0x10]
    %vm50 = vcmask 1044484
    %v51 = vsel %vm50, %v49, %v47
    %s52 = scalar_lea.vmem %s0, 186
    %v53 = vld [vmem:[%s52] sm:$0x20]
    %vm54 = vcmask 1045509
    %v55 = vsel %vm54, %v53, %v51
    %s56 = scalar_lea.vmem %s0, 217
    %v57 = vld [vmem:[%s56] sm:$0x40]
    %vm58 = vcmask 1046534
    %v59 = vsel %vm58, %v57, %v55
    %s60 = scalar_lea.vmem %s0, 248
    %v61 = vld [vmem:[%s60] sm:$0x80]
    %vm62 = vcmask 1047559
    %v63 = vsel %vm62, %v61, %v59
    %64 = vrot.lane.b32.xlu0 %v63, 124
    %v65 = vpop.permute.xlu0 %64
    %vm66 = vcmask 1048544
    %67 = vst.msk [vmem:[#allocation0] ss:$8 sm:$0xf] %vm66, %v65
    %68 = vst.msk [vmem:[#allocation0] ss:$8 sm:$0xf0] %vm66, %v65
    %s69 = scalar_lea.vmem %s0, 30
    %v70 = vld [vmem:[%s69] sm:$0x1]
    %s71 = scalar_lea.vmem %s0, 61
    %v72 = vld [vmem:[%s71] sm:$0x2]
    %vm73 = vcmask 1041409
    %v74 = vsel %vm73, %v72, %v70
    %s75 = scalar_lea.vmem %s0, 92
    %v76 = vld [vmem:[%s75] sm:$0x4]
    %vm77 = vcmask 1042434
    %v78 = vsel %vm77, %v76, %v74
    %s79 = scalar_lea.vmem %s0, 123
    %v80 = vld [vmem:[%s79] sm:$0x8]
    %vm81 = vcmask 1043459
    %v82 = vsel %vm81, %v80, %v78
    %s83 = scalar_lea.vmem %s0, 154
    %v84 = vld [vmem:[%s83] sm:$0x10]
    %vm85 = vcmask 1044484
    %v86 = vsel %vm85, %v84, %v82
    %s87 = scalar_lea.vmem %s0, 185
    %v88 = vld [vmem:[%s87] sm:$0x20]
    %vm89 = vcmask 1045509
    %v90 = vsel %vm89, %v88, %v86
    %s91 = scalar_lea.vmem %s0, 216
    %v92 = vld [vmem:[%s91] sm:$0x40]
    %vm93 = vcmask 1046534
    %v94 = vsel %vm93, %v92, %v90
    %s95 = scalar_lea.vmem %s0, 247
    %v96 = vld [vmem:[%s95] sm:$0x80]
    %vm97 = vcmask 1047559
    %v98 = vsel %vm97, %v96, %v94
    %99 = vrot.lane.b32.xlu0 %v98, 120
    %v100 = vpop.permute.xlu0 %99
    %vm101 = vcmask 1015744
    %102 = vst.msk [vmem:[#allocation0] ss:$8 sm:$0xf] %vm101, %v100
    %103 = vst.msk [vmem:[#allocation0] ss:$8 sm:$0xf0] %vm101, %v100
    %s104 = scalar_lea.vmem %s0, 29
    %v105 = vld [vmem:[%s104] sm:$0x1]
    %s106 = scalar_lea.vmem %s0, 60
    %v107 = vld [vmem:[%s106] sm:$0x2]
    %vm108 = vcmask 1041409
    %v109 = vsel %vm108, %v107, %v105
    %s110 = scalar_lea.vmem %s0, 91
    %v111 = vld [vmem:[%s110] sm:$0x4]
    %vm112 = vcmask 1042434
    %v113 = vsel %vm112, %v111, %v109
    %s114 = scalar_lea.vmem %s0, 122
    %v115 = vld [vmem:[%s114] sm:$0x8]
    %vm116 = vcmask 1043459
    %v117 = vsel %vm116, %v115, %v113
    %s118 = scalar_lea.vmem %s0, 153
    %v119 = vld [vmem:[%s118] sm:$0x10]
    %vm120 = vcmask 1044484
    %v121 = vsel %vm120, %v119, %v117
    %s122 = scalar_lea.vmem %s0, 184
    %v123 = vld [vmem:[%s122] sm:$0x20]
    %vm124 = vcmask 1045509
    %v125 = vsel %vm124, %v123, %v121
    %s126 = scalar_lea.vmem %s0, 215
    %v127 = vld [vmem:[%s126] sm:$0x40]
    %vm128 = vcmask 1046534
    %v129 = vsel %vm128, %v127, %v125
    %s130 = scalar_lea.vmem %s0, 246
    %v131 = vld [vmem:[%s130] sm:$0x80]
    %vm132 = vcmask 1047559
    %v133 = vsel %vm132, %v131, %v129
    %134 = vrot.lane.b32.xlu0 %v133, 116
    %v135 = vpop.permute.xlu0 %134
    %vm136 = vcmask 982944
    %137 = vst.msk [vmem:[#allocation0] ss:$8 sm:$0xf] %vm136, %v135
    %138 = vst.msk [vmem:[#allocation0] ss:$8 sm:$0xf0] %vm136, %v135
    %s139 = scalar_lea.vmem %s0, 28
    %v140 = vld [vmem:[%s139] sm:$0x1]
    %s141 = scalar_lea.vmem %s0, 59
    %v142 = vld [vmem:[%s141] sm:$0x2]
    %vm143 = vcmask 1041409
    %v144 = vsel %vm143, %v142, %v140
    %s145 = scalar_lea.vmem %s0, 90
    %v146 = vld [vmem:[%s145] sm:$0x4]
    %vm147 = vcmask 1042434
    %v148 = vsel %vm147, %v146, %v144
    %s149 = scalar_lea.vmem %s0, 121
    %v150 = vld [vmem:[%s149] sm:$0x8]
    %vm151 = vcmask 1043459
    %v152 = vsel %vm151, %v150, %v148
    %s153 = scalar_lea.vmem %s0, 152
    %v154 = vld [vmem:[%s153] sm:$0x10]
    %vm155 = vcmask 1044484
    %v156 = vsel %vm155, %v154, %v152
    %s157 = scalar_lea.vmem %s0, 183
    %v158 = vld [vmem:[%s157] sm:$0x20]
    %vm159 = vcmask 1045509
    %v160 = vsel %vm159, %v158, %v156
    %s161 = scalar_lea.vmem %s0, 214
    %v162 = vld [vmem:[%s161] sm:$0x40]
    %vm163 = vcmask 1046534
    %v164 = vsel %vm163, %v162, %v160
    %s165 = scalar_lea.vmem %s0, 245
    %v166 = vld [vmem:[%s165] sm:$0x80]
    %vm167 = vcmask 1047559
    %v168 = vsel %vm167, %v166, %v164
    %169 = vrot.lane.b32.xlu0 %v168, 112
    %v170 = vpop.permute.xlu0 %169
    %vm171 = vcmask 950144
    %172 = vst.msk [vmem:[#allocation0] ss:$8 sm:$0xf] %vm171, %v170
    %173 = vst.msk [vmem:[#allocation0] ss:$8 sm:$0xf0] %vm171, %v170
    %s174 = scalar_lea.vmem %s0, 27
    %v175 = vld [vmem:[%s174] sm:$0x1]
    %s176 = scalar_lea.vmem %s0, 58
    %v177 = vld [vmem:[%s176] sm:$0x2]
    %vm178 = vcmask 1041409
    %v179 = vsel %vm178, %v177, %v175
    %s180 = scalar_lea.vmem %s0, 89
    %v181 = vld [vmem:[%s180] sm:$0x4]
    %vm182 = vcmask 1042434
    %v183 = vsel %vm182, %v181, %v179
    %s184 = scalar_lea.vmem %s0, 120
    %v185 = vld [vmem:[%s184] sm:$0x8]
    %vm186 = vcmask 1043459
    %v187 = vsel %vm186, %v185, %v183
    %s188 = scalar_lea.vmem %s0, 151
    %v189 = vld [vmem:[%s188] sm:$0x10]
    %vm190 = vcmask 1044484
    %v191 = vsel %vm190, %v189, %v187
    %s192 = scalar_lea.vmem %s0, 182
    %v193 = vld [vmem:[%s192] sm:$0x20]
    %vm194 = vcmask 1045509
    %v195 = vsel %vm194, %v193, %v191
    %s196 = scalar_lea.vmem %s0, 213
    %v197 = vld [vmem:[%s196] sm:$0x40]
    %vm198 = vcmask 1046534
    %v199 = vsel %vm198, %v197, %v195
    %s200 = scalar_lea.vmem %s0, 244
    %v201 = vld [vmem:[%s200] sm:$0x80]
    %vm202 = vcmask 1047559
    %v203 = vsel %vm202, %v201, %v199
    %204 = vrot.lane.b32.xlu0 %v203, 108
    %v205 = vpop.permute.xlu0 %204
    %vm206 = vcmask 917344
    %207 = vst.msk [vmem:[#allocation0] ss:$8 sm:$0xf] %vm206, %v205
    %208 = vst.msk [vmem:[#allocation0] ss:$8 sm:$0xf0] %vm206, %v205
    %s209 = scalar_lea.vmem %s0, 26
    %v210 = vld [vmem:[%s209] sm:$0x1]
    %s211 = scalar_lea.vmem %s0, 57
    %v212 = vld [vmem:[%s211] sm:$0x2]
    %vm213 = vcmask 1041409
    %v214 = vsel %vm213, %v212, %v210
    %s215 = scalar_lea.vmem %s0, 88
    %v216 = vld [vmem:[%s215] sm:$0x4]
    %vm217 = vcmask 1042434
    %v218 = vsel %vm217, %v216, %v214
    %s219 = scalar_lea.vmem %s0, 119
    %v220 = vld [vmem:[%s219] sm:$0x8]
    %vm221 = vcmask 1043459
    %v222 = vsel %vm221, %v220, %v218
    %s223 = scalar_lea.vmem %s0, 150
    %v224 = vld [vmem:[%s223] sm:$0x10]
    %vm225 = vcmask 1044484
    %v226 = vsel %vm225, %v224, %v222
    %s227 = scalar_lea.vmem %s0, 181
    %v228 = vld [vmem:[%s227] sm:$0x20]
    %vm229 = vcmask 1045509
    %v230 = vsel %vm229, %v228, %v226
    %s231 = scalar_lea.vmem %s0, 212
    %v232 = vld [vmem:[%s231] sm:$0x40]
    %vm233 = vcmask 1046534
    %v234 = vsel %vm233, %v232, %v230
    %s235 = scalar_lea.vmem %s0, 243
    %v236 = vld [vmem:[%s235] sm:$0x80]
    %vm237 = vcmask 1047559
    %v238 = vsel %vm237, %v236, %v234
    %239 = vrot.lane.b32.xlu0 %v238, 104
    %v240 = vpop.permute.xlu0 %239
    %vm241 = vcmask 884544
    %242 = vst.msk [vmem:[#allocation0] ss:$8 sm:$0xf] %vm241, %v240
    %243 = vst.msk [vmem:[#allocation0] ss:$8 sm:$0xf0] %vm241, %v240
    %s244 = scalar_lea.vmem %s0, 25
    %v245 = vld [vmem:[%s244] sm:$0x1]
    %s246 = scalar_lea.vmem %s0, 56
    %v247 = vld [vmem:[%s246] sm:$0x2]
    %vm248 = vcmask 1041409
    %v249 = vsel %vm248, %v247, %v245
    %s250 = scalar_lea.vmem %s0, 87
    %v251 = vld [vmem:[%s250] sm:$0x4]
    %vm252 = vcmask 1042434
    %v253 = vsel %vm252, %v251, %v249
    %s254 = scalar_lea.vmem %s0, 118
    %v255 = vld [vmem:[%s254] sm:$0x8]
    %vm256 = vcmask 1043459
    %v257 = vsel %vm256, %v255, %v253
    %s258 = scalar_lea.vmem %s0, 149
    %v259 = vld [vmem:[%s258] sm:$0x10]
    %vm260 = vcmask 1044484
    %v261 = vsel %vm260, %v259, %v257
    %s262 = scalar_lea.vmem %s0, 180
    %v263 = vld [vmem:[%s262] sm:$0x20]
    %vm264 = vcmask 1045509
    %v265 = vsel %vm264, %v263, %v261
    %s266 = scalar_lea.vmem %s0, 211
    %v267 = vld [vmem:[%s266] sm:$0x40]
    %vm268 = vcmask 1046534
    %v269 = vsel %vm268, %v267, %v265
    %s270 = scalar_lea.vmem %s0, 242
    %v271 = vld [vmem:[%s270] sm:$0x80]
    %vm272 = vcmask 1047559
    %v273 = vsel %vm272, %v271, %v269
    %274 = vrot.lane.b32.xlu0 %v273, 100
    %v275 = vpop.permute.xlu0 %274
    %vm276 = vcmask 851744
    %277 = vst.msk [vmem:[#allocation0] ss:$8 sm:$0xf] %vm276, %v275
    %278 = vst.msk [vmem:[#allocation0] ss:$8 sm:$0xf0] %vm276, %v275
    %s279 = scalar_lea.vmem %s0, 24
    %v280 = vld [vmem:[%s279] sm:$0x1]
    %s281 = scalar_lea.vmem %s0, 55
    %v282 = vld [vmem:[%s281] sm:$0x2]
    %vm283 = vcmask 1041409
    %v284 = vsel %vm283, %v282, %v280
    %s285 = scalar_lea.vmem %s0, 86
    %v286 = vld [vmem:[%s285] sm:$0x4]
    %vm287 = vcmask 1042434
    %v288 = vsel %vm287, %v286, %v284
    %s289 = scalar_lea.vmem %s0, 117
    %v290 = vld [vmem:[%s289] sm:$0x8]
    %vm291 = vcmask 1043459
    %v292 = vsel %vm291, %v290, %v288
    %s293 = scalar_lea.vmem %s0, 148
    %v294 = vld [vmem:[%s293] sm:$0x10]
    %vm295 = vcmask 1044484
    %v296 = vsel %vm295, %v294, %v292
    %s297 = scalar_lea.vmem %s0, 179
    %v298 = vld [vmem:[%s297] sm:$0x20]
    %vm299 = vcmask 1045509
    %v300 = vsel %vm299, %v298, %v296
    %s301 = scalar_lea.vmem %s0, 210
    %v302 = vld [vmem:[%s301] sm:$0x40]
    %vm303 = vcmask 1046534
    %v304 = vsel %vm303, %v302, %v300
    %s305 = scalar_lea.vmem %s0, 241
    %v306 = vld [vmem:[%s305] sm:$0x80]
    %vm307 = vcmask 1047559
    %v308 = vsel %vm307, %v306, %v304
    %309 = vrot.lane.b32.xlu0 %v308, 96
    %v310 = vpop.permute.xlu0 %309
    %vm311 = vcmask 818944
    %312 = vst.msk [vmem:[#allocation0] ss:$8 sm:$0xf] %vm311, %v310
    %313 = vst.msk [vmem:[#allocation0] ss:$8 sm:$0xf0] %vm311, %v310
    %s314 = scalar_lea.vmem %s0, 23
    %v315 = vld [vmem:[%s314] sm:$0x1]
    %s316 = scalar_lea.vmem %s0, 54
    %v317 = vld [vmem:[%s316] sm:$0x2]
    %vm318 = vcmask 1041409
    %v319 = vsel %vm318, %v317, %v315
    %s320 = scalar_lea.vmem %s0, 85
    %v321 = vld [vmem:[%s320] sm:$0x4]
    %vm322 = vcmask 1042434
    %v323 = vsel %vm322, %v321, %v319
    %s324 = scalar_lea.vmem %s0, 116
    %v325 = vld [vmem:[%s324] sm:$0x8]
    %vm326 = vcmask 1043459
    %v327 = vsel %vm326, %v325, %v323
    %s328 = scalar_lea.vmem %s0, 147
    %v329 = vld [vmem:[%s328] sm:$0x10]
    %vm330 = vcmask 1044484
    %v331 = vsel %vm330, %v329, %v327
    %s332 = scalar_lea.vmem %s0, 178
    %v333 = vld [vmem:[%s332] sm:$0x20]
    %vm334 = vcmask 1045509
    %v335 = vsel %vm334, %v333, %v331
    %s336 = scalar_lea.vmem %s0, 209
    %v337 = vld [vmem:[%s336] sm:$0x40]
    %vm338 = vcmask 1046534
    %v339 = vsel %vm338, %v337, %v335
    %s340 = scalar_lea.vmem %s0, 240
    %v341 = vld [vmem:[%s340] sm:$0x80]
    %vm342 = vcmask 1047559
    %v343 = vsel %vm342, %v341, %v339
    %344 = vrot.lane.b32.xlu0 %v343, 92
    %v345 = vpop.permute.xlu0 %344
    %vm346 = vcmask 786144
    %347 = vst.msk [vmem:[#allocation0] ss:$8 sm:$0xf] %vm346, %v345
    %348 = vst.msk [vmem:[#allocation0] ss:$8 sm:$0xf0] %vm346, %v345
    %s349 = scalar_lea.vmem %s0, 22
    %v350 = vld [vmem:[%s349] sm:$0x1]
    %s351 = scalar_lea.vmem %s0, 53
    %v352 = vld [vmem:[%s351] sm:$0x2]
    %vm353 = vcmask 1041409
    %v354 = vsel %vm353, %v352, %v350
    %s355 = scalar_lea.vmem %s0, 84
    %v356 = vld [vmem:[%s355] sm:$0x4]
    %vm357 = vcmask 1042434
    %v358 = vsel %vm357, %v356, %v354
    %s359 = scalar_lea.vmem %s0, 115
    %v360 = vld [vmem:[%s359] sm:$0x8]
    %vm361 = vcmask 1043459
    %v362 = vsel %vm361, %v360, %v358
    %s363 = scalar_lea.vmem %s0, 146
    %v364 = vld [vmem:[%s363] sm:$0x10]
    %vm365 = vcmask 1044484
    %v366 = vsel %vm365, %v364, %v362
    %s367 = scalar_lea.vmem %s0, 177
    %v368 = vld [vmem:[%s367] sm:$0x20]
    %vm369 = vcmask 1045509
    %v370 = vsel %vm369, %v368, %v366
    %s371 = scalar_lea.vmem %s0, 208
    %v372 = vld [vmem:[%s371] sm:$0x40]
    %vm373 = vcmask 1046534
    %v374 = vsel %vm373, %v372, %v370
    %s375 = scalar_lea.vmem %s0, 239
    %v376 = vld [vmem:[%s375] sm:$0x80]
    %vm377 = vcmask 1047559
    %v378 = vsel %vm377, %v376, %v374
    %379 = vrot.lane.b32.xlu0 %v378, 88
    %v380 = vpop.permute.xlu0 %379
    %vm381 = vcmask 753344
    %382 = vst.msk [vmem:[#allocation0] ss:$8 sm:$0xf] %vm381, %v380
    %383 = vst.msk [vmem:[#allocation0] ss:$8 sm:$0xf0] %vm381, %v380
    %s384 = scalar_lea.vmem %s0, 21
    %v385 = vld [vmem:[%s384] sm:$0x1]
    %s386 = scalar_lea.vmem %s0, 52
    %v387 = vld [vmem:[%s386] sm:$0x2]
    %vm388 = vcmask 1041409
    %v389 = vsel %vm388, %v387, %v385
    %s390 = scalar_lea.vmem %s0, 83
    %v391 = vld [vmem:[%s390] sm:$0x4]
    %vm392 = vcmask 1042434
    %v393 = vsel %vm392, %v391, %v389
    %s394 = scalar_lea.vmem %s0, 114
    %v395 = vld [vmem:[%s394] sm:$0x8]
    %vm396 = vcmask 1043459
    %v397 = vsel %vm396, %v395, %v393
    %s398 = scalar_lea.vmem %s0, 145
    %v399 = vld [vmem:[%s398] sm:$0x10]
    %vm400 = vcmask 1044484
    %v401 = vsel %vm400, %v399, %v397
    %s402 = scalar_lea.vmem %s0, 176
    %v403 = vld [vmem:[%s402] sm:$0x20]
    %vm404 = vcmask 1045509
    %v405 = vsel %vm404, %v403, %v401
    %s406 = scalar_lea.vmem %s0, 207
    %v407 = vld [vmem:[%s406] sm:$0x40]
    %vm408 = vcmask 1046534
    %v409 = vsel %vm408, %v407, %v405
    %s410 = scalar_lea.vmem %s0, 238
    %v411 = vld [vmem:[%s410] sm:$0x80]
    %vm412 = vcmask 1047559
    %v413 = vsel %vm412, %v411, %v409
    %414 = vrot.lane.b32.xlu0 %v413, 84
    %v415 = vpop.permute.xlu0 %414
    %vm416 = vcmask 720544
    %417 = vst.msk [vmem:[#allocation0] ss:$8 sm:$0xf] %vm416, %v415
    %418 = vst.msk [vmem:[#allocation0] ss:$8 sm:$0xf0] %vm416, %v415
    %s419 = scalar_lea.vmem %s0, 20
    %v420 = vld [vmem:[%s419] sm:$0x1]
    %s421 = scalar_lea.vmem %s0, 51
    %v422 = vld [vmem:[%s421] sm:$0x2]
    %vm423 = vcmask 1041409
    %v424 = vsel %vm423, %v422, %v420
    %s425 = scalar_lea.vmem %s0, 82
    %v426 = vld [vmem:[%s425] sm:$0x4]
    %vm427 = vcmask 1042434
    %v428 = vsel %vm427, %v426, %v424
    %s429 = scalar_lea.vmem %s0, 113
    %v430 = vld [vmem:[%s429] sm:$0x8]
    %vm431 = vcmask 1043459
    %v432 = vsel %vm431, %v430, %v428
    %s433 = scalar_lea.vmem %s0, 144
    %v434 = vld [vmem:[%s433] sm:$0x10]
    %vm435 = vcmask 1044484
    %v436 = vsel %vm435, %v434, %v432
    %s437 = scalar_lea.vmem %s0, 175
    %v438 = vld [vmem:[%s437] sm:$0x20]
    %vm439 = vcmask 1045509
    %v440 = vsel %vm439, %v438, %v436
    %s441 = scalar_lea.vmem %s0, 206
    %v442 = vld [vmem:[%s441] sm:$0x40]
    %vm443 = vcmask 1046534
    %v444 = vsel %vm443, %v442, %v440
    %s445 = scalar_lea.vmem %s0, 237
    %v446 = vld [vmem:[%s445] sm:$0x80]
    %vm447 = vcmask 1047559
    %v448 = vsel %vm447, %v446, %v444
    %449 = vrot.lane.b32.xlu0 %v448, 80
    %v450 = vpop.permute.xlu0 %449
    %vm451 = vcmask 687744
    %452 = vst.msk [vmem:[#allocation0] ss:$8 sm:$0xf] %vm451, %v450
    %453 = vst.msk [vmem:[#allocation0] ss:$8 sm:$0xf0] %vm451, %v450
    %s454 = scalar_lea.vmem %s0, 19
    %v455 = vld [vmem:[%s454] sm:$0x1]
    %s456 = scalar_lea.vmem %s0, 50
    %v457 = vld [vmem:[%s456] sm:$0x2]
    %vm458 = vcmask 1041409
    %v459 = vsel %vm458, %v457, %v455
    %s460 = scalar_lea.vmem %s0, 81
    %v461 = vld [vmem:[%s460] sm:$0x4]
    %vm462 = vcmask 1042434
    %v463 = vsel %vm462, %v461, %v459
    %s464 = scalar_lea.vmem %s0, 112
    %v465 = vld [vmem:[%s464] sm:$0x8]
    %vm466 = vcmask 1043459
    %v467 = vsel %vm466, %v465, %v463
    %s468 = scalar_lea.vmem %s0, 143
    %v469 = vld [vmem:[%s468] sm:$0x10]
    %vm470 = vcmask 1044484
    %v471 = vsel %vm470, %v469, %v467
    %s472 = scalar_lea.vmem %s0, 174
    %v473 = vld [vmem:[%s472] sm:$0x20]
    %vm474 = vcmask 1045509
    %v475 = vsel %vm474, %v473, %v471
    %s476 = scalar_lea.vmem %s0, 205
    %v477 = vld [vmem:[%s476] sm:$0x40]
    %vm478 = vcmask 1046534
    %v479 = vsel %vm478, %v477, %v475
    %s480 = scalar_lea.vmem %s0, 236
    %v481 = vld [vmem:[%s480] sm:$0x80]
    %vm482 = vcmask 1047559
    %v483 = vsel %vm482, %v481, %v479
    %484 = vrot.lane.b32.xlu0 %v483, 76
    %v485 = vpop.permute.xlu0 %484
    %vm486 = vcmask 654944
    %487 = vst.msk [vmem:[#allocation0] ss:$8 sm:$0xf] %vm486, %v485
    %488 = vst.msk [vmem:[#allocation0] ss:$8 sm:$0xf0] %vm486, %v485
    %s489 = scalar_lea.vmem %s0, 18
    %v490 = vld [vmem:[%s489] sm:$0x1]
    %s491 = scalar_lea.vmem %s0, 49
    %v492 = vld [vmem:[%s491] sm:$0x2]
    %vm493 = vcmask 1041409
    %v494 = vsel %vm493, %v492, %v490
    %s495 = scalar_lea.vmem %s0, 80
    %v496 = vld [vmem:[%s495] sm:$0x4]
    %vm497 = vcmask 1042434
    %v498 = vsel %vm497, %v496, %v494
    %s499 = scalar_lea.vmem %s0, 111
    %v500 = vld [vmem:[%s499] sm:$0x8]
    %vm501 = vcmask 1043459
    %v502 = vsel %vm501, %v500, %v498
    %s503 = scalar_lea.vmem %s0, 142
    %v504 = vld [vmem:[%s503] sm:$0x10]
    %vm505 = vcmask 1044484
    %v506 = vsel %vm505, %v504, %v502
    %s507 = scalar_lea.vmem %s0, 173
    %v508 = vld [vmem:[%s507] sm:$0x20]
    %vm509 = vcmask 1045509
    %v510 = vsel %vm509, %v508, %v506
    %s511 = scalar_lea.vmem %s0, 204
    %v512 = vld [vmem:[%s511] sm:$0x40]
    %vm513 = vcmask 1046534
    %v514 = vsel %vm513, %v512, %v510
    %s515 = scalar_lea.vmem %s0, 235
    %v516 = vld [vmem:[%s515] sm:$0x80]
    %vm517 = vcmask 1047559
    %v518 = vsel %vm517, %v516, %v514
    %519 = vrot.lane.b32.xlu0 %v518, 72
    %v520 = vpop.permute.xlu0 %519
    %vm521 = vcmask 622144
    %522 = vst.msk [vmem:[#allocation0] ss:$8 sm:$0xf] %vm521, %v520
    %523 = vst.msk [vmem:[#allocation0] ss:$8 sm:$0xf0] %vm521, %v520
    %s524 = scalar_lea.vmem %s0, 17
    %v525 = vld [vmem:[%s524] sm:$0x1]
    %s526 = scalar_lea.vmem %s0, 48
    %v527 = vld [vmem:[%s526] sm:$0x2]
    %vm528 = vcmask 1041409
    %v529 = vsel %vm528, %v527, %v525
    %s530 = scalar_lea.vmem %s0, 79
    %v531 = vld [vmem:[%s530] sm:$0x4]
    %vm532 = vcmask 1042434
    %v533 = vsel %vm532, %v531, %v529
    %s534 = scalar_lea.vmem %s0, 110
    %v535 = vld [vmem:[%s534] sm:$0x8]
    %vm536 = vcmask 1043459
    %v537 = vsel %vm536, %v535, %v533
    %s538 = scalar_lea.vmem %s0, 141
    %v539 = vld [vmem:[%s538] sm:$0x10]
    %vm540 = vcmask 1044484
    %v541 = vsel %vm540, %v539, %v537
    %s542 = scalar_lea.vmem %s0, 172
    %v543 = vld [vmem:[%s542] sm:$0x20]
    %vm544 = vcmask 1045509
    %v545 = vsel %vm544, %v543, %v541
    %s546 = scalar_lea.vmem %s0, 203
    %v547 = vld [vmem:[%s546] sm:$0x40]
    %vm548 = vcmask 1046534
    %v549 = vsel %vm548, %v547, %v545
    %s550 = scalar_lea.vmem %s0, 234
    %v551 = vld [vmem:[%s550] sm:$0x80]
    %vm552 = vcmask 1047559
    %v553 = vsel %vm552, %v551, %v549
    %554 = vrot.lane.b32.xlu0 %v553, 68
    %v555 = vpop.permute.xlu0 %554
    %vm556 = vcmask 589344
    %557 = vst.msk [vmem:[#allocation0] ss:$8 sm:$0xf] %vm556, %v555
    %558 = vst.msk [vmem:[#allocation0] ss:$8 sm:$0xf0] %vm556, %v555
    %s559 = scalar_lea.vmem %s0, 16
    %v560 = vld [vmem:[%s559] sm:$0x1]
    %s561 = scalar_lea.vmem %s0, 47
    %v562 = vld [vmem:[%s561] sm:$0x2]
    %vm563 = vcmask 1041409
    %v564 = vsel %vm563, %v562, %v560
    %s565 = scalar_lea.vmem %s0, 78
    %v566 = vld [vmem:[%s565] sm:$0x4]
    %vm567 = vcmask 1042434
    %v568 = vsel %vm567, %v566, %v564
    %s569 = scalar_lea.vmem %s0, 109
    %v570 = vld [vmem:[%s569] sm:$0x8]
    %vm571 = vcmask 1043459
    %v572 = vsel %vm571, %v570, %v568
    %s573 = scalar_lea.vmem %s0, 140
    %v574 = vld [vmem:[%s573] sm:$0x10]
    %vm575 = vcmask 1044484
    %v576 = vsel %vm575, %v574, %v572
    %s577 = scalar_lea.vmem %s0, 171
    %v578 = vld [vmem:[%s577] sm:$0x20]
    %vm579 = vcmask 1045509
    %v580 = vsel %vm579, %v578, %v576
    %s581 = scalar_lea.vmem %s0, 202
    %v582 = vld [vmem:[%s581] sm:$0x40]
    %vm583 = vcmask 1046534
    %v584 = vsel %vm583, %v582, %v580
    %s585 = scalar_lea.vmem %s0, 233
    %v586 = vld [vmem:[%s585] sm:$0x80]
    %vm587 = vcmask 1047559
    %v588 = vsel %vm587, %v586, %v584
    %589 = vrot.lane.b32.xlu0 %v588, 64
    %v590 = vpop.permute.xlu0 %589
    %vm591 = vcmask 556544
    %592 = vst.msk [vmem:[#allocation0] ss:$8 sm:$0xf] %vm591, %v590
    %593 = vst.msk [vmem:[#allocation0] ss:$8 sm:$0xf0] %vm591, %v590
    %s594 = scalar_lea.vmem %s0, 15
    %v595 = vld [vmem:[%s594] sm:$0x1]
    %s596 = scalar_lea.vmem %s0, 46
    %v597 = vld [vmem:[%s596] sm:$0x2]
    %vm598 = vcmask 1041409
    %v599 = vsel %vm598, %v597, %v595
    %s600 = scalar_lea.vmem %s0, 77
    %v601 = vld [vmem:[%s600] sm:$0x4]
    %vm602 = vcmask 1042434
    %v603 = vsel %vm602, %v601, %v599
    %s604 = scalar_lea.vmem %s0, 108
    %v605 = vld [vmem:[%s604] sm:$0x8]
    %vm606 = vcmask 1043459
    %v607 = vsel %vm606, %v605, %v603
    %s608 = scalar_lea.vmem %s0, 139
    %v609 = vld [vmem:[%s608] sm:$0x10]
    %vm610 = vcmask 1044484
    %v611 = vsel %vm610, %v609, %v607
    %s612 = scalar_lea.vmem %s0, 170
    %v613 = vld [vmem:[%s612] sm:$0x20]
    %vm614 = vcmask 1045509
    %v615 = vsel %vm614, %v613, %v611
    %s616 = scalar_lea.vmem %s0, 201
    %v617 = vld [vmem:[%s616] sm:$0x40]
    %vm618 = vcmask 1046534
    %v619 = vsel %vm618, %v617, %v615
    %s620 = scalar_lea.vmem %s0, 232
    %v621 = vld [vmem:[%s620] sm:$0x80]
    %vm622 = vcmask 1047559
    %v623 = vsel %vm622, %v621, %v619
    %624 = vrot.lane.b32.xlu0 %v623, 60
    %v625 = vpop.permute.xlu0 %624
    %vm626 = vcmask 523744
    %627 = vst.msk [vmem:[#allocation0] ss:$8 sm:$0xf] %vm626, %v625
    %628 = vst.msk [vmem:[#allocation0] ss:$8 sm:$0xf0] %vm626, %v625
    %s629 = scalar_lea.vmem %s0, 14
    %v630 = vld [vmem:[%s629] sm:$0x1]
    %s631 = scalar_lea.vmem %s0, 45
    %v632 = vld [vmem:[%s631] sm:$0x2]
    %vm633 = vcmask 1041409
    %v634 = vsel %vm633, %v632, %v630
    %s635 = scalar_lea.vmem %s0, 76
    %v636 = vld [vmem:[%s635] sm:$0x4]
    %vm637 = vcmask 1042434
    %v638 = vsel %vm637, %v636, %v634
    %s639 = scalar_lea.vmem %s0, 107
    %v640 = vld [vmem:[%s639] sm:$0x8]
    %vm641 = vcmask 1043459
    %v642 = vsel %vm641, %v640, %v638
    %s643 = scalar_lea.vmem %s0, 138
    %v644 = vld [vmem:[%s643] sm:$0x10]
    %vm645 = vcmask 1044484
    %v646 = vsel %vm645, %v644, %v642
    %s647 = scalar_lea.vmem %s0, 169
    %v648 = vld [vmem:[%s647] sm:$0x20]
    %vm649 = vcmask 1045509
    %v650 = vsel %vm649, %v648, %v646
    %s651 = scalar_lea.vmem %s0, 200
    %v652 = vld [vmem:[%s651] sm:$0x40]
    %vm653 = vcmask 1046534
    %v654 = vsel %vm653, %v652, %v650
    %s655 = scalar_lea.vmem %s0, 231
    %v656 = vld [vmem:[%s655] sm:$0x80]
    %vm657 = vcmask 1047559
    %v658 = vsel %vm657, %v656, %v654
    %659 = vrot.lane.b32.xlu0 %v658, 56
    %v660 = vpop.permute.xlu0 %659
    %vm661 = vcmask 490944
    %662 = vst.msk [vmem:[#allocation0] ss:$8 sm:$0xf] %vm661, %v660
    %663 = vst.msk [vmem:[#allocation0] ss:$8 sm:$0xf0] %vm661, %v660
    %s664 = scalar_lea.vmem %s0, 13
    %v665 = vld [vmem:[%s664] sm:$0x1]
    %s666 = scalar_lea.vmem %s0, 44
    %v667 = vld [vmem:[%s666] sm:$0x2]
    %vm668 = vcmask 1041409
    %v669 = vsel %vm668, %v667, %v665
    %s670 = scalar_lea.vmem %s0, 75
    %v671 = vld [vmem:[%s670] sm:$0x4]
    %vm672 = vcmask 1042434
    %v673 = vsel %vm672, %v671, %v669
    %s674 = scalar_lea.vmem %s0, 106
    %v675 = vld [vmem:[%s674] sm:$0x8]
    %vm676 = vcmask 1043459
    %v677 = vsel %vm676, %v675, %v673
    %s678 = scalar_lea.vmem %s0, 137
    %v679 = vld [vmem:[%s678] sm:$0x10]
    %vm680 = vcmask 1044484
    %v681 = vsel %vm680, %v679, %v677
    %s682 = scalar_lea.vmem %s0, 168
    %v683 = vld [vmem:[%s682] sm:$0x20]
    %vm684 = vcmask 1045509
    %v685 = vsel %vm684, %v683, %v681
    %s686 = scalar_lea.vmem %s0, 199
    %v687 = vld [vmem:[%s686] sm:$0x40]
    %vm688 = vcmask 1046534
    %v689 = vsel %vm688, %v687, %v685
    %s690 = scalar_lea.vmem %s0, 230
    %v691 = vld [vmem:[%s690] sm:$0x80]
    %vm692 = vcmask 1047559
    %v693 = vsel %vm692, %v691, %v689
    %694 = vrot.lane.b32.xlu0 %v693, 52
    %v695 = vpop.permute.xlu0 %694
    %vm696 = vcmask 458144
    %697 = vst.msk [vmem:[#allocation0] ss:$8 sm:$0xf] %vm696, %v695
    %698 = vst.msk [vmem:[#allocation0] ss:$8 sm:$0xf0] %vm696, %v695
    %s699 = scalar_lea.vmem %s0, 12
    %v700 = vld [vmem:[%s699] sm:$0x1]
    %s701 = scalar_lea.vmem %s0, 43
    %v702 = vld [vmem:[%s701] sm:$0x2]
    %vm703 = vcmask 1041409
    %v704 = vsel %vm703, %v702, %v700
    %s705 = scalar_lea.vmem %s0, 74
    %v706 = vld [vmem:[%s705] sm:$0x4]
    %vm707 = vcmask 1042434
    %v708 = vsel %vm707, %v706, %v704
    %s709 = scalar_lea.vmem %s0, 105
    %v710 = vld [vmem:[%s709] sm:$0x8]
    %vm711 = vcmask 1043459
    %v712 = vsel %vm711, %v710, %v708
    %s713 = scalar_lea.vmem %s0, 136
    %v714 = vld [vmem:[%s713] sm:$0x10]
    %vm715 = vcmask 1044484
    %v716 = vsel %vm715, %v714, %v712
    %s717 = scalar_lea.vmem %s0, 167
    %v718 = vld [vmem:[%s717] sm:$0x20]
    %vm719 = vcmask 1045509
    %v720 = vsel %vm719, %v718, %v716
    %s721 = scalar_lea.vmem %s0, 198
    %v722 = vld [vmem:[%s721] sm:$0x40]
    %vm723 = vcmask 1046534
    %v724 = vsel %vm723, %v722, %v720
    %s725 = scalar_lea.vmem %s0, 229
    %v726 = vld [vmem:[%s725] sm:$0x80]
    %vm727 = vcmask 1047559
    %v728 = vsel %vm727, %v726, %v724
    %729 = vrot.lane.b32.xlu0 %v728, 48
    %v730 = vpop.permute.xlu0 %729
    %vm731 = vcmask 425344
    %732 = vst.msk [vmem:[#allocation0] ss:$8 sm:$0xf] %vm731, %v730
    %733 = vst.msk [vmem:[#allocation0] ss:$8 sm:$0xf0] %vm731, %v730
    %s734 = scalar_lea.vmem %s0, 11
    %v735 = vld [vmem:[%s734] sm:$0x1]
    %s736 = scalar_lea.vmem %s0, 42
    %v737 = vld [vmem:[%s736] sm:$0x2]
    %vm738 = vcmask 1041409
    %v739 = vsel %vm738, %v737, %v735
    %s740 = scalar_lea.vmem %s0, 73
    %v741 = vld [vmem:[%s740] sm:$0x4]
    %vm742 = vcmask 1042434
    %v743 = vsel %vm742, %v741, %v739
    %s744 = scalar_lea.vmem %s0, 104
    %v745 = vld [vmem:[%s744] sm:$0x8]
    %vm746 = vcmask 1043459
    %v747 = vsel %vm746, %v745, %v743
    %s748 = scalar_lea.vmem %s0, 135
    %v749 = vld [vmem:[%s748] sm:$0x10]
    %vm750 = vcmask 1044484
    %v751 = vsel %vm750, %v749, %v747
    %s752 = scalar_lea.vmem %s0, 166
    %v753 = vld [vmem:[%s752] sm:$0x20]
    %vm754 = vcmask 1045509
    %v755 = vsel %vm754, %v753, %v751
    %s756 = scalar_lea.vmem %s0, 197
    %v757 = vld [vmem:[%s756] sm:$0x40]
    %vm758 = vcmask 1046534
    %v759 = vsel %vm758, %v757, %v755
    %s760 = scalar_lea.vmem %s0, 228
    %v761 = vld [vmem:[%s760] sm:$0x80]
    %vm762 = vcmask 1047559
    %v763 = vsel %vm762, %v761, %v759
    %764 = vrot.lane.b32.xlu0 %v763, 44
    %v765 = vpop.permute.xlu0 %764
    %vm766 = vcmask 392544
    %767 = vst.msk [vmem:[#allocation0] ss:$8 sm:$0xf] %vm766, %v765
    %768 = vst.msk [vmem:[#allocation0] ss:$8 sm:$0xf0] %vm766, %v765
    %s769 = scalar_lea.vmem %s0, 10
    %v770 = vld [vmem:[%s769] sm:$0x1]
    %s771 = scalar_lea.vmem %s0, 41
    %v772 = vld [vmem:[%s771] sm:$0x2]
    %vm773 = vcmask 1041409
    %v774 = vsel %vm773, %v772, %v770
    %s775 = scalar_lea.vmem %s0, 72
    %v776 = vld [vmem:[%s775] sm:$0x4]
    %vm777 = vcmask 1042434
    %v778 = vsel %vm777, %v776, %v774
    %s779 = scalar_lea.vmem %s0, 103
    %v780 = vld [vmem:[%s779] sm:$0x8]
    %vm781 = vcmask 1043459
    %v782 = vsel %vm781, %v780, %v778
    %s783 = scalar_lea.vmem %s0, 134
    %v784 = vld [vmem:[%s783] sm:$0x10]
    %vm785 = vcmask 1044484
    %v786 = vsel %vm785, %v784, %v782
    %s787 = scalar_lea.vmem %s0, 165
    %v788 = vld [vmem:[%s787] sm:$0x20]
    %vm789 = vcmask 1045509
    %v790 = vsel %vm789, %v788, %v786
    %s791 = scalar_lea.vmem %s0, 196
    %v792 = vld [vmem:[%s791] sm:$0x40]
    %vm793 = vcmask 1046534
    %v794 = vsel %vm793, %v792, %v790
    %s795 = scalar_lea.vmem %s0, 227
    %v796 = vld [vmem:[%s795] sm:$0x80]
    %vm797 = vcmask 1047559
    %v798 = vsel %vm797, %v796, %v794
    %799 = vrot.lane.b32.xlu0 %v798, 40
    %v800 = vpop.permute.xlu0 %799
    %vm801 = vcmask 359744
    %802 = vst.msk [vmem:[#allocation0] ss:$8 sm:$0xf] %vm801, %v800
    %803 = vst.msk [vmem:[#allocation0] ss:$8 sm:$0xf0] %vm801, %v800
    %s804 = scalar_lea.vmem %s0, 9
    %v805 = vld [vmem:[%s804] sm:$0x1]
    %s806 = scalar_lea.vmem %s0, 40
    %v807 = vld [vmem:[%s806] sm:$0x2]
    %vm808 = vcmask 1041409
    %v809 = vsel %vm808, %v807, %v805
    %s810 = scalar_lea.vmem %s0, 71
    %v811 = vld [vmem:[%s810] sm:$0x4]
    %vm812 = vcmask 1042434
    %v813 = vsel %vm812, %v811, %v809
    %s814 = scalar_lea.vmem %s0, 102
    %v815 = vld [vmem:[%s814] sm:$0x8]
    %vm816 = vcmask 1043459
    %v817 = vsel %vm816, %v815, %v813
    %s818 = scalar_lea.vmem %s0, 133
    %v819 = vld [vmem:[%s818] sm:$0x10]
    %vm820 = vcmask 1044484
    %v821 = vsel %vm820, %v819, %v817
    %s822 = scalar_lea.vmem %s0, 164
    %v823 = vld [vmem:[%s822] sm:$0x20]
    %vm824 = vcmask 1045509
    %v825 = vsel %vm824, %v823, %v821
    %s826 = scalar_lea.vmem %s0, 195
    %v827 = vld [vmem:[%s826] sm:$0x40]
    %vm828 = vcmask 1046534
    %v829 = vsel %vm828, %v827, %v825
    %s830 = scalar_lea.vmem %s0, 226
    %v831 = vld [vmem:[%s830] sm:$0x80]
    %vm832 = vcmask 1047559
    %v833 = vsel %vm832, %v831, %v829
    %834 = vrot.lane.b32.xlu0 %v833, 36
    %v835 = vpop.permute.xlu0 %834
    %vm836 = vcmask 326944
    %837 = vst.msk [vmem:[#allocation0] ss:$8 sm:$0xf] %vm836, %v835
    %838 = vst.msk [vmem:[#allocation0] ss:$8 sm:$0xf0] %vm836, %v835
    %s839 = scalar_lea.vmem %s0, 8
    %v840 = vld [vmem:[%s839] sm:$0x1]
    %s841 = scalar_lea.vmem %s0, 39
    %v842 = vld [vmem:[%s841] sm:$0x2]
    %vm843 = vcmask 1041409
    %v844 = vsel %vm843, %v842, %v840
    %s845 = scalar_lea.vmem %s0, 70
    %v846 = vld [vmem:[%s845] sm:$0x4]
    %vm847 = vcmask 1042434
    %v848 = vsel %vm847, %v846, %v844
    %s849 = scalar_lea.vmem %s0, 101
    %v850 = vld [vmem:[%s849] sm:$0x8]
    %vm851 = vcmask 1043459
    %v852 = vsel %vm851, %v850, %v848
    %s853 = scalar_lea.vmem %s0, 132
    %v854 = vld [vmem:[%s853] sm:$0x10]
    %vm855 = vcmask 1044484
    %v856 = vsel %vm855, %v854, %v852
    %s857 = scalar_lea.vmem %s0, 163
    %v858 = vld [vmem:[%s857] sm:$0x20]
    %vm859 = vcmask 1045509
    %v860 = vsel %vm859, %v858, %v856
    %s861 = scalar_lea.vmem %s0, 194
    %v862 = vld [vmem:[%s861] sm:$0x40]
    %vm863 = vcmask 1046534
    %v864 = vsel %vm863, %v862, %v860
    %s865 = scalar_lea.vmem %s0, 225
    %v866 = vld [vmem:[%s865] sm:$0x80]
    %vm867 = vcmask 1047559
    %v868 = vsel %vm867, %v866, %v864
    %869 = vrot.lane.b32.xlu0 %v868, 32
    %v870 = vpop.permute.xlu0 %869
    %vm871 = vcmask 294144
    %872 = vst.msk [vmem:[#allocation0] ss:$8 sm:$0xf] %vm871, %v870
    %873 = vst.msk [vmem:[#allocation0] ss:$8 sm:$0xf0] %vm871, %v870
    %s874 = scalar_lea.vmem %s0, 7
    %v875 = vld [vmem:[%s874] sm:$0x1]
    %s876 = scalar_lea.vmem %s0, 38
    %v877 = vld [vmem:[%s876] sm:$0x2]
    %vm878 = vcmask 1041409
    %v879 = vsel %vm878, %v877, %v875
    %s880 = scalar_lea.vmem %s0, 69
    %v881 = vld [vmem:[%s880] sm:$0x4]
    %vm882 = vcmask 1042434
    %v883 = vsel %vm882, %v881, %v879
    %s884 = scalar_lea.vmem %s0, 100
    %v885 = vld [vmem:[%s884] sm:$0x8]
    %vm886 = vcmask 1043459
    %v887 = vsel %vm886, %v885, %v883
    %s888 = scalar_lea.vmem %s0, 131
    %v889 = vld [vmem:[%s888] sm:$0x10]
    %vm890 = vcmask 1044484
    %v891 = vsel %vm890, %v889, %v887
    %s892 = scalar_lea.vmem %s0, 162
    %v893 = vld [vmem:[%s892] sm:$0x20]
    %vm894 = vcmask 1045509
    %v895 = vsel %vm894, %v893, %v891
    %s896 = scalar_lea.vmem %s0, 193
    %v897 = vld [vmem:[%s896] sm:$0x40]
    %vm898 = vcmask 1046534
    %v899 = vsel %vm898, %v897, %v895
    %s900 = scalar_lea.vmem %s0, 224
    %v901 = vld [vmem:[%s900] sm:$0x80]
    %vm902 = vcmask 1047559
    %v903 = vsel %vm902, %v901, %v899
    %904 = vrot.lane.b32.xlu0 %v903, 28
    %v905 = vpop.permute.xlu0 %904
    %vm906 = vcmask 261344
    %907 = vst.msk [vmem:[#allocation0] ss:$8 sm:$0xf] %vm906, %v905
    %908 = vst.msk [vmem:[#allocation0] ss:$8 sm:$0xf0] %vm906, %v905
    %s909 = scalar_lea.vmem %s0, 6
    %v910 = vld [vmem:[%s909] sm:$0x1]
    %s911 = scalar_lea.vmem %s0, 37
    %v912 = vld [vmem:[%s911] sm:$0x2]
    %vm913 = vcmask 1041409
    %v914 = vsel %vm913, %v912, %v910
    %s915 = scalar_lea.vmem %s0, 68
    %v916 = vld [vmem:[%s915] sm:$0x4]
    %vm917 = vcmask 1042434
    %v918 = vsel %vm917, %v916, %v914
    %s919 = scalar_lea.vmem %s0, 99
    %v920 = vld [vmem:[%s919] sm:$0x8]
    %vm921 = vcmask 1043459
    %v922 = vsel %vm921, %v920, %v918
    %s923 = scalar_lea.vmem %s0, 130
    %v924 = vld [vmem:[%s923] sm:$0x10]
    %vm925 = vcmask 1044484
    %v926 = vsel %vm925, %v924, %v922
    %s927 = scalar_lea.vmem %s0, 161
    %v928 = vld [vmem:[%s927] sm:$0x20]
    %vm929 = vcmask 1045509
    %v930 = vsel %vm929, %v928, %v926
    %s931 = scalar_lea.vmem %s0, 192
    %v932 = vld [vmem:[%s931] sm:$0x40]
    %vm933 = vcmask 1046534
    %v934 = vsel %vm933, %v932, %v930
    %s935 = scalar_lea.vmem %s0, 223
    %v936 = vld [vmem:[%s935] sm:$0x80]
    %vm937 = vcmask 1047559
    %v938 = vsel %vm937, %v936, %v934
    %939 = vrot.lane.b32.xlu0 %v938, 24
    %v940 = vpop.permute.xlu0 %939
    %vm941 = vcmask 228544
    %942 = vst.msk [vmem:[#allocation0] ss:$8 sm:$0xf] %vm941, %v940
    %943 = vst.msk [vmem:[#allocation0] ss:$8 sm:$0xf0] %vm941, %v940
    %s944 = scalar_lea.vmem %s0, 5
    %v945 = vld [vmem:[%s944] sm:$0x1]
    %s946 = scalar_lea.vmem %s0, 36
    %v947 = vld [vmem:[%s946] sm:$0x2]
    %vm948 = vcmask 1041409
    %v949 = vsel %vm948, %v947, %v945
    %s950 = scalar_lea.vmem %s0, 67
    %v951 = vld [vmem:[%s950] sm:$0x4]
    %vm952 = vcmask 1042434
    %v953 = vsel %vm952, %v951, %v949
    %s954 = scalar_lea.vmem %s0, 98
    %v955 = vld [vmem:[%s954] sm:$0x8]
    %vm956 = vcmask 1043459
    %v957 = vsel %vm956, %v955, %v953
    %s958 = scalar_lea.vmem %s0, 129
    %v959 = vld [vmem:[%s958] sm:$0x10]
    %vm960 = vcmask 1044484
    %v961 = vsel %vm960, %v959, %v957
    %s962 = scalar_lea.vmem %s0, 160
    %v963 = vld [vmem:[%s962] sm:$0x20]
    %vm964 = vcmask 1045509
    %v965 = vsel %vm964, %v963, %v961
    %s966 = scalar_lea.vmem %s0, 191
    %v967 = vld [vmem:[%s966] sm:$0x40]
    %vm968 = vcmask 1046534
    %v969 = vsel %vm968, %v967, %v965
    %s970 = scalar_lea.vmem %s0, 222
    %v971 = vld [vmem:[%s970] sm:$0x80]
    %vm972 = vcmask 1047559
    %v973 = vsel %vm972, %v971, %v969
    %974 = vrot.lane.b32.xlu0 %v973, 20
    %v975 = vpop.permute.xlu0 %974
    %vm976 = vcmask 195744
    %977 = vst.msk [vmem:[#allocation0] ss:$8 sm:$0xf] %vm976, %v975
    %978 = vst.msk [vmem:[#allocation0] ss:$8 sm:$0xf0] %vm976, %v975
    %s979 = scalar_lea.vmem %s0, 4
    %v980 = vld [vmem:[%s979] sm:$0x1]
    %s981 = scalar_lea.vmem %s0, 35
    %v982 = vld [vmem:[%s981] sm:$0x2]
    %vm983 = vcmask 1041409
    %v984 = vsel %vm983, %v982, %v980
    %s985 = scalar_lea.vmem %s0, 66
    %v986 = vld [vmem:[%s985] sm:$0x4]
    %vm987 = vcmask 1042434
    %v988 = vsel %vm987, %v986, %v984
    %s989 = scalar_lea.vmem %s0, 97
    %v990 = vld [vmem:[%s989] sm:$0x8]
    %vm991 = vcmask 1043459
    %v992 = vsel %vm991, %v990, %v988
    %s993 = scalar_lea.vmem %s0, 128
    %v994 = vld [vmem:[%s993] sm:$0x10]
    %vm995 = vcmask 1044484
    %v996 = vsel %vm995, %v994, %v992
    %s997 = scalar_lea.vmem %s0, 159
    %v998 = vld [vmem:[%s997] sm:$0x20]
    %vm999 = vcmask 1045509
    %v1000 = vsel %vm999, %v998, %v996
    %s1001 = scalar_lea.vmem %s0, 190
    %v1002 = vld [vmem:[%s1001] sm:$0x40]
    %vm1003 = vcmask 1046534
    %v1004 = vsel %vm1003, %v1002, %v1000
    %s1005 = scalar_lea.vmem %s0, 221
    %v1006 = vld [vmem:[%s1005] sm:$0x80]
    %vm1007 = vcmask 1047559
    %v1008 = vsel %vm1007, %v1006, %v1004
    %1009 = vrot.lane.b32.xlu0 %v1008, 16
    %v1010 = vpop.permute.xlu0 %1009
    %vm1011 = vcmask 162944
    %1012 = vst.msk [vmem:[#allocation0] ss:$8 sm:$0xf] %vm1011, %v1010
    %1013 = vst.msk [vmem:[#allocation0] ss:$8 sm:$0xf0] %vm1011, %v1010
    %s1014 = scalar_lea.vmem %s0, 3
    %v1015 = vld [vmem:[%s1014] sm:$0x1]
    %s1016 = scalar_lea.vmem %s0, 34
    %v1017 = vld [vmem:[%s1016] sm:$0x2]
    %vm1018 = vcmask 1041409
    %v1019 = vsel %vm1018, %v1017, %v1015
    %s1020 = scalar_lea.vmem %s0, 65
    %v1021 = vld [vmem:[%s1020] sm:$0x4]
    %vm1022 = vcmask 1042434
    %v1023 = vsel %vm1022, %v1021, %v1019
    %s1024 = scalar_lea.vmem %s0, 96
    %v1025 = vld [vmem:[%s1024] sm:$0x8]
    %vm1026 = vcmask 1043459
    %v1027 = vsel %vm1026, %v1025, %v1023
    %s1028 = scalar_lea.vmem %s0, 127
    %v1029 = vld [vmem:[%s1028] sm:$0x10]
    %vm1030 = vcmask 1044484
    %v1031 = vsel %vm1030, %v1029, %v1027
    %s1032 = scalar_lea.vmem %s0, 158
    %v1033 = vld [vmem:[%s1032] sm:$0x20]
    %vm1034 = vcmask 1045509
    %v1035 = vsel %vm1034, %v1033, %v1031
    %s1036 = scalar_lea.vmem %s0, 189
    %v1037 = vld [vmem:[%s1036] sm:$0x40]
    %vm1038 = vcmask 1046534
    %v1039 = vsel %vm1038, %v1037, %v1035
    %s1040 = scalar_lea.vmem %s0, 220
    %v1041 = vld [vmem:[%s1040] sm:$0x80]
    %vm1042 = vcmask 1047559
    %v1043 = vsel %vm1042, %v1041, %v1039
    %1044 = vrot.lane.b32.xlu0 %v1043, 12
    %v1045 = vpop.permute.xlu0 %1044
    %vm1046 = vcmask 130144
    %1047 = vst.msk [vmem:[#allocation0] ss:$8 sm:$0xf] %vm1046, %v1045
    %1048 = vst.msk [vmem:[#allocation0] ss:$8 sm:$0xf0] %vm1046, %v1045
    %s1049 = scalar_lea.vmem %s0, 2
    %v1050 = vld [vmem:[%s1049] sm:$0x1]
    %s1051 = scalar_lea.vmem %s0, 33
    %v1052 = vld [vmem:[%s1051] sm:$0x2]
    %vm1053 = vcmask 1041409
    %v1054 = vsel %vm1053, %v1052, %v1050
    %s1055 = scalar_lea.vmem %s0, 64
    %v1056 = vld [vmem:[%s1055] sm:$0x4]
    %vm1057 = vcmask 1042434
    %v1058 = vsel %vm1057, %v1056, %v1054
    %s1059 = scalar_lea.vmem %s0, 95
    %v1060 = vld [vmem:[%s1059] sm:$0x8]
    %vm1061 = vcmask 1043459
    %v1062 = vsel %vm1061, %v1060, %v1058
    %s1063 = scalar_lea.vmem %s0, 126
    %v1064 = vld [vmem:[%s1063] sm:$0x10]
    %vm1065 = vcmask 1044484
    %v1066 = vsel %vm1065, %v1064, %v1062
    %s1067 = scalar_lea.vmem %s0, 157
    %v1068 = vld [vmem:[%s1067] sm:$0x20]
    %vm1069 = vcmask 1045509
    %v1070 = vsel %vm1069, %v1068, %v1066
    %s1071 = scalar_lea.vmem %s0, 188
    %v1072 = vld [vmem:[%s1071] sm:$0x40]
    %vm1073 = vcmask 1046534
    %v1074 = vsel %vm1073, %v1072, %v1070
    %s1075 = scalar_lea.vmem %s0, 219
    %v1076 = vld [vmem:[%s1075] sm:$0x80]
    %vm1077 = vcmask 1047559
    %v1078 = vsel %vm1077, %v1076, %v1074
    %1079 = vrot.lane.b32.xlu0 %v1078, 8
    %v1080 = vpop.permute.xlu0 %1079
    %vm1081 = vcmask 97344
    %1082 = vst.msk [vmem:[#allocation0] ss:$8 sm:$0xf] %vm1081, %v1080
    %1083 = vst.msk [vmem:[#allocation0] ss:$8 sm:$0xf0] %vm1081, %v1080
    %s1084 = scalar_lea.vmem %s0, 1
    %v1085 = vld [vmem:[%s1084] sm:$0x1]
    %s1086 = scalar_lea.vmem %s0, 32
    %v1087 = vld [vmem:[%s1086] sm:$0x2]
    %vm1088 = vcmask 1041409
    %v1089 = vsel %vm1088, %v1087, %v1085
    %s1090 = scalar_lea.vmem %s0, 63
    %v1091 = vld [vmem:[%s1090] sm:$0x4]
    %vm1092 = vcmask 1042434
    %v1093 = vsel %vm1092, %v1091, %v1089
    %s1094 = scalar_lea.vmem %s0, 94
    %v1095 = vld [vmem:[%s1094] sm:$0x8]
    %vm1096 = vcmask 1043459
    %v1097 = vsel %vm1096, %v1095, %v1093
    %s1098 = scalar_lea.vmem %s0, 125
    %v1099 = vld [vmem:[%s1098] sm:$0x10]
    %vm1100 = vcmask 1044484
    %v1101 = vsel %vm1100, %v1099, %v1097
    %s1102 = scalar_lea.vmem %s0, 156
    %v1103 = vld [vmem:[%s1102] sm:$0x20]
    %vm1104 = vcmask 1045509
    %v1105 = vsel %vm1104, %v1103, %v1101
    %s1106 = scalar_lea.vmem %s0, 187
    %v1107 = vld [vmem:[%s1106] sm:$0x40]
    %vm1108 = vcmask 1046534
    %v1109 = vsel %vm1108, %v1107, %v1105
    %s1110 = scalar_lea.vmem %s0, 218
    %v1111 = vld [vmem:[%s1110] sm:$0x80]
    %vm1112 = vcmask 1047559
    %v1113 = vsel %vm1112, %v1111, %v1109
    %1114 = vrot.lane.b32.xlu0 %v1113, 4
    %v1115 = vpop.permute.xlu0 %1114
    %vm1116 = vcmask 64544
    %1117 = vst.msk [vmem:[#allocation0] ss:$8 sm:$0xf] %vm1116, %v1115
    %1118 = vst.msk [vmem:[#allocation0] ss:$8 sm:$0xf0] %vm1116, %v1115
    %s1120 = sshllo.u32 0, 1
    %v1122 = vld [vmem:[#allocation0] sm:%s1120]
    %s1123 = sshllo.u32 0, 1
    %1124 = vst [vmem:[%s1] sm:%s1123] %v1122
    %s1125 = scalar_lea.vmem [#allocation0], 8
    %v1126 = vld [vmem:[%s1125] sm:%s1120]
    %s1127 = sshllo.u32 0, 1
    %s1128 = scalar_lea.vmem %s1, 1
    %1129 = vst [vmem:[%s1128] sm:%s1127] %v1126
    %s1130 = scalar_lea.vmem [#allocation0], 16
    %v1131 = vld [vmem:[%s1130] sm:%s1120]
    %s1132 = sshllo.u32 0, 1
    %s1133 = smul.addr 1, 2
    %s1134 = scalar_lea.vmem %s1, %s1133
    %1135 = vst [vmem:[%s1134] sm:%s1132] %v1131
    %s1136 = scalar_lea.vmem [#allocation0], 24
    %v1137 = vld [vmem:[%s1136] sm:%s1120]
    %s1138 = sshllo.u32 0, 1
    %s1139 = smul.addr 1, 3
    %s1140 = scalar_lea.vmem %s1, %s1139
    %1141 = vst [vmem:[%s1140] sm:%s1138] %v1137
    %s1142 = scalar_lea.vmem [#allocation0], 32
    %v1143 = vld [vmem:[%s1142] sm:%s1120]
    %s1144 = sshllo.u32 0, 1
    %s1145 = smul.addr 1, 4
    %s1146 = scalar_lea.vmem %s1, %s1145
    %1147 = vst [vmem:[%s1146] sm:%s1144] %v1143
    %s1148 = scalar_lea.vmem [#allocation0], 40
    %v1149 = vld [vmem:[%s1148] sm:%s1120]
    %s1150 = sshllo.u32 0, 1
    %s1151 = smul.addr 1, 5
    %s1152 = scalar_lea.vmem %s1, %s1151
    %1153 = vst [vmem:[%s1152] sm:%s1150] %v1149
    %s1154 = scalar_lea.vmem [#allocation0], 48
    %v1155 = vld [vmem:[%s1154] sm:%s1120]
    %s1156 = sshllo.u32 0, 1
    %s1157 = smul.addr 1, 6
    %s1158 = scalar_lea.vmem %s1, %s1157
    %1159 = vst [vmem:[%s1158] sm:%s1156] %v1155
    %s1160 = scalar_lea.vmem [#allocation0], 56
    %v1161 = vld [vmem:[%s1160] sm:%s1120]
    %s1162 = sshllo.u32 0, 1
    %s1163 = smul.addr 1, 7
    %s1164 = scalar_lea.vmem %s1, %s1163
    %1165 = vst [vmem:[%s1164] sm:%s1162] %v1161

// kernel: _lambda_.9
$region0: #{_lambda_.9}
  #allocation0 [shape = 'u32[]', space=smem, size = 0x4, offset = 0x4, fixed_abs, tag = 'smem constant byte address 0x4 - core index']
  #allocation1 [shape = 'u32[144,128]{1,0:T(1,128)}', space=vmem, size = 0x12000, scoped, tag = 'internal scratch']
  #allocation2 [shape = 'bf16[16,16,4]{2,1,0:T(16,128)(2,1)}', space=vmem, size = 0x10000, scoped, tag = 'scratch operand']
  %s0 = inlined_call_operand.vmem [shape: bf16[2,16,16,4], index: 0, kind: input, shape index: {}]
  %s1 = inlined_call_operand.vmem [shape: f32[1,4], index: 1, kind: input, shape index: {}]
  %s2 = inlined_call_operand.vmem [shape: f32[1,4], index: 2, kind: input, shape index: {}]
  %s3 = inlined_call_operand.vmem [shape: bf16[4,4], index: 3, kind: input, shape index: {}]
  %s4 = inlined_call_operand.vmem [shape: f32[1,4], index: 4, kind: input, shape index: {}]
  %s5 = inlined_call_operand.vmem [shape: bf16[2,16,16,4], index: 5, kind: output, shape index: {0}]
  %s6 = inlined_call_operand.hbm [shape: f32[2,1,4], index: 6, kind: output, shape index: {1}]
  %s7 = inlined_call_operand.hbm [shape: f32[2,1,4], index: 7, kind: output, shape index: {2}]
  %8 = xla_tuple %s5, %s6, %s7
  %s9 = sld [smem:[#allocation0]]
  $region69: #{_lambda_.9} parent=0
    _
  %s11 = ssub.s32 1, %s9
  %s12 = scalar_select 0, %s11, %s9
  $region1: #{_lambda_.9} parent=0
    #allocation3 [shape = 'u8[1024]{0}', space=vmem, size = 0x400, scoped, tag = 'output window, operand 1']
    #allocation4 [shape = 's32[2]{0}', space=sflag, size = 0x8, scoped, tag = 'scoped memory for _lambda_.9']
    #allocation5 [shape = 'u8[1024]{0}', space=vmem, size = 0x400, scoped, tag = 'output window, operand 2']
    #allocation6 [shape = 's32[2]{0}', space=sflag, size = 0x8, scoped, tag = 'scoped memory for _lambda_.9']
    %13 = vsyncpa [#allocation4], 0
    %s14 = scalar_lea.sflag [#allocation4], 1
    %15 = vsyncpa %s14, 0
    %16 = vsyncpa [#allocation6], 0
    %s17 = scalar_lea.sflag [#allocation6], 1
    %18 = vsyncpa %s17, 0
    loop: start=0, step=1, limit=4
    $region2: #{_lambda_.9} parent=1 // loop_pre_header
      _
    $region3: #{_lambda_.9} parent=1 // loop_header
      %s20 = sphi 0, %s24
      %p21 = scmp.ge.s32.totalorder %s20, 4
      %s30 = sphi 0, %s32
      %s33 = sphi 0, %s30
      %s34 = sphi 0, %s33
      %s50 = sphi 0, %s34
      %s54 = sphi 0, %s54
      %s56 = sphi 0, %s54
      %s57 = sphi 0, %s56
      %s71 = sphi 0, %s57
      %s75 = sphi 0, %s75
      %s77 = sphi 0, %s75
      %s78 = sphi 0, %s77
      %s92 = sphi 0, %s78
      %s96 = sphi 0, %s96
      %s98 = sphi 0, %s96
      %s99 = sphi 0, %s98
      %s113 = sphi 0, %s99
      %s117 = sphi 0, %s117
      %s119 = sphi 0, %s117
      %s120 = sphi 0, %s119
      %s134 = sphi 0, %s120
      %s140 = sphi 0, %s142
      %s143 = sphi 0, %s140
      %s144 = sphi 0, %s143
      %s160 = sphi 0, %s144
      %s166 = sphi 0, %s168
      %s169 = sphi 0, %s166
      %s170 = sphi 0, %s169
      %s186 = sphi 0, %s170
      %s192 = sphi 0, %s194
      %s195 = sphi 0, %s192
      %s196 = sphi 0, %s195
      %s212 = sphi 0, %s196
    $region4: #{_lambda_.9} parent=1 // loop_header_branch
      %23 = sbr.rel (%p21) target = $region8
    $region5: #{_lambda_.9} parent=1 // loop_body
      %s25 = ssub.s32 %s20, 1
      %s26 = ssub.s32 %s20, 2
      %s27 = sadd.s32 %s20, 1
      %s28 = ssub.s32 %s20, %s27
      %p29 = scmp.eq.s32.totalorder %s28, 0
      %s31 = sadd.s32 %s30, 1
      %s32 = scalar_select %p29, %s30, %s31
      %p35 = pneg %p29
      %p36 = scmp.eq.s32.totalorder %s20, 1
      %p37 = por %p35, %p36
      %p38 = scmp.ne.s32.totalorder %s30, %s33
      %p39 = scmp.eq.s32.totalorder %s20, 0
      %p40 = por %p38, %p39
      %p41 = scmp.ne.s32.totalorder %s30, %s33
      %p42 = scmp.eq.s32.totalorder %s25, 1
      %p43 = por %p41, %p42
      %p44 = scmp.ne.s32.totalorder %s33, %s34
      %p45 = scmp.eq.s32.totalorder %s25, 0
      %p46 = por %p44, %p45
      %p47 = scmp.ne.s32.totalorder %s33, %s34
      %p48 = scmp.eq.s32.totalorder %s26, 1
      %p49 = por %p47, %p48
      %p51 = scmp.ne.s32.totalorder %s34, %s50
      %p52 = scmp.eq.s32.totalorder %s26, 0
      %p53 = por %p51, %p52
      %s55 = sadd.s32 %s54, 1
      %p58 = scmp.eq.s32.totalorder %s20, 1
      %p59 = scmp.ne.s32.totalorder %s54, %s56
      %p60 = scmp.eq.s32.totalorder %s20, 0
      %p61 = por %p59, %p60
      %p62 = scmp.ne.s32.totalorder %s54, %s56
      %p63 = scmp.eq.s32.totalorder %s25, 1
      %p64 = por %p62, %p63
      %p65 = scmp.ne.s32.totalorder %s56, %s57
      %p66 = scmp.eq.s32.totalorder %s25, 0
      %p67 = por %p65, %p66
      %p68 = scmp.ne.s32.totalorder %s56, %s57
      %p69 = scmp.eq.s32.totalorder %s26, 1
      %p70 = por %p68, %p69
      %p72 = scmp.ne.s32.totalorder %s57, %s71
      %p73 = scmp.eq.s32.totalorder %s26, 0
      %p74 = por %p72, %p73
      %s76 = sadd.s32 %s75, 1
      %p79 = scmp.eq.s32.totalorder %s20, 1
      %p80 = scmp.ne.s32.totalorder %s75, %s77
      %p81 = scmp.eq.s32.totalorder %s20, 0
      %p82 = por %p80, %p81
      %p83 = scmp.ne.s32.totalorder %s75, %s77
      %p84 = scmp.eq.s32.totalorder %s25, 1
      %p85 = por %p83, %p84
      %p86 = scmp.ne.s32.totalorder %s77, %s78
      %p87 = scmp.eq.s32.totalorder %s25, 0
      %p88 = por %p86, %p87
      %p89 = scmp.ne.s32.totalorder %s77, %s78
      %p90 = scmp.eq.s32.totalorder %s26, 1
      %p91 = por %p89, %p90
      %p93 = scmp.ne.s32.totalorder %s78, %s92
      %p94 = scmp.eq.s32.totalorder %s26, 0
      %p95 = por %p93, %p94
      %s97 = sadd.s32 %s96, 1
      %p100 = scmp.eq.s32.totalorder %s20, 1
      %p101 = scmp.ne.s32.totalorder %s96, %s98
      %p102 = scmp.eq.s32.totalorder %s20, 0
      %p103 = por %p101, %p102
      %p104 = scmp.ne.s32.totalorder %s96, %s98
      %p105 = scmp.eq.s32.totalorder %s25, 1
      %p106 = por %p104, %p105
      %p107 = scmp.ne.s32.totalorder %s98, %s99
      %p108 = scmp.eq.s32.totalorder %s25, 0
      %p109 = por %p107, %p108
      %p110 = scmp.ne.s32.totalorder %s98, %s99
      %p111 = scmp.eq.s32.totalorder %s26, 1
      %p112 = por %p110, %p111
      %p114 = scmp.ne.s32.totalorder %s99, %s113
      %p115 = scmp.eq.s32.totalorder %s26, 0
      %p116 = por %p114, %p115
      %s118 = sadd.s32 %s117, 1
      %p121 = scmp.eq.s32.totalorder %s20, 1
      %p122 = scmp.ne.s32.totalorder %s117, %s119
      %p123 = scmp.eq.s32.totalorder %s20, 0
      %p124 = por %p122, %p123
      %p125 = scmp.ne.s32.totalorder %s117, %s119
      %p126 = scmp.eq.s32.totalorder %s25, 1
      %p127 = por %p125, %p126
      %p128 = scmp.ne.s32.totalorder %s119, %s120
      %p129 = scmp.eq.s32.totalorder %s25, 0
      %p130 = por %p128, %p129
      %p131 = scmp.ne.s32.totalorder %s119, %s120
      %p132 = scmp.eq.s32.totalorder %s26, 1
      %p133 = por %p131, %p132
      %p135 = scmp.ne.s32.totalorder %s120, %s134
      %p136 = scmp.eq.s32.totalorder %s26, 0
      %p137 = por %p135, %p136
      %s138 = ssub.s32 %s20, %s27
      %p139 = scmp.eq.s32.totalorder %s138, 0
      %s141 = sadd.s32 %s140, 1
      %s142 = scalar_select %p139, %s140, %s141
      %p145 = pneg %p139
      %p146 = scmp.eq.s32.totalorder %s20, 1
      %p147 = por %p145, %p146
      %p148 = scmp.ne.s32.totalorder %s140, %s143
      %p149 = scmp.eq.s32.totalorder %s20, 0
      %p150 = por %p148, %p149
      %p151 = scmp.ne.s32.totalorder %s140, %s143
      %p152 = scmp.eq.s32.totalorder %s25, 1
      %p153 = por %p151, %p152
      %p154 = scmp.ne.s32.totalorder %s143, %s144
      %p155 = scmp.eq.s32.totalorder %s25, 0
      %p156 = por %p154, %p155
      %p157 = scmp.ne.s32.totalorder %s143, %s144
      %p158 = scmp.eq.s32.totalorder %s26, 1
      %p159 = por %p157, %p158
      %p161 = scmp.ne.s32.totalorder %s144, %s160
      %p162 = scmp.eq.s32.totalorder %s26, 0
      %p163 = por %p161, %p162
      %s164 = ssub.s32 %s20, %s27
      %p165 = scmp.eq.s32.totalorder %s164, 0
      %s167 = sadd.s32 %s166, 1
      %s168 = scalar_select %p165, %s166, %s167
      %p171 = pneg %p165
      %p172 = scmp.eq.s32.totalorder %s20, 1
      %p173 = por %p171, %p172
      %p174 = scmp.ne.s32.totalorder %s166, %s169
      %p175 = scmp.eq.s32.totalorder %s20, 0
      %p176 = por %p174, %p175
      %p177 = scmp.ne.s32.totalorder %s166, %s169
      %p178 = scmp.eq.s32.totalorder %s25, 1
      %p179 = por %p177, %p178
      %p180 = scmp.ne.s32.totalorder %s169, %s170
      %p181 = scmp.eq.s32.totalorder %s25, 0
      %p182 = por %p180, %p181
      %p183 = scmp.ne.s32.totalorder %s169, %s170
      %p184 = scmp.eq.s32.totalorder %s26, 1
      %p185 = por %p183, %p184
      %p187 = scmp.ne.s32.totalorder %s170, %s186
      %p188 = scmp.eq.s32.totalorder %s26, 0
      %p189 = por %p187, %p188
      %s190 = ssub.s32 %s20, %s27
      %p191 = scmp.eq.s32.totalorder %s190, 0
      %s193 = sadd.s32 %s192, 1
      %s194 = scalar_select %p191, %s192, %s193
      %p197 = pneg %p191
      %p198 = scmp.eq.s32.totalorder %s20, 1
      %p199 = por %p197, %p198
      %p200 = scmp.ne.s32.totalorder %s192, %s195
      %p201 = scmp.eq.s32.totalorder %s20, 0
      %p202 = por %p200, %p201
      %p203 = scmp.ne.s32.totalorder %s192, %s195
      %p204 = scmp.eq.s32.totalorder %s25, 1
      %p205 = por %p203, %p204
      %p206 = scmp.ne.s32.totalorder %s195, %s196
      %p207 = scmp.eq.s32.totalorder %s25, 0
      %p208 = por %p206, %p207
      %p209 = scmp.ne.s32.totalorder %s195, %s196
      %p210 = scmp.eq.s32.totalorder %s26, 1
      %p211 = por %p209, %p210
      %p213 = scmp.ne.s32.totalorder %s196, %s212
      %p214 = scmp.eq.s32.totalorder %s26, 0
      %p215 = por %p213, %p214
      %p216 = scmp.le.s32.totalorder 1, %s20
      %p217 = scmp.lt.s32.totalorder %s20, 3
      %p218 = pnand %p216, %p217
      %p219 = pneg %p218
      // Predicated region
      $region9: #{_lambda_.9} parent=5 // pred_check
        _
      $region10: #{_lambda_.9} parent=5 // pred_check_branch
        %221 = sbr.rel (%p218) target = $region12
      $region11: #{_lambda_.9} parent=5 // pred_region
        %s222 = ssub.s32 %s20, 1
        // Predicated region
        $region13: #{_lambda_.9} parent=11 // pred_check
          %p223 = pneg %p67
        $region14: #{_lambda_.9} parent=11 // pred_check_branch
          %225 = sbr.rel (%p223) target = $region16
        $region15: #{_lambda_.9} parent=11 // pred_region
          _
        $region16: #{_lambda_.9} parent=11 // pred_fallthru
          _
        // Predicated region
        $region17: #{_lambda_.9} parent=11 // pred_check
          %p226 = pneg %p88
        $region18: #{_lambda_.9} parent=11 // pred_check_branch
          %228 = sbr.rel (%p226) target = $region20
        $region19: #{_lambda_.9} parent=11 // pred_region
          _
        $region20: #{_lambda_.9} parent=11 // pred_fallthru
          _
        // Predicated region
        $region21: #{_lambda_.9} parent=11 // pred_check
          %p229 = pneg %p109
        $region22: #{_lambda_.9} parent=11 // pred_check_branch
          %231 = sbr.rel (%p229) target = $region24
        $region23: #{_lambda_.9} parent=11 // pred_region
          _
        $region24: #{_lambda_.9} parent=11 // pred_fallthru
          _
        // Predicated region
        $region25: #{_lambda_.9} parent=11 // pred_check
          %p232 = pneg %p130
        $region26: #{_lambda_.9} parent=11 // pred_check_branch
          %234 = sbr.rel (%p232) target = $region28
        $region27: #{_lambda_.9} parent=11 // pred_region
          _
        $region28: #{_lambda_.9} parent=11 // pred_fallthru
          _
      $region12: #{_lambda_.9} parent=5 // pred_fallthru
        _
      %p235 = scmp.lt.s32.totalorder %s20, 2
      // Predicated region
      $region29: #{_lambda_.9} parent=5 // pred_check
        %p236 = pneg %p235
      $region30: #{_lambda_.9} parent=5 // pred_check_branch
        %238 = sbr.rel (%p236) target = $region32
      $region31: #{_lambda_.9} parent=5 // pred_region
        // Predicated region
        $region33: #{_lambda_.9} parent=31 // pred_check
          %p239 = pneg %p40
        $region34: #{_lambda_.9} parent=31 // pred_check_branch
          %241 = sbr.rel (%p239) target = $region36
        $region35: #{_lambda_.9} parent=31 // pred_region
          %p242 = scmp.lt.s32.totalorder %s20, 1
          %s243 = scalar_select %p242, %s20, 1
          %s244 = smul.addr %s243, 32
          %s245 = smul.addr %s244, 4
          %s246 = scalar_lea.vmem %s0, %s245
        $region36: #{_lambda_.9} parent=31 // pred_fallthru
          _
      $region32: #{_lambda_.9} parent=5 // pred_fallthru
        _
      %p247 = scmp.le.s32.totalorder 1, %s20
      %p248 = scmp.lt.s32.totalorder %s20, 3
      %p249 = pnand %p247, %p248
      %p250 = pneg %p249
      // Predicated region
      $region37: #{_lambda_.9} parent=5 // pred_check
        _
      $region38: #{_lambda_.9} parent=5 // pred_check_branch
        %252 = sbr.rel (%p249) target = $region40
      $region39: #{_lambda_.9} parent=5 // pred_region
        %s253 = ssub.s32 %s20, 1
        %p254 = scmp.lt.s32.totalorder %s25, 1
        %s255 = scalar_select %p254, %s25, 1
        %s256 = smul.addr %s255, 32
        %s257 = smul.addr %s256, 4
        %s258 = scalar_lea.vmem %s0, %s257
        %p259 = pneg %p46
        %p260 = pneg %p43
        %p261 = pneg %p67
        %p262 = pneg %p64
        %p263 = pneg %p88
        %p264 = pneg %p85
        %p265 = pneg %p109
        %p266 = pneg %p106
        %p267 = pneg %p130
        %p268 = pneg %p127
        %p269 = pneg %p156
        %p270 = pneg %p153
        %p271 = scmp.lt.s32.totalorder %s25, 1
        %s272 = scalar_select %p271, %s25, 1
        %s273 = smul.addr %s272, 32
        %s274 = smul.addr %s273, 4
        %s275 = scalar_lea.vmem %s5, %s274
        %p276 = pneg %p182
        %p277 = pneg %p179
        %s278 = sand.u32 %s169, 1
        %s279 = scalar_lea.sflag [#allocation4], %s278
        %s280 = sand.u32 %s169, 1
        %s281 = scalar_lea.vmem [#allocation3], %s280
        %p282 = pneg %p208
        %p283 = pneg %p205
        %s284 = sand.u32 %s195, 1
        %s285 = scalar_lea.sflag [#allocation6], %s284
        %s286 = sand.u32 %s195, 1
        %s287 = scalar_lea.vmem [#allocation5], %s286
        %p288 = scmp.lt.s32.totalorder %s25, 1
        %s289 = scalar_select %p288, %s25, 1
        %s290 = smul.addr %s289, 32
        %s291 = smul.addr %s290, 4
        %s292 = scalar_lea.vmem %s0, %s291
        %p293 = scmp.lt.s32.totalorder %s25, 1
        %s294 = scalar_select %p293, %s25, 1
        %s295 = smul.addr %s294, 32
        %s296 = smul.addr %s295, 4
        %s297 = scalar_lea.vmem %s5, %s296
        %v299 = vld [vmem:[%s292] sm:$0xf]
        %v300 = vld [vmem:[%s292 + $0x4] sm:$0xf]
        %v301 = vld [vmem:[%s292 + $0x8] sm:$0xf]
        %v302 = vld [vmem:[%s292 + $0xc] sm:$0xf]
        %v303 = vld [vmem:[%s292 + $0x10] sm:$0xf]
        %v304 = vld [vmem:[%s292 + $0x14] sm:$0xf]
        %v305 = vld [vmem:[%s292 + $0x18] sm:$0xf]
        %v306 = vld [vmem:[%s292 + $0x1c] sm:$0xf]
        %v307 = vld [vmem:[%s292 + $0x20] sm:$0xf]
        %v308 = vld [vmem:[%s292 + $0x24] sm:$0xf]
        %v309 = vld [vmem:[%s292 + $0x28] sm:$0xf]
        %v310 = vld [vmem:[%s292 + $0x2c] sm:$0xf]
        %v311 = vld [vmem:[%s292 + $0x30] sm:$0xf]
        %v312 = vld [vmem:[%s292 + $0x34] sm:$0xf]
        %v313 = vld [vmem:[%s292 + $0x38] sm:$0xf]
        %v314 = vld [vmem:[%s292 + $0x3c] sm:$0xf]
        %v315 = vld [vmem:[%s292 + $0x40] sm:$0xf]
        %v316 = vld [vmem:[%s292 + $0x44] sm:$0xf]
        %v317 = vld [vmem:[%s292 + $0x48] sm:$0xf]
        %v318 = vld [vmem:[%s292 + $0x4c] sm:$0xf]
        %v319 = vld [vmem:[%s292 + $0x50] sm:$0xf]
        %v320 = vld [vmem:[%s292 + $0x54] sm:$0xf]
        %v321 = vld [vmem:[%s292 + $0x58] sm:$0xf]
        %v322 = vld [vmem:[%s292 + $0x5c] sm:$0xf]
        %v323 = vld [vmem:[%s292 + $0x60] sm:$0xf]
        %v324 = vld [vmem:[%s292 + $0x64] sm:$0xf]
        %v325 = vld [vmem:[%s292 + $0x68] sm:$0xf]
        %v326 = vld [vmem:[%s292 + $0x6c] sm:$0xf]
        %v327 = vld [vmem:[%s292 + $0x70] sm:$0xf]
        %v328 = vld [vmem:[%s292 + $0x74] sm:$0xf]
        %v329 = vld [vmem:[%s292 + $0x78] sm:$0xf]
        %v330 = vld [vmem:[%s292 + $0x7c] sm:$0xf]
        %v331 = vunpack.c.l.bf16 %v299
        %v332 = vunpack.c.l.bf16 %v300
        %v333 = vunpack.c.l.bf16 %v301
        %v334 = vunpack.c.l.bf16 %v302
        %v335 = vunpack.c.l.bf16 %v303
        %v336 = vunpack.c.l.bf16 %v304
        %v337 = vunpack.c.l.bf16 %v305
        %v338 = vunpack.c.l.bf16 %v306
        %v339 = vunpack.c.l.bf16 %v307
        %v340 = vunpack.c.l.bf16 %v308
        %v341 = vunpack.c.l.bf16 %v309
        %v342 = vunpack.c.l.bf16 %v310
        %v343 = vunpack.c.l.bf16 %v311
        %v344 = vunpack.c.l.bf16 %v312
        %v345 = vunpack.c.l.bf16 %v313
        %v346 = vunpack.c.l.bf16 %v314
        %v347 = vunpack.c.l.bf16 %v315
        %v348 = vunpack.c.l.bf16 %v316
        %v349 = vunpack.c.l.bf16 %v317
        %v350 = vunpack.c.l.bf16 %v318
        %v351 = vunpack.c.l.bf16 %v319
        %v352 = vunpack.c.l.bf16 %v320
        %v353 = vunpack.c.l.bf16 %v321
        %v354 = vunpack.c.l.bf16 %v322
        %v355 = vunpack.c.l.bf16 %v323
        %v356 = vunpack.c.l.bf16 %v324
        %v357 = vunpack.c.l.bf16 %v325
        %v358 = vunpack.c.l.bf16 %v326
        %v359 = vunpack.c.l.bf16 %v327
        %v360 = vunpack.c.l.bf16 %v328
        %v361 = vunpack.c.l.bf16 %v329
        %v362 = vunpack.c.l.bf16 %v330
        %v363 = vld [vmem:[%s1] sm:$0x1]
        %v365 = vlaneseq
        %v366 = vshrl.u32 %v365, 7
        %v367 = vsub.s32 0, %v366
        %v368 = vrot.slane %v363, %v367
        %v370 = vmul.f32 %v331, %v368
        %v371 = vmul.f32 %v332, %v368
        %v372 = vmul.f32 %v333, %v368
        %v373 = vmul.f32 %v334, %v368
        %v374 = vmul.f32 %v335, %v368
        %v375 = vmul.f32 %v336, %v368
        %v376 = vmul.f32 %v337, %v368
        %v377 = vmul.f32 %v338, %v368
        %v378 = vmul.f32 %v339, %v368
        %v379 = vmul.f32 %v340, %v368
        %v380 = vmul.f32 %v341, %v368
        %v381 = vmul.f32 %v342, %v368
        %v382 = vmul.f32 %v343, %v368
        %v383 = vmul.f32 %v344, %v368
        %v384 = vmul.f32 %v345, %v368
        %v385 = vmul.f32 %v346, %v368
        %v386 = vmul.f32 %v347, %v368
        %v387 = vmul.f32 %v348, %v368
        %v388 = vmul.f32 %v349, %v368
        %v389 = vmul.f32 %v350, %v368
        %v390 = vmul.f32 %v351, %v368
        %v391 = vmul.f32 %v352, %v368
        %v392 = vmul.f32 %v353, %v368
        %v393 = vmul.f32 %v354, %v368
        %v394 = vmul.f32 %v355, %v368
        %v395 = vmul.f32 %v356, %v368
        %v396 = vmul.f32 %v357, %v368
        %v397 = vmul.f32 %v358, %v368
        %v398 = vmul.f32 %v359, %v368
        %v399 = vmul.f32 %v360, %v368
        %v400 = vmul.f32 %v361, %v368
        %v401 = vmul.f32 %v362, %v368
        %v402 = vld [vmem:[%s2] sm:$0x1]
        %v404 = vlaneseq
        %v405 = vshrl.u32 %v404, 7
        %v406 = vsub.s32 0, %v405
        %v407 = vrot.slane %v402, %v406
        %v409 = vadd.f32 %v370, %v407
        %v410 = vadd.f32 %v371, %v407
        %v411 = vadd.f32 %v372, %v407
        %v412 = vadd.f32 %v373, %v407
        %v413 = vadd.f32 %v374, %v407
        %v414 = vadd.f32 %v375, %v407
        %v415 = vadd.f32 %v376, %v407
        %v416 = vadd.f32 %v377, %v407
        %v417 = vadd.f32 %v378, %v407
        %v418 = vadd.f32 %v379, %v407
        %v419 = vadd.f32 %v380, %v407
        %v420 = vadd.f32 %v381, %v407
        %v421 = vadd.f32 %v382, %v407
        %v422 = vadd.f32 %v383, %v407
        %v423 = vadd.f32 %v384, %v407
        %v424 = vadd.f32 %v385, %v407
        %v425 = vadd.f32 %v386, %v407
        %v426 = vadd.f32 %v387, %v407
        %v427 = vadd.f32 %v388, %v407
        %v428 = vadd.f32 %v389, %v407
        %v429 = vadd.f32 %v390, %v407
        %v430 = vadd.f32 %v391, %v407
        %v431 = vadd.f32 %v392, %v407
        %v432 = vadd.f32 %v393, %v407
        %v433 = vadd.f32 %v394, %v407
        %v434 = vadd.f32 %v395, %v407
        %v435 = vadd.f32 %v396, %v407
        %v436 = vadd.f32 %v397, %v407
        %v437 = vadd.f32 %v398, %v407
        %v438 = vadd.f32 %v399, %v407
        %v439 = vadd.f32 %v400, %v407
        %v440 = vadd.f32 %v401, %v407
        %v441 = vpack.c.bf16 %v410, %v409
        %v442 = vpack.c.bf16 %v412, %v411
        %v443 = vpack.c.bf16 %v414, %v413
        %v444 = vpack.c.bf16 %v416, %v415
        %v445 = vpack.c.bf16 %v418, %v417
        %v446 = vpack.c.bf16 %v420, %v419
        %v447 = vpack.c.bf16 %v422, %v421
        %v448 = vpack.c.bf16 %v424, %v423
        %v449 = vpack.c.bf16 %v426, %v425
        %v450 = vpack.c.bf16 %v428, %v427
        %v451 = vpack.c.bf16 %v430, %v429
        %v452 = vpack.c.bf16 %v432, %v431
        %v453 = vpack.c.bf16 %v434, %v433
        %v454 = vpack.c.bf16 %v436, %v435
        %v455 = vpack.c.bf16 %v438, %v437
        %v456 = vpack.c.bf16 %v440, %v439
        %vm457 = vcmask 31744
        %458 = vst.msk [vmem:[#allocation2] sm:$0xff] %vm457, %v441
        %459 = vst.msk [vmem:[#allocation2 + $0x8] sm:$0xff] %vm457, %v442
        %460 = vst.msk [vmem:[#allocation2 + $0x10] sm:$0xff] %vm457, %v443
        %461 = vst.msk [vmem:[#allocation2 + $0x18] sm:$0xff] %vm457, %v444
        %462 = vst.msk [vmem:[#allocation2 + $0x20] sm:$0xff] %vm457, %v445
        %463 = vst.msk [vmem:[#allocation2 + $0x28] sm:$0xff] %vm457, %v446
        %464 = vst.msk [vmem:[#allocation2 + $0x30] sm:$0xff] %vm457, %v447
        %465 = vst.msk [vmem:[#allocation2 + $0x38] sm:$0xff] %vm457, %v448
        %466 = vst.msk [vmem:[#allocation2 + $0x40] sm:$0xff] %vm457, %v449
        %467 = vst.msk [vmem:[#allocation2 + $0x48] sm:$0xff] %vm457, %v450
        %468 = vst.msk [vmem:[#allocation2 + $0x50] sm:$0xff] %vm457, %v451
        %469 = vst.msk [vmem:[#allocation2 + $0x58] sm:$0xff] %vm457, %v452
        %470 = vst.msk [vmem:[#allocation2 + $0x60] sm:$0xff] %vm457, %v453
        %471 = vst.msk [vmem:[#allocation2 + $0x68] sm:$0xff] %vm457, %v454
        %472 = vst.msk [vmem:[#allocation2 + $0x70] sm:$0xff] %vm457, %v455
        %473 = vst.msk [vmem:[#allocation2 + $0x78] sm:$0xff] %vm457, %v456
        %v474 = vld [vmem:[%s3] sm:$0x3]
        %v475 = vld [vmem:[%s4] sm:$0x1]
        %v476 = vld [vmem:[#allocation2] sm:$0xff]
        %v477 = vld [vmem:[#allocation2 + $0x8] sm:$0xff]
        %v478 = vld [vmem:[#allocation2 + $0x10] sm:$0xff]
        %v479 = vld [vmem:[#allocation2 + $0x18] sm:$0xff]
        %v480 = vld [vmem:[#allocation2 + $0x20] sm:$0xff]
        %v481 = vld [vmem:[#allocation2 + $0x28] sm:$0xff]
        %v482 = vld [vmem:[#allocation2 + $0x30] sm:$0xff]
        %v483 = vld [vmem:[#allocation2 + $0x38] sm:$0xff]
        %v484 = vld [vmem:[#allocation2 + $0x40] sm:$0xff]
        %v485 = vld [vmem:[#allocation2 + $0x48] sm:$0xff]
        %v486 = vld [vmem:[#allocation2 + $0x50] sm:$0xff]
        %v487 = vld [vmem:[#allocation2 + $0x58] sm:$0xff]
        %v488 = vld [vmem:[#allocation2 + $0x60] sm:$0xff]
        %v489 = vld [vmem:[#allocation2 + $0x68] sm:$0xff]
        %v490 = vld [vmem:[#allocation2 + $0x70] sm:$0xff]
        %v491 = vld [vmem:[#allocation2 + $0x78] sm:$0xff]
        %v493 = vlaneseq
        %v494 = vshrl.u32 %v493, 7
        %v495 = vsub.s32 0, %v494
        %v496 = vrot.slane %v475, %v495
        %v499 = vsel %vm457, %v476, 0
        %v502 = vsel %vm457, %v477, 0
        %v505 = vsel %vm457, %v478, 0
        %v508 = vsel %vm457, %v479, 0
        %v511 = vsel %vm457, %v480, 0
        %v514 = vsel %vm457, %v481, 0
        %v517 = vsel %vm457, %v482, 0
        %v520 = vsel %vm457, %v483, 0
        %v523 = vsel %vm457, %v484, 0
        %v526 = vsel %vm457, %v485, 0
        %v529 = vsel %vm457, %v486, 0
        %v532 = vsel %vm457, %v487, 0
        %v535 = vsel %vm457, %v488, 0
        %v538 = vsel %vm457, %v489, 0
        %v541 = vsel %vm457, %v490, 0
        %v544 = vsel %vm457, %v491, 0
        %vm546 = vcmask 1041408
        %v548 = vsel %vm546, %v474, 0
        %550 = vmatprep.subr.bf16.mxu0 0
        %551 = vmatpush1.bf16.msra.mxu0 %v548
        %552 = vmatprep.subr.bf16.mxu0 0
        %553 = vmatpush1.bf16.msra.mxu0 0
        %554 = vmatprep.subr.bf16.mxu0 0
        %555 = vmatpush1.bf16.msra.mxu0 0
        %556 = vmatprep.subr.bf16.mxu0 0
        %557 = vmatpush1.bf16.msra.mxu0 0
        %558 = vmatprep.subr.bf16.mxu0 0
        %559 = vmatpush1.bf16.msra.mxu0 0
        %560 = vmatprep.subr.bf16.mxu0 0
        %561 = vmatpush1.bf16.msra.mxu0 0
        %562 = vmatprep.subr.bf16.mxu0 0
        %563 = vmatpush1.bf16.msra.mxu0 0
        %564 = vmatprep.subr.bf16.mxu0 0
        %565 = vmatpush1.bf16.msra.mxu0 0
        %566 = vmatprep.subr.bf16.mxu0 0
        %567 = vmatpush1.bf16.msra.mxu0 0
        %568 = vmatprep.subr.bf16.mxu0 0
        %569 = vmatpush1.bf16.msra.mxu0 0
        %570 = vmatprep.subr.bf16.mxu0 0
        %571 = vmatpush1.bf16.msra.mxu0 0
        %572 = vmatprep.subr.bf16.mxu0 0
        %573 = vmatpush1.bf16.msra.mxu0 0
        %574 = vmatprep.subr.bf16.mxu0 0
        %575 = vmatpush1.bf16.msra.mxu0 0
        %576 = vmatprep.subr.bf16.mxu0 0
        %577 = vmatpush1.bf16.msra.mxu0 0
        %578 = vmatprep.subr.bf16.mxu0 0
        %579 = vmatpush1.bf16.msra.mxu0 0
        %580 = vmatprep.subr.bf16.mxu0 0
        %581 = vmatpush1.bf16.msra.mxu0 0
        %582 = vmatprep.mubr.bf16.mxu0 0
        %583 = vmatmul.mubr.bf16.gmra.mrb[0].mxu0 %v499
        %v584 = vpop.f32.mrb[0].mxu0
        %v585 = vadd.f32 %v496, %v584
        %v586 = vpop.f32.mrb[0].mxu0
        %v587 = vpop.f32.mrb[0].mxu0
        %v588 = vadd.f32 %v496, %v587
        %v589 = vpop.f32.mrb[0].mxu0
        %590 = vmatprep.mubr.bf16.mxu0 0
        %591 = vmatmul.mubr.bf16.gmra.mrb[0].mxu0 %v502
        %v592 = vpop.f32.mrb[0].mxu0
        %v593 = vadd.f32 %v496, %v592
        %v594 = vpop.f32.mrb[0].mxu0
        %v595 = vpop.f32.mrb[0].mxu0
        %v596 = vadd.f32 %v496, %v595
        %v597 = vpop.f32.mrb[0].mxu0
        %598 = vmatprep.mubr.bf16.mxu0 0
        %599 = vmatmul.mubr.bf16.gmra.mrb[0].mxu0 %v505
        %v600 = vpop.f32.mrb[0].mxu0
        %v601 = vadd.f32 %v496, %v600
        %v602 = vpop.f32.mrb[0].mxu0
        %v603 = vpop.f32.mrb[0].mxu0
        %v604 = vadd.f32 %v496, %v603
        %v605 = vpop.f32.mrb[0].mxu0
        %606 = vmatprep.mubr.bf16.mxu0 0
        %607 = vmatmul.mubr.bf16.gmra.mrb[0].mxu0 %v508
        %v608 = vpop.f32.mrb[0].mxu0
        %v609 = vadd.f32 %v496, %v608
        %v610 = vpop.f32.mrb[0].mxu0
        %v611 = vpop.f32.mrb[0].mxu0
        %v612 = vadd.f32 %v496, %v611
        %v613 = vpop.f32.mrb[0].mxu0
        %614 = vmatprep.mubr.bf16.mxu0 0
        %615 = vmatmul.mubr.bf16.gmra.mrb[0].mxu0 %v511
        %v616 = vpop.f32.mrb[0].mxu0
        %v617 = vadd.f32 %v496, %v616
        %v618 = vpop.f32.mrb[0].mxu0
        %v619 = vpop.f32.mrb[0].mxu0
        %v620 = vadd.f32 %v496, %v619
        %v621 = vpop.f32.mrb[0].mxu0
        %622 = vmatprep.mubr.bf16.mxu0 0
        %623 = vmatmul.mubr.bf16.gmra.mrb[0].mxu0 %v514
        %v624 = vpop.f32.mrb[0].mxu0
        %v625 = vadd.f32 %v496, %v624
        %v626 = vpop.f32.mrb[0].mxu0
        %v627 = vpop.f32.mrb[0].mxu0
        %v628 = vadd.f32 %v496, %v627
        %v629 = vpop.f32.mrb[0].mxu0
        %630 = vmatprep.mubr.bf16.mxu0 0
        %631 = vmatmul.mubr.bf16.gmra.mrb[0].mxu0 %v517
        %v632 = vpop.f32.mrb[0].mxu0
        %v633 = vadd.f32 %v496, %v632
        %v634 = vpop.f32.mrb[0].mxu0
        %v635 = vpop.f32.mrb[0].mxu0
        %v636 = vadd.f32 %v496, %v635
        %v637 = vpop.f32.mrb[0].mxu0
        %638 = vmatprep.mubr.bf16.mxu0 0
        %639 = vmatmul.mubr.bf16.gmra.mrb[0].mxu0 %v520
        %v640 = vpop.f32.mrb[0].mxu0
        %v641 = vadd.f32 %v496, %v640
        %v642 = vpop.f32.mrb[0].mxu0
        %v643 = vpop.f32.mrb[0].mxu0
        %v644 = vadd.f32 %v496, %v643
        %v645 = vpop.f32.mrb[0].mxu0
        %646 = vmatprep.mubr.bf16.mxu0 0
        %647 = vmatmul.mubr.bf16.gmra.mrb[0].mxu0 %v523
        %v648 = vpop.f32.mrb[0].mxu0
        %v649 = vadd.f32 %v496, %v648
        %v650 = vpop.f32.mrb[0].mxu0
        %v651 = vpop.f32.mrb[0].mxu0
        %v652 = vadd.f32 %v496, %v651
        %v653 = vpop.f32.mrb[0].mxu0
        %654 = vmatprep.mubr.bf16.mxu0 0
        %655 = vmatmul.mubr.bf16.gmra.mrb[0].mxu0 %v526
        %v656 = vpop.f32.mrb[0].mxu0
        %v657 = vadd.f32 %v496, %v656
        %v658 = vpop.f32.mrb[0].mxu0
        %v659 = vpop.f32.mrb[0].mxu0
        %v660 = vadd.f32 %v496, %v659
        %v661 = vpop.f32.mrb[0].mxu0
        %662 = vmatprep.mubr.bf16.mxu0 0
        %663 = vmatmul.mubr.bf16.gmra.mrb[0].mxu0 %v529
        %v664 = vpop.f32.mrb[0].mxu0
        %v665 = vadd.f32 %v496, %v664
        %v666 = vpop.f32.mrb[0].mxu0
        %v667 = vpop.f32.mrb[0].mxu0
        %v668 = vadd.f32 %v496, %v667
        %v669 = vpop.f32.mrb[0].mxu0
        %670 = vmatprep.mubr.bf16.mxu0 0
        %671 = vmatmul.mubr.bf16.gmra.mrb[0].mxu0 %v532
        %v672 = vpop.f32.mrb[0].mxu0
        %v673 = vadd.f32 %v496, %v672
        %v674 = vpop.f32.mrb[0].mxu0
        %v675 = vpop.f32.mrb[0].mxu0
        %v676 = vadd.f32 %v496, %v675
        %v677 = vpop.f32.mrb[0].mxu0
        %678 = vmatprep.mubr.bf16.mxu0 0
        %679 = vmatmul.mubr.bf16.gmra.mrb[0].mxu0 %v535
        %v680 = vpop.f32.mrb[0].mxu0
        %v681 = vadd.f32 %v496, %v680
        %v682 = vpop.f32.mrb[0].mxu0
        %v683 = vpop.f32.mrb[0].mxu0
        %v684 = vadd.f32 %v496, %v683
        %v685 = vpop.f32.mrb[0].mxu0
        %686 = vmatprep.mubr.bf16.mxu0 0
        %687 = vmatmul.mubr.bf16.gmra.mrb[0].mxu0 %v538
        %v688 = vpop.f32.mrb[0].mxu0
        %v689 = vadd.f32 %v496, %v688
        %v690 = vpop.f32.mrb[0].mxu0
        %v691 = vpop.f32.mrb[0].mxu0
        %v692 = vadd.f32 %v496, %v691
        %v693 = vpop.f32.mrb[0].mxu0
        %694 = vmatprep.mubr.bf16.mxu0 0
        %695 = vmatmul.mubr.bf16.gmra.mrb[0].mxu0 %v541
        %v696 = vpop.f32.mrb[0].mxu0
        %v697 = vadd.f32 %v496, %v696
        %v698 = vpop.f32.mrb[0].mxu0
        %v699 = vpop.f32.mrb[0].mxu0
        %v700 = vadd.f32 %v496, %v699
        %v701 = vpop.f32.mrb[0].mxu0
        %702 = vmatprep.mubr.bf16.mxu0 0
        %703 = vmatmul.mubr.bf16.gmra.mrb[0].mxu0 %v544
        %v704 = vpop.f32.mrb[0].mxu0
        %v705 = vadd.f32 %v496, %v704
        %v706 = vpop.f32.mrb[0].mxu0
        %v707 = vpop.f32.mrb[0].mxu0
        %v708 = vadd.f32 %v496, %v707
        %v709 = vpop.f32.mrb[0].mxu0
        %710 = vdwg.mxu0
        %v711 = vmax.f32 %v585, 0.0
        %v712 = vmax.f32 %v588, 0.0
        %v713 = vmax.f32 %v593, 0.0
        %v714 = vmax.f32 %v596, 0.0
        %v715 = vmax.f32 %v601, 0.0
        %v716 = vmax.f32 %v604, 0.0
        %v717 = vmax.f32 %v609, 0.0
        %v718 = vmax.f32 %v612, 0.0
        %v719 = vmax.f32 %v617, 0.0
        %v720 = vmax.f32 %v620, 0.0
        %v721 = vmax.f32 %v625, 0.0
        %v722 = vmax.f32 %v628, 0.0
        %v723 = vmax.f32 %v633, 0.0
        %v724 = vmax.f32 %v636, 0.0
        %v725 = vmax.f32 %v641, 0.0
        %v726 = vmax.f32 %v644, 0.0
        %v727 = vmax.f32 %v649, 0.0
        %v728 = vmax.f32 %v652, 0.0
        %v729 = vmax.f32 %v657, 0.0
        %v730 = vmax.f32 %v660, 0.0
        %v731 = vmax.f32 %v665, 0.0
        %v732 = vmax.f32 %v668, 0.0
        %v733 = vmax.f32 %v673, 0.0
        %v734 = vmax.f32 %v676, 0.0
        %v735 = vmax.f32 %v681, 0.0
        %v736 = vmax.f32 %v684, 0.0
        %v737 = vmax.f32 %v689, 0.0
        %v738 = vmax.f32 %v692, 0.0
        %v739 = vmax.f32 %v697, 0.0
        %v740 = vmax.f32 %v700, 0.0
        %v741 = vmax.f32 %v705, 0.0
        %v742 = vmax.f32 %v708, 0.0
        %v743 = vpack.c.bf16 %v712, %v711
        %v744 = vpack.c.bf16 %v714, %v713
        %v745 = vpack.c.bf16 %v716, %v715
        %v746 = vpack.c.bf16 %v718, %v717
        %v747 = vpack.c.bf16 %v720, %v719
        %v748 = vpack.c.bf16 %v722, %v721
        %v749 = vpack.c.bf16 %v724, %v723
        %v750 = vpack.c.bf16 %v726, %v725
        %v751 = vpack.c.bf16 %v728, %v727
        %v752 = vpack.c.bf16 %v730, %v729
        %v753 = vpack.c.bf16 %v732, %v731
        %v754 = vpack.c.bf16 %v734, %v733
        %v755 = vpack.c.bf16 %v736, %v735
        %v756 = vpack.c.bf16 %v738, %v737
        %v757 = vpack.c.bf16 %v740, %v739
        %v758 = vpack.c.bf16 %v742, %v741
        %v775 = vunpack.c.l.b16 %v743
        %v776 = vunpack.c.h.b16 %v743
        %v777 = vunpack.c.l.b16 %v744
        %v778 = vunpack.c.h.b16 %v744
        %v779 = vunpack.c.l.b16 %v745
        %v780 = vunpack.c.h.b16 %v745
        %v781 = vunpack.c.l.b16 %v746
        %v782 = vunpack.c.h.b16 %v746
        %v783 = vunpack.c.l.b16 %v747
        %v784 = vunpack.c.h.b16 %v747
        %v785 = vunpack.c.l.b16 %v748
        %v786 = vunpack.c.h.b16 %v748
        %v787 = vunpack.c.l.b16 %v749
        %v788 = vunpack.c.h.b16 %v749
        %v789 = vunpack.c.l.b16 %v750
        %v790 = vunpack.c.h.b16 %v750
        %v791 = vunpack.c.l.b16 %v751
        %v792 = vunpack.c.h.b16 %v751
        %v793 = vunpack.c.l.b16 %v752
        %v794 = vunpack.c.h.b16 %v752
        %v795 = vunpack.c.l.b16 %v753
        %v796 = vunpack.c.h.b16 %v753
        %v797 = vunpack.c.l.b16 %v754
        %v798 = vunpack.c.h.b16 %v754
        %v799 = vunpack.c.l.b16 %v755
        %v800 = vunpack.c.h.b16 %v755
        %v801 = vunpack.c.l.b16 %v756
        %v802 = vunpack.c.h.b16 %v756
        %v803 = vunpack.c.l.b16 %v757
        %v804 = vunpack.c.h.b16 %v757
        %v805 = vunpack.c.l.b16 %v758
        %v806 = vunpack.c.h.b16 %v758
        %v807 = vpack.c.b16 %v775, %v775
        %v808 = vpack.c.b16 %v776, %v776
        %v809 = vpack.c.b16 %v777, %v777
        %v810 = vpack.c.b16 %v778, %v778
        %v811 = vpack.c.b16 %v779, %v779
        %v812 = vpack.c.b16 %v780, %v780
        %v813 = vpack.c.b16 %v781, %v781
        %v814 = vpack.c.b16 %v782, %v782
        %v815 = vpack.c.b16 %v783, %v783
        %v816 = vpack.c.b16 %v784, %v784
        %v817 = vpack.c.b16 %v785, %v785
        %v818 = vpack.c.b16 %v786, %v786
        %v819 = vpack.c.b16 %v787, %v787
        %v820 = vpack.c.b16 %v788, %v788
        %v821 = vpack.c.b16 %v789, %v789
        %v822 = vpack.c.b16 %v790, %v790
        %v823 = vpack.c.b16 %v791, %v791
        %v824 = vpack.c.b16 %v792, %v792
        %v825 = vpack.c.b16 %v793, %v793
        %v826 = vpack.c.b16 %v794, %v794
        %v827 = vpack.c.b16 %v795, %v795
        %v828 = vpack.c.b16 %v796, %v796
        %v829 = vpack.c.b16 %v797, %v797
        %v830 = vpack.c.b16 %v798, %v798
        %v831 = vpack.c.b16 %v799, %v799
        %v832 = vpack.c.b16 %v800, %v800
        %v833 = vpack.c.b16 %v801, %v801
        %v834 = vpack.c.b16 %v802, %v802
        %v835 = vpack.c.b16 %v803, %v803
        %v836 = vpack.c.b16 %v804, %v804
        %v837 = vpack.c.b16 %v805, %v805
        %v838 = vpack.c.b16 %v806, %v806
        %vm871 = vcmask 27648
        %872 = vst.msk [vmem:[%s297] sm:$0xf] %vm871, %v807
        %873 = vst.msk [vmem:[%s297 + $0x4] sm:$0xf] %vm871, %v808
        %874 = vst.msk [vmem:[%s297 + $0x8] sm:$0xf] %vm871, %v809
        %875 = vst.msk [vmem:[%s297 + $0xc] sm:$0xf] %vm871, %v810
        %876 = vst.msk [vmem:[%s297 + $0x10] sm:$0xf] %vm871, %v811
        %877 = vst.msk [vmem:[%s297 + $0x14] sm:$0xf] %vm871, %v812
        %878 = vst.msk [vmem:[%s297 + $0x18] sm:$0xf] %vm871, %v813
        %879 = vst.msk [vmem:[%s297 + $0x1c] sm:$0xf] %vm871, %v814
        %880 = vst.msk [vmem:[%s297 + $0x20] sm:$0xf] %vm871, %v815
        %881 = vst.msk [vmem:[%s297 + $0x24] sm:$0xf] %vm871, %v816
        %882 = vst.msk [vmem:[%s297 + $0x28] sm:$0xf] %vm871, %v817
        %883 = vst.msk [vmem:[%s297 + $0x2c] sm:$0xf] %vm871, %v818
        %884 = vst.msk [vmem:[%s297 + $0x30] sm:$0xf] %vm871, %v819
        %885 = vst.msk [vmem:[%s297 + $0x34] sm:$0xf] %vm871, %v820
        %886 = vst.msk [vmem:[%s297 + $0x38] sm:$0xf] %vm871, %v821
        %887 = vst.msk [vmem:[%s297 + $0x3c] sm:$0xf] %vm871, %v822
        %888 = vst.msk [vmem:[%s297 + $0x40] sm:$0xf] %vm871, %v823
        %889 = vst.msk [vmem:[%s297 + $0x44] sm:$0xf] %vm871, %v824
        %890 = vst.msk [vmem:[%s297 + $0x48] sm:$0xf] %vm871, %v825
        %891 = vst.msk [vmem:[%s297 + $0x4c] sm:$0xf] %vm871, %v826
        %892 = vst.msk [vmem:[%s297 + $0x50] sm:$0xf] %vm871, %v827
        %893 = vst.msk [vmem:[%s297 + $0x54] sm:$0xf] %vm871, %v828
        %894 = vst.msk [vmem:[%s297 + $0x58] sm:$0xf] %vm871, %v829
        %895 = vst.msk [vmem:[%s297 + $0x5c] sm:$0xf] %vm871, %v830
        %896 = vst.msk [vmem:[%s297 + $0x60] sm:$0xf] %vm871, %v831
        %897 = vst.msk [vmem:[%s297 + $0x64] sm:$0xf] %vm871, %v832
        %898 = vst.msk [vmem:[%s297 + $0x68] sm:$0xf] %vm871, %v833
        %899 = vst.msk [vmem:[%s297 + $0x6c] sm:$0xf] %vm871, %v834
        %900 = vst.msk [vmem:[%s297 + $0x70] sm:$0xf] %vm871, %v835
        %901 = vst.msk [vmem:[%s297 + $0x74] sm:$0xf] %vm871, %v836
        %902 = vst.msk [vmem:[%s297 + $0x78] sm:$0xf] %vm871, %v837
        %903 = vst.msk [vmem:[%s297 + $0x7c] sm:$0xf] %vm871, %v838
        %v904 = vunpack.c.l.bf16 %v743
        %v905 = vunpack.c.h.bf16 %v743
        %v906 = vunpack.c.l.bf16 %v744
        %v907 = vunpack.c.h.bf16 %v744
        %v908 = vunpack.c.l.bf16 %v745
        %v909 = vunpack.c.h.bf16 %v745
        %v910 = vunpack.c.l.bf16 %v746
        %v911 = vunpack.c.h.bf16 %v746
        %v912 = vunpack.c.l.bf16 %v747
        %v913 = vunpack.c.h.bf16 %v747
        %v914 = vunpack.c.l.bf16 %v748
        %v915 = vunpack.c.h.bf16 %v748
        %v916 = vunpack.c.l.bf16 %v749
        %v917 = vunpack.c.h.bf16 %v749
        %v918 = vunpack.c.l.bf16 %v750
        %v919 = vunpack.c.h.bf16 %v750
        %v920 = vunpack.c.l.bf16 %v751
        %v921 = vunpack.c.h.bf16 %v751
        %v922 = vunpack.c.l.bf16 %v752
        %v923 = vunpack.c.h.bf16 %v752
        %v924 = vunpack.c.l.bf16 %v753
        %v925 = vunpack.c.h.bf16 %v753
        %v926 = vunpack.c.l.bf16 %v754
        %v927 = vunpack.c.h.bf16 %v754
        %v928 = vunpack.c.l.bf16 %v755
        %v929 = vunpack.c.h.bf16 %v755
        %v930 = vunpack.c.l.bf16 %v756
        %v931 = vunpack.c.h.bf16 %v756
        %v932 = vunpack.c.l.bf16 %v757
        %v933 = vunpack.c.h.bf16 %v757
        %v934 = vunpack.c.l.bf16 %v758
        %v935 = vunpack.c.h.bf16 %v758
        %v936 = vsel %vm457, %v904, 0.0
        %v937 = vsel %vm457, %v905, 0.0
        %v938 = vadd.f32 %v936, %v937
        %v939 = vsel %vm457, %v906, 0.0
        %v940 = vadd.f32 %v938, %v939
        %v941 = vsel %vm457, %v907, 0.0
        %v942 = vadd.f32 %v940, %v941
        %v943 = vsel %vm457, %v908, 0.0
        %v944 = vadd.f32 %v942, %v943
        %v945 = vsel %vm457, %v909, 0.0
        %v946 = vadd.f32 %v944, %v945
        %v947 = vsel %vm457, %v910, 0.0
        %v948 = vadd.f32 %v946, %v947
        %v949 = vsel %vm457, %v911, 0.0
        %v950 = vadd.f32 %v948, %v949
        %v951 = vsel %vm457, %v912, 0.0
        %v952 = vadd.f32 %v950, %v951
        %v953 = vsel %vm457, %v913, 0.0
        %v954 = vadd.f32 %v952, %v953
        %v955 = vsel %vm457, %v914, 0.0
        %v956 = vadd.f32 %v954, %v955
        %v957 = vsel %vm457, %v915, 0.0
        %v958 = vadd.f32 %v956, %v957
        %v959 = vsel %vm457, %v916, 0.0
        %v960 = vadd.f32 %v958, %v959
        %v961 = vsel %vm457, %v917, 0.0
        %v962 = vadd.f32 %v960, %v961
        %v963 = vsel %vm457, %v918, 0.0
        %v964 = vadd.f32 %v962, %v963
        %v965 = vsel %vm457, %v919, 0.0
        %v966 = vadd.f32 %v964, %v965
        %v967 = vsel %vm457, %v920, 0.0
        %v968 = vadd.f32 %v966, %v967
        %v969 = vsel %vm457, %v921, 0.0
        %v970 = vadd.f32 %v968, %v969
        %v971 = vsel %vm457, %v922, 0.0
        %v972 = vadd.f32 %v970, %v971
        %v973 = vsel %vm457, %v923, 0.0
        %v974 = vadd.f32 %v972, %v973
        %v975 = vsel %vm457, %v924, 0.0
        %v976 = vadd.f32 %v974, %v975
        %v977 = vsel %vm457, %v925, 0.0
        %v978 = vadd.f32 %v976, %v977
        %v979 = vsel %vm457, %v926, 0.0
        %v980 = vadd.f32 %v978, %v979
        %v981 = vsel %vm457, %v927, 0.0
        %v982 = vadd.f32 %v980, %v981
        %v983 = vsel %vm457, %v928, 0.0
        %v984 = vadd.f32 %v982, %v983
        %v985 = vsel %vm457, %v929, 0.0
        %v986 = vadd.f32 %v984, %v985
        %v987 = vsel %vm457, %v930, 0.0
        %v988 = vadd.f32 %v986, %v987
        %v989 = vsel %vm457, %v931, 0.0
        %v990 = vadd.f32 %v988, %v989
        %v991 = vsel %vm457, %v932, 0.0
        %v992 = vadd.f32 %v990, %v991
        %v993 = vsel %vm457, %v933, 0.0
        %v994 = vadd.f32 %v992, %v993
        %v995 = vsel %vm457, %v934, 0.0
        %v996 = vadd.f32 %v994, %v995
        %v997 = vsel %vm457, %v935, 0.0
        %v998 = vadd.f32 %v996, %v997
        %v999 = vrot.slane %v998, 4
        %v1000 = vadd.f32 %v998, %v999
        %v1001 = vrot.slane %v1000, 2
        %v1002 = vadd.f32 %v1000, %v1001
        %v1003 = vrot.slane %v1002, 1
        %v1004 = vadd.f32 %v1002, %v1003
        %v1005 = vadd.f32 %v1004, 0.0
        %v1006 = vmul.f32 %v904, %v904
        %v1007 = vmul.f32 %v905, %v905
        %v1008 = vmul.f32 %v906, %v906
        %v1009 = vmul.f32 %v907, %v907
        %v1010 = vmul.f32 %v908, %v908
        %v1011 = vmul.f32 %v909, %v909
        %v1012 = vmul.f32 %v910, %v910
        %v1013 = vmul.f32 %v911, %v911
        %v1014 = vmul.f32 %v912, %v912
        %v1015 = vmul.f32 %v913, %v913
        %v1016 = vmul.f32 %v914, %v914
        %v1017 = vmul.f32 %v915, %v915
        %v1018 = vmul.f32 %v916, %v916
        %v1019 = vmul.f32 %v917, %v917
        %v1020 = vmul.f32 %v918, %v918
        %v1021 = vmul.f32 %v919, %v919
        %v1022 = vmul.f32 %v920, %v920
        %v1023 = vmul.f32 %v921, %v921
        %v1024 = vmul.f32 %v922, %v922
        %v1025 = vmul.f32 %v923, %v923
        %v1026 = vmul.f32 %v924, %v924
        %v1027 = vmul.f32 %v925, %v925
        %v1028 = vmul.f32 %v926, %v926
        %v1029 = vmul.f32 %v927, %v927
        %v1030 = vmul.f32 %v928, %v928
        %v1031 = vmul.f32 %v929, %v929
        %v1032 = vmul.f32 %v930, %v930
        %v1033 = vmul.f32 %v931, %v931
        %v1034 = vmul.f32 %v932, %v932
        %v1035 = vmul.f32 %v933, %v933
        %v1036 = vmul.f32 %v934, %v934
        %v1037 = vmul.f32 %v935, %v935
        %v1038 = vsel %vm457, %v1006, 0.0
        %v1039 = vsel %vm457, %v1007, 0.0
        %v1040 = vadd.f32 %v1038, %v1039
        %v1041 = vsel %vm457, %v1008, 0.0
        %v1042 = vadd.f32 %v1040, %v1041
        %v1043 = vsel %vm457, %v1009, 0.0
        %v1044 = vadd.f32 %v1042, %v1043
        %v1045 = vsel %vm457, %v1010, 0.0
        %v1046 = vadd.f32 %v1044, %v1045
        %v1047 = vsel %vm457, %v1011, 0.0
        %v1048 = vadd.f32 %v1046, %v1047
        %v1049 = vsel %vm457, %v1012, 0.0
        %v1050 = vadd.f32 %v1048, %v1049
        %v1051 = vsel %vm457, %v1013, 0.0
        %v1052 = vadd.f32 %v1050, %v1051
        %v1053 = vsel %vm457, %v1014, 0.0
        %v1054 = vadd.f32 %v1052, %v1053
        %v1055 = vsel %vm457, %v1015, 0.0
        %v1056 = vadd.f32 %v1054, %v1055
        %v1057 = vsel %vm457, %v1016, 0.0
        %v1058 = vadd.f32 %v1056, %v1057
        %v1059 = vsel %vm457, %v1017, 0.0
        %v1060 = vadd.f32 %v1058, %v1059
        %v1061 = vsel %vm457, %v1018, 0.0
        %v1062 = vadd.f32 %v1060, %v1061
        %v1063 = vsel %vm457, %v1019, 0.0
        %v1064 = vadd.f32 %v1062, %v1063
        %v1065 = vsel %vm457, %v1020, 0.0
        %v1066 = vadd.f32 %v1064, %v1065
        %v1067 = vsel %vm457, %v1021, 0.0
        %v1068 = vadd.f32 %v1066, %v1067
        %v1069 = vsel %vm457, %v1022, 0.0
        %v1070 = vadd.f32 %v1068, %v1069
        %v1071 = vsel %vm457, %v1023, 0.0
        %v1072 = vadd.f32 %v1070, %v1071
        %v1073 = vsel %vm457, %v1024, 0.0
        %v1074 = vadd.f32 %v1072, %v1073
        %v1075 = vsel %vm457, %v1025, 0.0
        %v1076 = vadd.f32 %v1074, %v1075
        %v1077 = vsel %vm457, %v1026, 0.0
        %v1078 = vadd.f32 %v1076, %v1077
        %v1079 = vsel %vm457, %v1027, 0.0
        %v1080 = vadd.f32 %v1078, %v1079
        %v1081 = vsel %vm457, %v1028, 0.0
        %v1082 = vadd.f32 %v1080, %v1081
        %v1083 = vsel %vm457, %v1029, 0.0
        %v1084 = vadd.f32 %v1082, %v1083
        %v1085 = vsel %vm457, %v1030, 0.0
        %v1086 = vadd.f32 %v1084, %v1085
        %v1087 = vsel %vm457, %v1031, 0.0
        %v1088 = vadd.f32 %v1086, %v1087
        %v1089 = vsel %vm457, %v1032, 0.0
        %v1090 = vadd.f32 %v1088, %v1089
        %v1091 = vsel %vm457, %v1033, 0.0
        %v1092 = vadd.f32 %v1090, %v1091
        %v1093 = vsel %vm457, %v1034, 0.0
        %v1094 = vadd.f32 %v1092, %v1093
        %v1095 = vsel %vm457, %v1035, 0.0
        %v1096 = vadd.f32 %v1094, %v1095
        %v1097 = vsel %vm457, %v1036, 0.0
        %v1098 = vadd.f32 %v1096, %v1097
        %v1099 = vsel %vm457, %v1037, 0.0
        %v1100 = vadd.f32 %v1098, %v1099
        %v1101 = vrot.slane %v1100, 4
        %v1102 = vadd.f32 %v1100, %v1101
        %v1103 = vrot.slane %v1102, 2
        %v1104 = vadd.f32 %v1102, %v1103
        %v1105 = vrot.slane %v1104, 1
        %v1106 = vadd.f32 %v1104, %v1105
        %v1107 = vadd.f32 %v1106, 0.0
        %vm1108 = vcmask 24576
        %1109 = vst.msk [vmem:[%s281] sm:$0x1] %vm1108, %v1005
        %1110 = vst.msk [vmem:[%s287] sm:$0x1] %vm1108, %v1107
        %p1111 = scmp.lt.s32.totalorder %s25, 1
        %s1112 = scalar_select %p1111, %s25, 1
        %s1113 = smul.addr %s1112, 32
        %s1114 = smul.addr %s1113, 4
        %s1115 = scalar_lea.vmem %s5, %s1114
        %s1116 = sand.u32 %s169, 1
        %s1117 = scalar_lea.sflag [#allocation4], %s1116
        %s1118 = sand.u32 %s169, 1
        %s1119 = scalar_lea.vmem [#allocation3], %s1118
        %s1120 = sand.u32 %s195, 1
        %s1121 = scalar_lea.sflag [#allocation6], %s1120
        %s1122 = sand.u32 %s195, 1
        %s1123 = scalar_lea.vmem [#allocation5], %s1122
        // Predicated region
        $region41: #{_lambda_.9} parent=39 // pred_check
          %p1124 = pneg %p153
        $region42: #{_lambda_.9} parent=39 // pred_check_branch
          %1126 = sbr.rel (%p1124) target = $region44
        $region43: #{_lambda_.9} parent=39 // pred_region
          _
        $region44: #{_lambda_.9} parent=39 // pred_fallthru
          _
        // Predicated region
        $region45: #{_lambda_.9} parent=39 // pred_check
          %p1127 = pneg %p179
        $region46: #{_lambda_.9} parent=39 // pred_check_branch
          %1129 = sbr.rel (%p1127) target = $region48
        $region47: #{_lambda_.9} parent=39 // pred_region
          %s1131 = ssub.s32 16, 16
          %1132 = vsyncadd %s1117, %s1131
          %s1133 = smul.addr %s25, 16
          %s1134 = scalar_lea.hbm %s6, %s1133
          %s1136 = sshll.u32 %s1119, 4
          %s1137 = int_to_ptr.vmem [resolvable:$true] %s1136
          %1139 = dma.vmem_to_hbm [thread:$0]  %s1137, 16, %s1134, %s1117
        $region48: #{_lambda_.9} parent=39 // pred_fallthru
          _
        // Predicated region
        $region49: #{_lambda_.9} parent=39 // pred_check
          %p1140 = pneg %p205
        $region50: #{_lambda_.9} parent=39 // pred_check_branch
          %1142 = sbr.rel (%p1140) target = $region52
        $region51: #{_lambda_.9} parent=39 // pred_region
          %s1144 = ssub.s32 16, 16
          %1145 = vsyncadd %s1121, %s1144
          %s1146 = smul.addr %s25, 16
          %s1147 = scalar_lea.hbm %s7, %s1146
          %s1149 = sshll.u32 %s1123, 4
          %s1150 = int_to_ptr.vmem [resolvable:$true] %s1149
          %1152 = dma.vmem_to_hbm [thread:$0]  %s1150, 16, %s1147, %s1121
        $region52: #{_lambda_.9} parent=39 // pred_fallthru
          _
      $region40: #{_lambda_.9} parent=5 // pred_fallthru
        _
      %p1153 = scmp.le.s32.totalorder 2, %s20
      // Predicated region
      $region53: #{_lambda_.9} parent=5 // pred_check
        %p1154 = pneg %p1153
      $region54: #{_lambda_.9} parent=5 // pred_check_branch
        %1156 = sbr.rel (%p1154) target = $region56
      $region55: #{_lambda_.9} parent=5 // pred_region
        %s1157 = ssub.s32 %s20, 2
        // Predicated region
        $region57: #{_lambda_.9} parent=55 // pred_check
          %p1158 = pneg %p159
        $region58: #{_lambda_.9} parent=55 // pred_check_branch
          %1160 = sbr.rel (%p1158) target = $region60
        $region59: #{_lambda_.9} parent=55 // pred_region
          %p1161 = scmp.lt.s32.totalorder %s26, 1
          %s1162 = scalar_select %p1161, %s26, 1
          %s1163 = smul.addr %s1162, 32
          %s1164 = smul.addr %s1163, 4
          %s1165 = scalar_lea.vmem %s5, %s1164
        $region60: #{_lambda_.9} parent=55 // pred_fallthru
          _
        // Predicated region
        $region61: #{_lambda_.9} parent=55 // pred_check
          %p1166 = pneg %p185
        $region62: #{_lambda_.9} parent=55 // pred_check_branch
          %1168 = sbr.rel (%p1166) target = $region64
        $region63: #{_lambda_.9} parent=55 // pred_region
          %s1169 = sand.u32 %s170, 1
          %s1170 = scalar_lea.sflag [#allocation4], %s1169
          %s1171 = sand.u32 %s170, 1
          %s1172 = scalar_lea.vmem [#allocation3], %s1171
          %1173 = dma.done %s1170, 16
        $region64: #{_lambda_.9} parent=55 // pred_fallthru
          _
        // Predicated region
        $region65: #{_lambda_.9} parent=55 // pred_check
          %p1174 = pneg %p211
        $region66: #{_lambda_.9} parent=55 // pred_check_branch
          %1176 = sbr.rel (%p1174) target = $region68
        $region67: #{_lambda_.9} parent=55 // pred_region
          %s1177 = sand.u32 %s196, 1
          %s1178 = scalar_lea.sflag [#allocation6], %s1177
          %s1179 = sand.u32 %s196, 1
          %s1180 = scalar_lea.vmem [#allocation5], %s1179
          %1181 = dma.done %s1178, 16
        $region68: #{_lambda_.9} parent=55 // pred_fallthru
          _
      $region56: #{_lambda_.9} parent=5 // pred_fallthru
        _
    $region6: #{_lambda_.9} parent=1 // loop_footer
      %s24 = sadd.s32 1, %s20
    $region7: #{_lambda_.9} parent=1 // loop_footer_branch
      %19 = sbr.rel target = $region3
    $region8: #{_lambda_.9} parent=1 // loop_exit
      _
    %1182 = vsyncpa [#allocation4], 1
    %s1183 = scalar_lea.sflag [#allocation4], 1
    %1184 = vsyncpa %s1183, 1
    %1185 = vsyncpa [#allocation6], 1
    %s1186 = scalar_lea.sflag [#allocation6], 1
    %1187 = vsyncpa %s1186, 1

// kernel: _lambda_.12
$region0: #{_lambda_.12}
  #allocation0 [shape = 'u32[]', space=smem, size = 0x4, offset = 0x4, fixed_abs, tag = 'smem constant byte address 0x4 - core index']
  #allocation1 [shape = 'u32[144,128]{1,0:T(1,128)}', space=vmem, size = 0x12000, scoped, tag = 'internal scratch']
  %s0 = inlined_call_operand.vmem [shape: bf16[2,1024], index: 0, kind: input, shape index: {}]
  %s1 = inlined_call_operand.vmem [shape: bf16[2,1024], index: 1, kind: input, shape index: {}]
  %s2 = inlined_call_operand.vmem [shape: f32[1,1024], index: 2, kind: input, shape index: {}]
  %s3 = inlined_call_operand.vmem [shape: f32[1,1024], index: 3, kind: input, shape index: {}]
  %s4 = inlined_call_operand.vmem [shape: f32[1,1024], index: 4, kind: input, shape index: {}]
  %s5 = inlined_call_operand.vmem [shape: f32[1,1024], index: 5, kind: input, shape index: {}]
  %s6 = inlined_call_operand.vmem [shape: bf16[2,1024], index: 6, kind: output, shape index: {0}]
  %s7 = inlined_call_operand.vmem [shape: f32[1,1,1024], index: 7, kind: output, shape index: {1}]
  %s8 = inlined_call_operand.vmem [shape: f32[1,1,1024], index: 8, kind: output, shape index: {2}]
  %9 = xla_tuple %s6, %s7, %s8
  %s10 = sld [smem:[#allocation0]]
  $region50: #{_lambda_.12} parent=0
    _
  %s12 = ssub.s32 1, %s10
  %s13 = scalar_select 0, %s12, %s10
  // Predicated region
  $region2: #{_lambda_.12} parent=0 // pred_check
    _
  $region3: #{_lambda_.12} parent=0 // pred_check_branch
    %15 = sbr.rel (0) target = $region5
  $region4: #{_lambda_.12} parent=0 // pred_region
    _
  $region5: #{_lambda_.12} parent=0 // pred_fallthru
    _
  // Predicated region
  $region6: #{_lambda_.12} parent=0 // pred_check
    _
  $region7: #{_lambda_.12} parent=0 // pred_check_branch
    %17 = sbr.rel (0) target = $region9
  $region8: #{_lambda_.12} parent=0 // pred_region
    _
  $region9: #{_lambda_.12} parent=0 // pred_fallthru
    _
  // Predicated region
  $region10: #{_lambda_.12} parent=0 // pred_check
    _
  $region11: #{_lambda_.12} parent=0 // pred_check_branch
    %19 = sbr.rel (0) target = $region13
  $region12: #{_lambda_.12} parent=0 // pred_region
    _
  $region13: #{_lambda_.12} parent=0 // pred_fallthru
    _
  // Predicated region
  $region14: #{_lambda_.12} parent=0 // pred_check
    _
  $region15: #{_lambda_.12} parent=0 // pred_check_branch
    %21 = sbr.rel (0) target = $region17
  $region16: #{_lambda_.12} parent=0 // pred_region
    _
  $region17: #{_lambda_.12} parent=0 // pred_fallthru
    _
  // Predicated region
  $region18: #{_lambda_.12} parent=0 // pred_check
    _
  $region19: #{_lambda_.12} parent=0 // pred_check_branch
    %23 = sbr.rel (0) target = $region21
  $region20: #{_lambda_.12} parent=0 // pred_region
    _
  $region21: #{_lambda_.12} parent=0 // pred_fallthru
    _
  // Predicated region
  $region22: #{_lambda_.12} parent=0 // pred_check
    _
  $region23: #{_lambda_.12} parent=0 // pred_check_branch
    %25 = sbr.rel (0) target = $region25
  $region24: #{_lambda_.12} parent=0 // pred_region
    _
  $region25: #{_lambda_.12} parent=0 // pred_fallthru
    _
  %v26 = vld [vmem:[%s0] sm:$0xff]
  %v27 = vunpack.c.l.bf16 %v26
  %v28 = vunpack.c.h.bf16 %v26
  %v29 = vld [vmem:[%s2] sm:$0xff]
  %v31 = vlaneseq
  %v32 = vshrl.u32 %v31, 7
  %v33 = vsub.s32 0, %v32
  %v34 = vrot.slane %v29, %v33
  %v35 = vlaneseq
  %v36 = vshrl.u32 %v35, 7
  %v37 = vsub.s32 1, %v36
  %v38 = vrot.slane %v29, %v37
  %v39 = vlaneseq
  %v40 = vshrl.u32 %v39, 7
  %v41 = vsub.s32 2, %v40
  %v42 = vrot.slane %v29, %v41
  %v43 = vlaneseq
  %v44 = vshrl.u32 %v43, 7
  %v45 = vsub.s32 3, %v44
  %v46 = vrot.slane %v29, %v45
  %v47 = vlaneseq
  %v48 = vshrl.u32 %v47, 7
  %v49 = vsub.s32 4, %v48
  %v50 = vrot.slane %v29, %v49
  %v51 = vlaneseq
  %v52 = vshrl.u32 %v51, 7
  %v53 = vsub.s32 5, %v52
  %v54 = vrot.slane %v29, %v53
  %v55 = vlaneseq
  %v56 = vshrl.u32 %v55, 7
  %v57 = vsub.s32 6, %v56
  %v58 = vrot.slane %v29, %v57
  %v59 = vlaneseq
  %v60 = vshrl.u32 %v59, 7
  %v61 = vsub.s32 7, %v60
  %v62 = vrot.slane %v29, %v61
  %v63 = vcombine.low %v34, %v38
  %v64 = vcombine.low %v42, %v46
  %v66 = vunpack.c.l.s4 1983009808
  %v67 = vunpack.c.0.s8 %v66
  %v68 = vlaneseq
  %v69 = vshrl.u32 %v68, 7
  %v70 = vsub.s32 %v67, %v69
  %v71 = vrot.slane %v63, %v70
  %v73 = vunpack.c.l.s4 1983009808
  %v74 = vunpack.c.0.s8 %v73
  %v75 = vlaneseq
  %v76 = vshrl.u32 %v75, 7
  %v77 = vsub.s32 %v74, %v76
  %v78 = vrot.slane %v64, %v77
  %v79 = vcombine.low %v71, %v78
  %v80 = vcombine.low %v50, %v54
  %v81 = vcombine.low %v58, %v62
  %v83 = vunpack.c.l.s4 1983009808
  %v84 = vunpack.c.0.s8 %v83
  %v85 = vlaneseq
  %v86 = vshrl.u32 %v85, 7
  %v87 = vsub.s32 %v84, %v86
  %v88 = vrot.slane %v80, %v87
  %v90 = vunpack.c.l.s4 1983009808
  %v91 = vunpack.c.0.s8 %v90
  %v92 = vlaneseq
  %v93 = vshrl.u32 %v92, 7
  %v94 = vsub.s32 %v91, %v93
  %v95 = vrot.slane %v81, %v94
  %v96 = vcombine.low %v88, %v95
  %v99 = vmul.f32 %v27, %v79
  %v100 = vmul.f32 %v28, %v96
  %v101 = vld [vmem:[%s4] sm:$0xff]
  %v103 = vlaneseq
  %v104 = vshrl.u32 %v103, 7
  %v105 = vsub.s32 0, %v104
  %v106 = vrot.slane %v101, %v105
  %v107 = vlaneseq
  %v108 = vshrl.u32 %v107, 7
  %v109 = vsub.s32 1, %v108
  %v110 = vrot.slane %v101, %v109
  %v111 = vlaneseq
  %v112 = vshrl.u32 %v111, 7
  %v113 = vsub.s32 2, %v112
  %v114 = vrot.slane %v101, %v113
  %v115 = vlaneseq
  %v116 = vshrl.u32 %v115, 7
  %v117 = vsub.s32 3, %v116
  %v118 = vrot.slane %v101, %v117
  %v119 = vlaneseq
  %v120 = vshrl.u32 %v119, 7
  %v121 = vsub.s32 4, %v120
  %v122 = vrot.slane %v101, %v121
  %v123 = vlaneseq
  %v124 = vshrl.u32 %v123, 7
  %v125 = vsub.s32 5, %v124
  %v126 = vrot.slane %v101, %v125
  %v127 = vlaneseq
  %v128 = vshrl.u32 %v127, 7
  %v129 = vsub.s32 6, %v128
  %v130 = vrot.slane %v101, %v129
  %v131 = vlaneseq
  %v132 = vshrl.u32 %v131, 7
  %v133 = vsub.s32 7, %v132
  %v134 = vrot.slane %v101, %v133
  %v135 = vcombine.low %v106, %v110
  %v136 = vcombine.low %v114, %v118
  %v138 = vunpack.c.l.s4 1983009808
  %v139 = vunpack.c.0.s8 %v138
  %v140 = vlaneseq
  %v141 = vshrl.u32 %v140, 7
  %v142 = vsub.s32 %v139, %v141
  %v143 = vrot.slane %v135, %v142
  %v145 = vunpack.c.l.s4 1983009808
  %v146 = vunpack.c.0.s8 %v145
  %v147 = vlaneseq
  %v148 = vshrl.u32 %v147, 7
  %v149 = vsub.s32 %v146, %v148
  %v150 = vrot.slane %v136, %v149
  %v151 = vcombine.low %v143, %v150
  %v152 = vcombine.low %v122, %v126
  %v153 = vcombine.low %v130, %v134
  %v155 = vunpack.c.l.s4 1983009808
  %v156 = vunpack.c.0.s8 %v155
  %v157 = vlaneseq
  %v158 = vshrl.u32 %v157, 7
  %v159 = vsub.s32 %v156, %v158
  %v160 = vrot.slane %v152, %v159
  %v162 = vunpack.c.l.s4 1983009808
  %v163 = vunpack.c.0.s8 %v162
  %v164 = vlaneseq
  %v165 = vshrl.u32 %v164, 7
  %v166 = vsub.s32 %v163, %v165
  %v167 = vrot.slane %v153, %v166
  %v168 = vcombine.low %v160, %v167
  %v171 = vadd.f32 %v99, %v151
  %v172 = vadd.f32 %v100, %v168
  %v173 = vld [vmem:[%s1] sm:$0xff]
  %v174 = vunpack.c.l.bf16 %v173
  %v175 = vunpack.c.h.bf16 %v173
  %v176 = vld [vmem:[%s3] sm:$0xff]
  %v178 = vlaneseq
  %v179 = vshrl.u32 %v178, 7
  %v180 = vsub.s32 0, %v179
  %v181 = vrot.slane %v176, %v180
  %v182 = vlaneseq
  %v183 = vshrl.u32 %v182, 7
  %v184 = vsub.s32 1, %v183
  %v185 = vrot.slane %v176, %v184
  %v186 = vlaneseq
  %v187 = vshrl.u32 %v186, 7
  %v188 = vsub.s32 2, %v187
  %v189 = vrot.slane %v176, %v188
  %v190 = vlaneseq
  %v191 = vshrl.u32 %v190, 7
  %v192 = vsub.s32 3, %v191
  %v193 = vrot.slane %v176, %v192
  %v194 = vlaneseq
  %v195 = vshrl.u32 %v194, 7
  %v196 = vsub.s32 4, %v195
  %v197 = vrot.slane %v176, %v196
  %v198 = vlaneseq
  %v199 = vshrl.u32 %v198, 7
  %v200 = vsub.s32 5, %v199
  %v201 = vrot.slane %v176, %v200
  %v202 = vlaneseq
  %v203 = vshrl.u32 %v202, 7
  %v204 = vsub.s32 6, %v203
  %v205 = vrot.slane %v176, %v204
  %v206 = vlaneseq
  %v207 = vshrl.u32 %v206, 7
  %v208 = vsub.s32 7, %v207
  %v209 = vrot.slane %v176, %v208
  %v210 = vcombine.low %v181, %v185
  %v211 = vcombine.low %v189, %v193
  %v213 = vunpack.c.l.s4 1983009808
  %v214 = vunpack.c.0.s8 %v213
  %v215 = vlaneseq
  %v216 = vshrl.u32 %v215, 7
  %v217 = vsub.s32 %v214, %v216
  %v218 = vrot.slane %v210, %v217
  %v220 = vunpack.c.l.s4 1983009808
  %v221 = vunpack.c.0.s8 %v220
  %v222 = vlaneseq
  %v223 = vshrl.u32 %v222, 7
  %v224 = vsub.s32 %v221, %v223
  %v225 = vrot.slane %v211, %v224
  %v226 = vcombine.low %v218, %v225
  %v227 = vcombine.low %v197, %v201
  %v228 = vcombine.low %v205, %v209
  %v230 = vunpack.c.l.s4 1983009808
  %v231 = vunpack.c.0.s8 %v230
  %v232 = vlaneseq
  %v233 = vshrl.u32 %v232, 7
  %v234 = vsub.s32 %v231, %v233
  %v235 = vrot.slane %v227, %v234
  %v237 = vunpack.c.l.s4 1983009808
  %v238 = vunpack.c.0.s8 %v237
  %v239 = vlaneseq
  %v240 = vshrl.u32 %v239, 7
  %v241 = vsub.s32 %v238, %v240
  %v242 = vrot.slane %v228, %v241
  %v243 = vcombine.low %v235, %v242
  %v246 = vmul.f32 %v174, %v226
  %v247 = vmul.f32 %v175, %v243
  %v248 = vadd.f32 %v171, %v246
  %v249 = vadd.f32 %v172, %v247
  %v250 = vld [vmem:[%s5] sm:$0xff]
  %v252 = vlaneseq
  %v253 = vshrl.u32 %v252, 7
  %v254 = vsub.s32 0, %v253
  %v255 = vrot.slane %v250, %v254
  %v256 = vlaneseq
  %v257 = vshrl.u32 %v256, 7
  %v258 = vsub.s32 1, %v257
  %v259 = vrot.slane %v250, %v258
  %v260 = vlaneseq
  %v261 = vshrl.u32 %v260, 7
  %v262 = vsub.s32 2, %v261
  %v263 = vrot.slane %v250, %v262
  %v264 = vlaneseq
  %v265 = vshrl.u32 %v264, 7
  %v266 = vsub.s32 3, %v265
  %v267 = vrot.slane %v250, %v266
  %v268 = vlaneseq
  %v269 = vshrl.u32 %v268, 7
  %v270 = vsub.s32 4, %v269
  %v271 = vrot.slane %v250, %v270
  %v272 = vlaneseq
  %v273 = vshrl.u32 %v272, 7
  %v274 = vsub.s32 5, %v273
  %v275 = vrot.slane %v250, %v274
  %v276 = vlaneseq
  %v277 = vshrl.u32 %v276, 7
  %v278 = vsub.s32 6, %v277
  %v279 = vrot.slane %v250, %v278
  %v280 = vlaneseq
  %v281 = vshrl.u32 %v280, 7
  %v282 = vsub.s32 7, %v281
  %v283 = vrot.slane %v250, %v282
  %v284 = vcombine.low %v255, %v259
  %v285 = vcombine.low %v263, %v267
  %v287 = vunpack.c.l.s4 1983009808
  %v288 = vunpack.c.0.s8 %v287
  %v289 = vlaneseq
  %v290 = vshrl.u32 %v289, 7
  %v291 = vsub.s32 %v288, %v290
  %v292 = vrot.slane %v284, %v291
  %v294 = vunpack.c.l.s4 1983009808
  %v295 = vunpack.c.0.s8 %v294
  %v296 = vlaneseq
  %v297 = vshrl.u32 %v296, 7
  %v298 = vsub.s32 %v295, %v297
  %v299 = vrot.slane %v285, %v298
  %v300 = vcombine.low %v292, %v299
  %v301 = vcombine.low %v271, %v275
  %v302 = vcombine.low %v279, %v283
  %v304 = vunpack.c.l.s4 1983009808
  %v305 = vunpack.c.0.s8 %v304
  %v306 = vlaneseq
  %v307 = vshrl.u32 %v306, 7
  %v308 = vsub.s32 %v305, %v307
  %v309 = vrot.slane %v301, %v308
  %v311 = vunpack.c.l.s4 1983009808
  %v312 = vunpack.c.0.s8 %v311
  %v313 = vlaneseq
  %v314 = vshrl.u32 %v313, 7
  %v315 = vsub.s32 %v312, %v314
  %v316 = vrot.slane %v302, %v315
  %v317 = vcombine.low %v309, %v316
  %v320 = vadd.f32 %v248, %v300
  %v321 = vadd.f32 %v249, %v317
  %v324 = vcombine.high %v320, %v320
  %v326 = vunpack.c.l.s4 1983009808
  %v327 = vunpack.c.0.s8 %v326
  %v328 = vlaneseq
  %v329 = vshrl.u32 %v328, 7
  %v330 = vsub.s32 %v327, %v329
  %v331 = vrot.slane %v320, %v330
  %v333 = vunpack.c.l.s4 1983009808
  %v334 = vunpack.c.0.s8 %v333
  %v335 = vlaneseq
  %v336 = vshrl.u32 %v335, 7
  %v337 = vsub.s32 %v334, %v336
  %v338 = vrot.slane %v324, %v337
  %v339 = vcombine.high %v331, %v331
  %v340 = vcombine.high %v338, %v338
  %v341 = vcombine.high %v321, %v321
  %v343 = vunpack.c.l.s4 1983009808
  %v344 = vunpack.c.0.s8 %v343
  %v345 = vlaneseq
  %v346 = vshrl.u32 %v345, 7
  %v347 = vsub.s32 %v344, %v346
  %v348 = vrot.slane %v321, %v347
  %v350 = vunpack.c.l.s4 1983009808
  %v351 = vunpack.c.0.s8 %v350
  %v352 = vlaneseq
  %v353 = vshrl.u32 %v352, 7
  %v354 = vsub.s32 %v351, %v353
  %v355 = vrot.slane %v341, %v354
  %v356 = vcombine.high %v348, %v348
  %v357 = vcombine.high %v355, %v355
  %v366 = vpack.c.bf16 %v331, %v331
  %v367 = vpack.c.bf16 %v339, %v339
  %v368 = vpack.c.bf16 %v338, %v338
  %v369 = vpack.c.bf16 %v340, %v340
  %v370 = vpack.c.bf16 %v348, %v348
  %v371 = vpack.c.bf16 %v356, %v356
  %v372 = vpack.c.bf16 %v355, %v355
  %v373 = vpack.c.bf16 %v357, %v357
  %v382 = vcombine.low %v366, %v367
  %v383 = vcombine.low %v368, %v369
  %v384 = vcombine.low %v370, %v371
  %v385 = vcombine.low %v372, %v373
  %v387 = vunpack.c.l.s4 1966171168
  %v388 = vunpack.c.0.s8 %v387
  %v389 = vlaneseq
  %v390 = vshrl.u32 %v389, 7
  %v391 = vsub.s32 %v388, %v390
  %v392 = vrot.slane %v382, %v391
  %v394 = vunpack.c.l.s4 1966171168
  %v395 = vunpack.c.0.s8 %v394
  %v396 = vlaneseq
  %v397 = vshrl.u32 %v396, 7
  %v398 = vsub.s32 %v395, %v397
  %v399 = vrot.slane %v383, %v398
  %v401 = vunpack.c.l.s4 1966171168
  %v402 = vunpack.c.0.s8 %v401
  %v403 = vlaneseq
  %v404 = vshrl.u32 %v403, 7
  %v405 = vsub.s32 %v402, %v404
  %v406 = vrot.slane %v384, %v405
  %v408 = vunpack.c.l.s4 1966171168
  %v409 = vunpack.c.0.s8 %v408
  %v410 = vlaneseq
  %v411 = vshrl.u32 %v410, 7
  %v412 = vsub.s32 %v409, %v411
  %v413 = vrot.slane %v385, %v412
  %v414 = vcombine.low %v392, %v399
  %v415 = vcombine.low %v406, %v413
  %v417 = vunpack.c.l.s4 1966171168
  %v418 = vunpack.c.0.s8 %v417
  %v419 = vlaneseq
  %v420 = vshrl.u32 %v419, 7
  %v421 = vsub.s32 %v418, %v420
  %v422 = vrot.slane %v414, %v421
  %v424 = vunpack.c.l.s4 1966171168
  %v425 = vunpack.c.0.s8 %v424
  %v426 = vlaneseq
  %v427 = vshrl.u32 %v426, 7
  %v428 = vsub.s32 %v425, %v427
  %v429 = vrot.slane %v415, %v428
  %v430 = vcombine.low %v422, %v429
  %432 = vst [vmem:[%s6] sm:$0xff] %v430
  %v433 = vunpack.c.l.bf16 %v366
  %v434 = vunpack.c.l.bf16 %v367
  %v435 = vunpack.c.l.bf16 %v368
  %v436 = vunpack.c.l.bf16 %v369
  %v437 = vunpack.c.l.bf16 %v370
  %v438 = vunpack.c.l.bf16 %v371
  %v439 = vunpack.c.l.bf16 %v372
  %v440 = vunpack.c.l.bf16 %v373
  %vm441 = vcmask 1041408
  %v442 = vsel %vm441, %v433, 0.0
  %v443 = vrot.slane %v442, 4
  %v444 = vadd.f32 %v442, %v443
  %v445 = vrot.slane %v444, 2
  %v446 = vadd.f32 %v444, %v445
  %v447 = vrot.slane %v446, 1
  %v448 = vadd.f32 %v446, %v447
  %v449 = vsel %vm441, %v434, 0.0
  %v450 = vrot.slane %v449, 4
  %v451 = vadd.f32 %v449, %v450
  %v452 = vrot.slane %v451, 2
  %v453 = vadd.f32 %v451, %v452
  %v454 = vrot.slane %v453, 1
  %v455 = vadd.f32 %v453, %v454
  %v456 = vsel %vm441, %v435, 0.0
  %v457 = vrot.slane %v456, 4
  %v458 = vadd.f32 %v456, %v457
  %v459 = vrot.slane %v458, 2
  %v460 = vadd.f32 %v458, %v459
  %v461 = vrot.slane %v460, 1
  %v462 = vadd.f32 %v460, %v461
  %v463 = vsel %vm441, %v436, 0.0
  %v464 = vrot.slane %v463, 4
  %v465 = vadd.f32 %v463, %v464
  %v466 = vrot.slane %v465, 2
  %v467 = vadd.f32 %v465, %v466
  %v468 = vrot.slane %v467, 1
  %v469 = vadd.f32 %v467, %v468
  %v470 = vsel %vm441, %v437, 0.0
  %v471 = vrot.slane %v470, 4
  %v472 = vadd.f32 %v470, %v471
  %v473 = vrot.slane %v472, 2
  %v474 = vadd.f32 %v472, %v473
  %v475 = vrot.slane %v474, 1
  %v476 = vadd.f32 %v474, %v475
  %v477 = vsel %vm441, %v438, 0.0
  %v478 = vrot.slane %v477, 4
  %v479 = vadd.f32 %v477, %v478
  %v480 = vrot.slane %v479, 2
  %v481 = vadd.f32 %v479, %v480
  %v482 = vrot.slane %v481, 1
  %v483 = vadd.f32 %v481, %v482
  %v484 = vsel %vm441, %v439, 0.0
  %v485 = vrot.slane %v484, 4
  %v486 = vadd.f32 %v484, %v485
  %v487 = vrot.slane %v486, 2
  %v488 = vadd.f32 %v486, %v487
  %v489 = vrot.slane %v488, 1
  %v490 = vadd.f32 %v488, %v489
  %v491 = vsel %vm441, %v440, 0.0
  %v492 = vrot.slane %v491, 4
  %v493 = vadd.f32 %v491, %v492
  %v494 = vrot.slane %v493, 2
  %v495 = vadd.f32 %v493, %v494
  %v496 = vrot.slane %v495, 1
  %v497 = vadd.f32 %v495, %v496
  %v506 = vcombine.low %v448, %v455
  %v507 = vcombine.low %v462, %v469
  %v508 = vcombine.low %v476, %v483
  %v509 = vcombine.low %v490, %v497
  %v511 = vunpack.c.l.s4 1966171168
  %v512 = vunpack.c.0.s8 %v511
  %v513 = vlaneseq
  %v514 = vshrl.u32 %v513, 7
  %v515 = vsub.s32 %v512, %v514
  %v516 = vrot.slane %v506, %v515
  %v518 = vunpack.c.l.s4 1966171168
  %v519 = vunpack.c.0.s8 %v518
  %v520 = vlaneseq
  %v521 = vshrl.u32 %v520, 7
  %v522 = vsub.s32 %v519, %v521
  %v523 = vrot.slane %v507, %v522
  %v525 = vunpack.c.l.s4 1966171168
  %v526 = vunpack.c.0.s8 %v525
  %v527 = vlaneseq
  %v528 = vshrl.u32 %v527, 7
  %v529 = vsub.s32 %v526, %v528
  %v530 = vrot.slane %v508, %v529
  %v532 = vunpack.c.l.s4 1966171168
  %v533 = vunpack.c.0.s8 %v532
  %v534 = vlaneseq
  %v535 = vshrl.u32 %v534, 7
  %v536 = vsub.s32 %v533, %v535
  %v537 = vrot.slane %v509, %v536
  %v538 = vcombine.low %v516, %v523
  %v539 = vcombine.low %v530, %v537
  %v541 = vunpack.c.l.s4 1966171168
  %v542 = vunpack.c.0.s8 %v541
  %v543 = vlaneseq
  %v544 = vshrl.u32 %v543, 7
  %v545 = vsub.s32 %v542, %v544
  %v546 = vrot.slane %v538, %v545
  %v548 = vunpack.c.l.s4 1966171168
  %v549 = vunpack.c.0.s8 %v548
  %v550 = vlaneseq
  %v551 = vshrl.u32 %v550, 7
  %v552 = vsub.s32 %v549, %v551
  %v553 = vrot.slane %v539, %v552
  %v554 = vcombine.low %v546, %v553
  %556 = vst [vmem:[%s7] sm:$0xff] %v554
  %v557 = vmul.f32 %v433, %v433
  %v558 = vmul.f32 %v434, %v434
  %v559 = vmul.f32 %v435, %v435
  %v560 = vmul.f32 %v436, %v436
  %v561 = vmul.f32 %v437, %v437
  %v562 = vmul.f32 %v438, %v438
  %v563 = vmul.f32 %v439, %v439
  %v564 = vmul.f32 %v440, %v440
  %v565 = vsel %vm441, %v557, 0.0
  %v566 = vrot.slane %v565, 4
  %v567 = vadd.f32 %v565, %v566
  %v568 = vrot.slane %v567, 2
  %v569 = vadd.f32 %v567, %v568
  %v570 = vrot.slane %v569, 1
  %v571 = vadd.f32 %v569, %v570
  %v572 = vsel %vm441, %v558, 0.0
  %v573 = vrot.slane %v572, 4
  %v574 = vadd.f32 %v572, %v573
  %v575 = vrot.slane %v574, 2
  %v576 = vadd.f32 %v574, %v575
  %v577 = vrot.slane %v576, 1
  %v578 = vadd.f32 %v576, %v577
  %v579 = vsel %vm441, %v559, 0.0
  %v580 = vrot.slane %v579, 4
  %v581 = vadd.f32 %v579, %v580
  %v582 = vrot.slane %v581, 2
  %v583 = vadd.f32 %v581, %v582
  %v584 = vrot.slane %v583, 1
  %v585 = vadd.f32 %v583, %v584
  %v586 = vsel %vm441, %v560, 0.0
  %v587 = vrot.slane %v586, 4
  %v588 = vadd.f32 %v586, %v587
  %v589 = vrot.slane %v588, 2
  %v590 = vadd.f32 %v588, %v589
  %v591 = vrot.slane %v590, 1
  %v592 = vadd.f32 %v590, %v591
  %v593 = vsel %vm441, %v561, 0.0
  %v594 = vrot.slane %v593, 4
  %v595 = vadd.f32 %v593, %v594
  %v596 = vrot.slane %v595, 2
  %v597 = vadd.f32 %v595, %v596
  %v598 = vrot.slane %v597, 1
  %v599 = vadd.f32 %v597, %v598
  %v600 = vsel %vm441, %v562, 0.0
  %v601 = vrot.slane %v600, 4
  %v602 = vadd.f32 %v600, %v601
  %v603 = vrot.slane %v602, 2
  %v604 = vadd.f32 %v602, %v603
  %v605 = vrot.slane %v604, 1
  %v606 = vadd.f32 %v604, %v605
  %v607 = vsel %vm441, %v563, 0.0
  %v608 = vrot.slane %v607, 4
  %v609 = vadd.f32 %v607, %v608
  %v610 = vrot.slane %v609, 2
  %v611 = vadd.f32 %v609, %v610
  %v612 = vrot.slane %v611, 1
  %v613 = vadd.f32 %v611, %v612
  %v614 = vsel %vm441, %v564, 0.0
  %v615 = vrot.slane %v614, 4
  %v616 = vadd.f32 %v614, %v615
  %v617 = vrot.slane %v616, 2
  %v618 = vadd.f32 %v616, %v617
  %v619 = vrot.slane %v618, 1
  %v620 = vadd.f32 %v618, %v619
  %v629 = vcombine.low %v571, %v578
  %v630 = vcombine.low %v585, %v592
  %v631 = vcombine.low %v599, %v606
  %v632 = vcombine.low %v613, %v620
  %v634 = vunpack.c.l.s4 1966171168
  %v635 = vunpack.c.0.s8 %v634
  %v636 = vlaneseq
  %v637 = vshrl.u32 %v636, 7
  %v638 = vsub.s32 %v635, %v637
  %v639 = vrot.slane %v629, %v638
  %v641 = vunpack.c.l.s4 1966171168
  %v642 = vunpack.c.0.s8 %v641
  %v643 = vlaneseq
  %v644 = vshrl.u32 %v643, 7
  %v645 = vsub.s32 %v642, %v644
  %v646 = vrot.slane %v630, %v645
  %v648 = vunpack.c.l.s4 1966171168
  %v649 = vunpack.c.0.s8 %v648
  %v650 = vlaneseq
  %v651 = vshrl.u32 %v650, 7
  %v652 = vsub.s32 %v649, %v651
  %v653 = vrot.slane %v631, %v652
  %v655 = vunpack.c.l.s4 1966171168
  %v656 = vunpack.c.0.s8 %v655
  %v657 = vlaneseq
  %v658 = vshrl.u32 %v657, 7
  %v659 = vsub.s32 %v656, %v658
  %v660 = vrot.slane %v632, %v659
  %v661 = vcombine.low %v639, %v646
  %v662 = vcombine.low %v653, %v660
  %v664 = vunpack.c.l.s4 1966171168
  %v665 = vunpack.c.0.s8 %v664
  %v666 = vlaneseq
  %v667 = vshrl.u32 %v666, 7
  %v668 = vsub.s32 %v665, %v667
  %v669 = vrot.slane %v661, %v668
  %v671 = vunpack.c.l.s4 1966171168
  %v672 = vunpack.c.0.s8 %v671
  %v673 = vlaneseq
  %v674 = vshrl.u32 %v673, 7
  %v675 = vsub.s32 %v672, %v674
  %v676 = vrot.slane %v662, %v675
  %v677 = vcombine.low %v669, %v676
  %679 = vst [vmem:[%s8] sm:$0xff] %v677
  // Predicated region
  $region26: #{_lambda_.12} parent=0 // pred_check
    _
  $region27: #{_lambda_.12} parent=0 // pred_check_branch
    %681 = sbr.rel (0) target = $region29
  $region28: #{_lambda_.12} parent=0 // pred_region
    _
  $region29: #{_lambda_.12} parent=0 // pred_fallthru
    _
  // Predicated region
  $region30: #{_lambda_.12} parent=0 // pred_check
    _
  $region31: #{_lambda_.12} parent=0 // pred_check_branch
    %683 = sbr.rel (0) target = $region33
  $region32: #{_lambda_.12} parent=0 // pred_region
    _
  $region33: #{_lambda_.12} parent=0 // pred_fallthru
    _
  // Predicated region
  $region34: #{_lambda_.12} parent=0 // pred_check
    _
  $region35: #{_lambda_.12} parent=0 // pred_check_branch
    %685 = sbr.rel (0) target = $region37
  $region36: #{_lambda_.12} parent=0 // pred_region
    _
  $region37: #{_lambda_.12} parent=0 // pred_fallthru
    _
  // Predicated region
  $region38: #{_lambda_.12} parent=0 // pred_check
    _
  $region39: #{_lambda_.12} parent=0 // pred_check_branch
    %687 = sbr.rel (0) target = $region41
  $region40: #{_lambda_.12} parent=0 // pred_region
    _
  $region41: #{_lambda_.12} parent=0 // pred_fallthru
    _
  // Predicated region
  $region42: #{_lambda_.12} parent=0 // pred_check
    _
  $region43: #{_lambda_.12} parent=0 // pred_check_branch
    %689 = sbr.rel (0) target = $region45
  $region44: #{_lambda_.12} parent=0 // pred_region
    _
  $region45: #{_lambda_.12} parent=0 // pred_fallthru
    _
  // Predicated region
  $region46: #{_lambda_.12} parent=0 // pred_check
    _
  $region47: #{_lambda_.12} parent=0 // pred_check_branch
    %691 = sbr.rel (0) target = $region49
  $region48: #{_lambda_.12} parent=0 // pred_region
    _
  $region49: #{_lambda_.12} parent=0 // pred_fallthru
    _

// kernel: _lambda_.10
$region0: #{_lambda_.10}
  #allocation0 [shape = 'u32[]', space=smem, size = 0x4, offset = 0x4, fixed_abs, tag = 'smem constant byte address 0x4 - core index']
  #allocation1 [shape = 'u32[144,128]{1,0:T(1,128)}', space=vmem, size = 0x12000, scoped, tag = 'internal scratch']
  #allocation2 [shape = 'bf16[18,18,4]{2,1,0:T(8,128)(2,1)}', space=vmem, size = 0x1b000, scoped, tag = 'scratch operand']
  %s0 = inlined_call_operand.vmem [shape: bf16[2,16,16,4], index: 0, kind: input, shape index: {}]
  %s1 = inlined_call_operand.vmem [shape: f32[1,4], index: 1, kind: input, shape index: {}]
  %s2 = inlined_call_operand.vmem [shape: f32[1,4], index: 2, kind: input, shape index: {}]
  %s3 = inlined_call_operand.vmem [shape: bf16[36,4], index: 3, kind: input, shape index: {}]
  %s4 = inlined_call_operand.vmem [shape: f32[1,4], index: 4, kind: input, shape index: {}]
  %s5 = inlined_call_operand.vmem [shape: bf16[2,16,16,4], index: 5, kind: output, shape index: {0}]
  %s6 = inlined_call_operand.vmem [shape: f32[2,1,4], index: 6, kind: output, shape index: {1}]
  %s7 = inlined_call_operand.vmem [shape: f32[2,1,4], index: 7, kind: output, shape index: {2}]
  %8 = xla_tuple %s5, %s6, %s7
  %s9 = sld [smem:[#allocation0]]
  $region69: #{_lambda_.10} parent=0
    _
  %s11 = ssub.s32 1, %s9
  %s12 = scalar_select 0, %s11, %s9
  loop: start=0, step=1, limit=4
  $region2: #{_lambda_.10} parent=0 // loop_pre_header
    _
  $region3: #{_lambda_.10} parent=0 // loop_header
    %s14 = sphi 0, %s18
    %p15 = scmp.ge.s32.totalorder %s14, 4
    %s24 = sphi 0, %s26
    %s27 = sphi 0, %s24
    %s28 = sphi 0, %s27
    %s44 = sphi 0, %s28
    %s48 = sphi 0, %s48
    %s50 = sphi 0, %s48
    %s51 = sphi 0, %s50
    %s65 = sphi 0, %s51
    %s69 = sphi 0, %s69
    %s71 = sphi 0, %s69
    %s72 = sphi 0, %s71
    %s86 = sphi 0, %s72
    %s90 = sphi 0, %s90
    %s92 = sphi 0, %s90
    %s93 = sphi 0, %s92
    %s107 = sphi 0, %s93
    %s111 = sphi 0, %s111
    %s113 = sphi 0, %s111
    %s114 = sphi 0, %s113
    %s128 = sphi 0, %s114
    %s134 = sphi 0, %s136
    %s137 = sphi 0, %s134
    %s138 = sphi 0, %s137
    %s154 = sphi 0, %s138
    %s160 = sphi 0, %s162
    %s163 = sphi 0, %s160
    %s164 = sphi 0, %s163
    %s180 = sphi 0, %s164
    %s186 = sphi 0, %s188
    %s189 = sphi 0, %s186
    %s190 = sphi 0, %s189
    %s206 = sphi 0, %s190
  $region4: #{_lambda_.10} parent=0 // loop_header_branch
    %17 = sbr.rel (%p15) target = $region8
  $region5: #{_lambda_.10} parent=0 // loop_body
    %s19 = ssub.s32 %s14, 1
    %s20 = ssub.s32 %s14, 2
    %s21 = sadd.s32 %s14, 1
    %s22 = ssub.s32 %s14, %s21
    %p23 = scmp.eq.s32.totalorder %s22, 0
    %s25 = sadd.s32 %s24, 1
    %s26 = scalar_select %p23, %s24, %s25
    %p29 = pneg %p23
    %p30 = scmp.eq.s32.totalorder %s14, 1
    %p31 = por %p29, %p30
    %p32 = scmp.ne.s32.totalorder %s24, %s27
    %p33 = scmp.eq.s32.totalorder %s14, 0
    %p34 = por %p32, %p33
    %p35 = scmp.ne.s32.totalorder %s24, %s27
    %p36 = scmp.eq.s32.totalorder %s19, 1
    %p37 = por %p35, %p36
    %p38 = scmp.ne.s32.totalorder %s27, %s28
    %p39 = scmp.eq.s32.totalorder %s19, 0
    %p40 = por %p38, %p39
    %p41 = scmp.ne.s32.totalorder %s27, %s28
    %p42 = scmp.eq.s32.totalorder %s20, 1
    %p43 = por %p41, %p42
    %p45 = scmp.ne.s32.totalorder %s28, %s44
    %p46 = scmp.eq.s32.totalorder %s20, 0
    %p47 = por %p45, %p46
    %s49 = sadd.s32 %s48, 1
    %p52 = scmp.eq.s32.totalorder %s14, 1
    %p53 = scmp.ne.s32.totalorder %s48, %s50
    %p54 = scmp.eq.s32.totalorder %s14, 0
    %p55 = por %p53, %p54
    %p56 = scmp.ne.s32.totalorder %s48, %s50
    %p57 = scmp.eq.s32.totalorder %s19, 1
    %p58 = por %p56, %p57
    %p59 = scmp.ne.s32.totalorder %s50, %s51
    %p60 = scmp.eq.s32.totalorder %s19, 0
    %p61 = por %p59, %p60
    %p62 = scmp.ne.s32.totalorder %s50, %s51
    %p63 = scmp.eq.s32.totalorder %s20, 1
    %p64 = por %p62, %p63
    %p66 = scmp.ne.s32.totalorder %s51, %s65
    %p67 = scmp.eq.s32.totalorder %s20, 0
    %p68 = por %p66, %p67
    %s70 = sadd.s32 %s69, 1
    %p73 = scmp.eq.s32.totalorder %s14, 1
    %p74 = scmp.ne.s32.totalorder %s69, %s71
    %p75 = scmp.eq.s32.totalorder %s14, 0
    %p76 = por %p74, %p75
    %p77 = scmp.ne.s32.totalorder %s69, %s71
    %p78 = scmp.eq.s32.totalorder %s19, 1
    %p79 = por %p77, %p78
    %p80 = scmp.ne.s32.totalorder %s71, %s72
    %p81 = scmp.eq.s32.totalorder %s19, 0
    %p82 = por %p80, %p81
    %p83 = scmp.ne.s32.totalorder %s71, %s72
    %p84 = scmp.eq.s32.totalorder %s20, 1
    %p85 = por %p83, %p84
    %p87 = scmp.ne.s32.totalorder %s72, %s86
    %p88 = scmp.eq.s32.totalorder %s20, 0
    %p89 = por %p87, %p88
    %s91 = sadd.s32 %s90, 1
    %p94 = scmp.eq.s32.totalorder %s14, 1
    %p95 = scmp.ne.s32.totalorder %s90, %s92
    %p96 = scmp.eq.s32.totalorder %s14, 0
    %p97 = por %p95, %p96
    %p98 = scmp.ne.s32.totalorder %s90, %s92
    %p99 = scmp.eq.s32.totalorder %s19, 1
    %p100 = por %p98, %p99
    %p101 = scmp.ne.s32.totalorder %s92, %s93
    %p102 = scmp.eq.s32.totalorder %s19, 0
    %p103 = por %p101, %p102
    %p104 = scmp.ne.s32.totalorder %s92, %s93
    %p105 = scmp.eq.s32.totalorder %s20, 1
    %p106 = por %p104, %p105
    %p108 = scmp.ne.s32.totalorder %s93, %s107
    %p109 = scmp.eq.s32.totalorder %s20, 0
    %p110 = por %p108, %p109
    %s112 = sadd.s32 %s111, 1
    %p115 = scmp.eq.s32.totalorder %s14, 1
    %p116 = scmp.ne.s32.totalorder %s111, %s113
    %p117 = scmp.eq.s32.totalorder %s14, 0
    %p118 = por %p116, %p117
    %p119 = scmp.ne.s32.totalorder %s111, %s113
    %p120 = scmp.eq.s32.totalorder %s19, 1
    %p121 = por %p119, %p120
    %p122 = scmp.ne.s32.totalorder %s113, %s114
    %p123 = scmp.eq.s32.totalorder %s19, 0
    %p124 = por %p122, %p123
    %p125 = scmp.ne.s32.totalorder %s113, %s114
    %p126 = scmp.eq.s32.totalorder %s20, 1
    %p127 = por %p125, %p126
    %p129 = scmp.ne.s32.totalorder %s114, %s128
    %p130 = scmp.eq.s32.totalorder %s20, 0
    %p131 = por %p129, %p130
    %s132 = ssub.s32 %s14, %s21
    %p133 = scmp.eq.s32.totalorder %s132, 0
    %s135 = sadd.s32 %s134, 1
    %s136 = scalar_select %p133, %s134, %s135
    %p139 = pneg %p133
    %p140 = scmp.eq.s32.totalorder %s14, 1
    %p141 = por %p139, %p140
    %p142 = scmp.ne.s32.totalorder %s134, %s137
    %p143 = scmp.eq.s32.totalorder %s14, 0
    %p144 = por %p142, %p143
    %p145 = scmp.ne.s32.totalorder %s134, %s137
    %p146 = scmp.eq.s32.totalorder %s19, 1
    %p147 = por %p145, %p146
    %p148 = scmp.ne.s32.totalorder %s137, %s138
    %p149 = scmp.eq.s32.totalorder %s19, 0
    %p150 = por %p148, %p149
    %p151 = scmp.ne.s32.totalorder %s137, %s138
    %p152 = scmp.eq.s32.totalorder %s20, 1
    %p153 = por %p151, %p152
    %p155 = scmp.ne.s32.totalorder %s138, %s154
    %p156 = scmp.eq.s32.totalorder %s20, 0
    %p157 = por %p155, %p156
    %s158 = ssub.s32 %s14, %s21
    %p159 = scmp.eq.s32.totalorder %s158, 0
    %s161 = sadd.s32 %s160, 1
    %s162 = scalar_select %p159, %s160, %s161
    %p165 = pneg %p159
    %p166 = scmp.eq.s32.totalorder %s14, 1
    %p167 = por %p165, %p166
    %p168 = scmp.ne.s32.totalorder %s160, %s163
    %p169 = scmp.eq.s32.totalorder %s14, 0
    %p170 = por %p168, %p169
    %p171 = scmp.ne.s32.totalorder %s160, %s163
    %p172 = scmp.eq.s32.totalorder %s19, 1
    %p173 = por %p171, %p172
    %p174 = scmp.ne.s32.totalorder %s163, %s164
    %p175 = scmp.eq.s32.totalorder %s19, 0
    %p176 = por %p174, %p175
    %p177 = scmp.ne.s32.totalorder %s163, %s164
    %p178 = scmp.eq.s32.totalorder %s20, 1
    %p179 = por %p177, %p178
    %p181 = scmp.ne.s32.totalorder %s164, %s180
    %p182 = scmp.eq.s32.totalorder %s20, 0
    %p183 = por %p181, %p182
    %s184 = ssub.s32 %s14, %s21
    %p185 = scmp.eq.s32.totalorder %s184, 0
    %s187 = sadd.s32 %s186, 1
    %s188 = scalar_select %p185, %s186, %s187
    %p191 = pneg %p185
    %p192 = scmp.eq.s32.totalorder %s14, 1
    %p193 = por %p191, %p192
    %p194 = scmp.ne.s32.totalorder %s186, %s189
    %p195 = scmp.eq.s32.totalorder %s14, 0
    %p196 = por %p194, %p195
    %p197 = scmp.ne.s32.totalorder %s186, %s189
    %p198 = scmp.eq.s32.totalorder %s19, 1
    %p199 = por %p197, %p198
    %p200 = scmp.ne.s32.totalorder %s189, %s190
    %p201 = scmp.eq.s32.totalorder %s19, 0
    %p202 = por %p200, %p201
    %p203 = scmp.ne.s32.totalorder %s189, %s190
    %p204 = scmp.eq.s32.totalorder %s20, 1
    %p205 = por %p203, %p204
    %p207 = scmp.ne.s32.totalorder %s190, %s206
    %p208 = scmp.eq.s32.totalorder %s20, 0
    %p209 = por %p207, %p208
    %p210 = scmp.le.s32.totalorder 1, %s14
    %p211 = scmp.lt.s32.totalorder %s14, 3
    %p212 = pnand %p210, %p211
    %p213 = pneg %p212
    // Predicated region
    $region9: #{_lambda_.10} parent=5 // pred_check
      _
    $region10: #{_lambda_.10} parent=5 // pred_check_branch
      %215 = sbr.rel (%p212) target = $region12
    $region11: #{_lambda_.10} parent=5 // pred_region
      %s216 = ssub.s32 %s14, 1
      // Predicated region
      $region13: #{_lambda_.10} parent=11 // pred_check
        %p217 = pneg %p61
      $region14: #{_lambda_.10} parent=11 // pred_check_branch
        %219 = sbr.rel (%p217) target = $region16
      $region15: #{_lambda_.10} parent=11 // pred_region
        _
      $region16: #{_lambda_.10} parent=11 // pred_fallthru
        _
      // Predicated region
      $region17: #{_lambda_.10} parent=11 // pred_check
        %p220 = pneg %p82
      $region18: #{_lambda_.10} parent=11 // pred_check_branch
        %222 = sbr.rel (%p220) target = $region20
      $region19: #{_lambda_.10} parent=11 // pred_region
        _
      $region20: #{_lambda_.10} parent=11 // pred_fallthru
        _
      // Predicated region
      $region21: #{_lambda_.10} parent=11 // pred_check
        %p223 = pneg %p103
      $region22: #{_lambda_.10} parent=11 // pred_check_branch
        %225 = sbr.rel (%p223) target = $region24
      $region23: #{_lambda_.10} parent=11 // pred_region
        _
      $region24: #{_lambda_.10} parent=11 // pred_fallthru
        _
      // Predicated region
      $region25: #{_lambda_.10} parent=11 // pred_check
        %p226 = pneg %p124
      $region26: #{_lambda_.10} parent=11 // pred_check_branch
        %228 = sbr.rel (%p226) target = $region28
      $region27: #{_lambda_.10} parent=11 // pred_region
        _
      $region28: #{_lambda_.10} parent=11 // pred_fallthru
        _
    $region12: #{_lambda_.10} parent=5 // pred_fallthru
      _
    %p229 = scmp.lt.s32.totalorder %s14, 2
    // Predicated region
    $region29: #{_lambda_.10} parent=5 // pred_check
      %p230 = pneg %p229
    $region30: #{_lambda_.10} parent=5 // pred_check_branch
      %232 = sbr.rel (%p230) target = $region32
    $region31: #{_lambda_.10} parent=5 // pred_region
      // Predicated region
      $region33: #{_lambda_.10} parent=31 // pred_check
        %p233 = pneg %p34
      $region34: #{_lambda_.10} parent=31 // pred_check_branch
        %235 = sbr.rel (%p233) target = $region36
      $region35: #{_lambda_.10} parent=31 // pred_region
        %p236 = scmp.lt.s32.totalorder %s14, 1
        %s237 = scalar_select %p236, %s14, 1
        %s238 = smul.addr %s237, 32
        %s239 = smul.addr %s238, 4
        %s240 = scalar_lea.vmem %s0, %s239
      $region36: #{_lambda_.10} parent=31 // pred_fallthru
        _
    $region32: #{_lambda_.10} parent=5 // pred_fallthru
      _
    %p241 = scmp.le.s32.totalorder 1, %s14
    %p242 = scmp.lt.s32.totalorder %s14, 3
    %p243 = pnand %p241, %p242
    %p244 = pneg %p243
    // Predicated region
    $region37: #{_lambda_.10} parent=5 // pred_check
      _
    $region38: #{_lambda_.10} parent=5 // pred_check_branch
      %246 = sbr.rel (%p243) target = $region40
    $region39: #{_lambda_.10} parent=5 // pred_region
      %s247 = ssub.s32 %s14, 1
      %p248 = scmp.lt.s32.totalorder %s19, 1
      %s249 = scalar_select %p248, %s19, 1
      %s250 = smul.addr %s249, 32
      %s251 = smul.addr %s250, 4
      %s252 = scalar_lea.vmem %s0, %s251
      %p253 = pneg %p40
      %p254 = pneg %p37
      %p255 = pneg %p61
      %p256 = pneg %p58
      %p257 = pneg %p82
      %p258 = pneg %p79
      %p259 = pneg %p103
      %p260 = pneg %p100
      %p261 = pneg %p124
      %p262 = pneg %p121
      %p263 = pneg %p150
      %p264 = pneg %p147
      %p265 = scmp.lt.s32.totalorder %s19, 1
      %s266 = scalar_select %p265, %s19, 1
      %s267 = smul.addr %s266, 32
      %s268 = smul.addr %s267, 4
      %s269 = scalar_lea.vmem %s5, %s268
      %p270 = pneg %p176
      %p271 = pneg %p173
      %p272 = scmp.lt.s32.totalorder %s19, 1
      %s273 = scalar_select %p272, %s19, 1
      %s274 = scalar_lea.vmem %s6, %s273
      %p275 = pneg %p202
      %p276 = pneg %p199
      %p277 = scmp.lt.s32.totalorder %s19, 1
      %s278 = scalar_select %p277, %s19, 1
      %s279 = scalar_lea.vmem %s7, %s278
      %p280 = scmp.lt.s32.totalorder %s19, 1
      %s281 = scalar_select %p280, %s19, 1
      %s282 = smul.addr %s281, 32
      %s283 = smul.addr %s282, 4
      %s284 = scalar_lea.vmem %s0, %s283
      %p285 = scmp.lt.s32.totalorder %s19, 1
      %s286 = scalar_select %p285, %s19, 1
      %s287 = smul.addr %s286, 32
      %s288 = smul.addr %s287, 4
      %s289 = scalar_lea.vmem %s5, %s288
      %p290 = scmp.lt.s32.totalorder %s19, 1
      %s291 = scalar_select %p290, %s19, 1
      %s292 = scalar_lea.vmem %s6, %s291
      %p293 = scmp.lt.s32.totalorder %s19, 1
      %s294 = scalar_select %p293, %s19, 1
      %s295 = scalar_lea.vmem %s7, %s294
      %v297 = vld [vmem:[%s284] sm:$0xf]
      %v298 = vld [vmem:[%s284 + $0x4] sm:$0xf]
      %v299 = vld [vmem:[%s284 + $0x8] sm:$0xf]
      %v300 = vld [vmem:[%s284 + $0xc] sm:$0xf]
      %v301 = vld [vmem:[%s284 + $0x10] sm:$0xf]
      %v302 = vld [vmem:[%s284 + $0x14] sm:$0xf]
      %v303 = vld [vmem:[%s284 + $0x18] sm:$0xf]
      %v304 = vld [vmem:[%s284 + $0x1c] sm:$0xf]
      %v305 = vld [vmem:[%s284 + $0x20] sm:$0xf]
      %v306 = vld [vmem:[%s284 + $0x24] sm:$0xf]
      %v307 = vld [vmem:[%s284 + $0x28] sm:$0xf]
      %v308 = vld [vmem:[%s284 + $0x2c] sm:$0xf]
      %v309 = vld [vmem:[%s284 + $0x30] sm:$0xf]
      %v310 = vld [vmem:[%s284 + $0x34] sm:$0xf]
      %v311 = vld [vmem:[%s284 + $0x38] sm:$0xf]
      %v312 = vld [vmem:[%s284 + $0x3c] sm:$0xf]
      %v313 = vld [vmem:[%s284 + $0x40] sm:$0xf]
      %v314 = vld [vmem:[%s284 + $0x44] sm:$0xf]
      %v315 = vld [vmem:[%s284 + $0x48] sm:$0xf]
      %v316 = vld [vmem:[%s284 + $0x4c] sm:$0xf]
      %v317 = vld [vmem:[%s284 + $0x50] sm:$0xf]
      %v318 = vld [vmem:[%s284 + $0x54] sm:$0xf]
      %v319 = vld [vmem:[%s284 + $0x58] sm:$0xf]
      %v320 = vld [vmem:[%s284 + $0x5c] sm:$0xf]
      %v321 = vld [vmem:[%s284 + $0x60] sm:$0xf]
      %v322 = vld [vmem:[%s284 + $0x64] sm:$0xf]
      %v323 = vld [vmem:[%s284 + $0x68] sm:$0xf]
      %v324 = vld [vmem:[%s284 + $0x6c] sm:$0xf]
      %v325 = vld [vmem:[%s284 + $0x70] sm:$0xf]
      %v326 = vld [vmem:[%s284 + $0x74] sm:$0xf]
      %v327 = vld [vmem:[%s284 + $0x78] sm:$0xf]
      %v328 = vld [vmem:[%s284 + $0x7c] sm:$0xf]
      %v329 = vunpack.c.l.bf16 %v297
      %v330 = vunpack.c.l.bf16 %v298
      %v331 = vunpack.c.l.bf16 %v299
      %v332 = vunpack.c.l.bf16 %v300
      %v333 = vunpack.c.l.bf16 %v301
      %v334 = vunpack.c.l.bf16 %v302
      %v335 = vunpack.c.l.bf16 %v303
      %v336 = vunpack.c.l.bf16 %v304
      %v337 = vunpack.c.l.bf16 %v305
      %v338 = vunpack.c.l.bf16 %v306
      %v339 = vunpack.c.l.bf16 %v307
      %v340 = vunpack.c.l.bf16 %v308
      %v341 = vunpack.c.l.bf16 %v309
      %v342 = vunpack.c.l.bf16 %v310
      %v343 = vunpack.c.l.bf16 %v311
      %v344 = vunpack.c.l.bf16 %v312
      %v345 = vunpack.c.l.bf16 %v313
      %v346 = vunpack.c.l.bf16 %v314
      %v347 = vunpack.c.l.bf16 %v315
      %v348 = vunpack.c.l.bf16 %v316
      %v349 = vunpack.c.l.bf16 %v317
      %v350 = vunpack.c.l.bf16 %v318
      %v351 = vunpack.c.l.bf16 %v319
      %v352 = vunpack.c.l.bf16 %v320
      %v353 = vunpack.c.l.bf16 %v321
      %v354 = vunpack.c.l.bf16 %v322
      %v355 = vunpack.c.l.bf16 %v323
      %v356 = vunpack.c.l.bf16 %v324
      %v357 = vunpack.c.l.bf16 %v325
      %v358 = vunpack.c.l.bf16 %v326
      %v359 = vunpack.c.l.bf16 %v327
      %v360 = vunpack.c.l.bf16 %v328
      %v361 = vld [vmem:[%s1] sm:$0x1]
      %v363 = vlaneseq
      %v364 = vshrl.u32 %v363, 7
      %v365 = vsub.s32 0, %v364
      %v366 = vrot.slane %v361, %v365
      %v368 = vmul.f32 %v329, %v366
      %v369 = vmul.f32 %v330, %v366
      %v370 = vmul.f32 %v331, %v366
      %v371 = vmul.f32 %v332, %v366
      %v372 = vmul.f32 %v333, %v366
      %v373 = vmul.f32 %v334, %v366
      %v374 = vmul.f32 %v335, %v366
      %v375 = vmul.f32 %v336, %v366
      %v376 = vmul.f32 %v337, %v366
      %v377 = vmul.f32 %v338, %v366
      %v378 = vmul.f32 %v339, %v366
      %v379 = vmul.f32 %v340, %v366
      %v380 = vmul.f32 %v341, %v366
      %v381 = vmul.f32 %v342, %v366
      %v382 = vmul.f32 %v343, %v366
      %v383 = vmul.f32 %v344, %v366
      %v384 = vmul.f32 %v345, %v366
      %v385 = vmul.f32 %v346, %v366
      %v386 = vmul.f32 %v347, %v366
      %v387 = vmul.f32 %v348, %v366
      %v388 = vmul.f32 %v349, %v366
      %v389 = vmul.f32 %v350, %v366
      %v390 = vmul.f32 %v351, %v366
      %v391 = vmul.f32 %v352, %v366
      %v392 = vmul.f32 %v353, %v366
      %v393 = vmul.f32 %v354, %v366
      %v394 = vmul.f32 %v355, %v366
      %v395 = vmul.f32 %v356, %v366
      %v396 = vmul.f32 %v357, %v366
      %v397 = vmul.f32 %v358, %v366
      %v398 = vmul.f32 %v359, %v366
      %v399 = vmul.f32 %v360, %v366
      %v400 = vld [vmem:[%s2] sm:$0x1]
      %v402 = vlaneseq
      %v403 = vshrl.u32 %v402, 7
      %v404 = vsub.s32 0, %v403
      %v405 = vrot.slane %v400, %v404
      %v407 = vadd.f32 %v368, %v405
      %v408 = vadd.f32 %v369, %v405
      %v409 = vadd.f32 %v370, %v405
      %v410 = vadd.f32 %v371, %v405
      %v411 = vadd.f32 %v372, %v405
      %v412 = vadd.f32 %v373, %v405
      %v413 = vadd.f32 %v374, %v405
      %v414 = vadd.f32 %v375, %v405
      %v415 = vadd.f32 %v376, %v405
      %v416 = vadd.f32 %v377, %v405
      %v417 = vadd.f32 %v378, %v405
      %v418 = vadd.f32 %v379, %v405
      %v419 = vadd.f32 %v380, %v405
      %v420 = vadd.f32 %v381, %v405
      %v421 = vadd.f32 %v382, %v405
      %v422 = vadd.f32 %v383, %v405
      %v423 = vadd.f32 %v384, %v405
      %v424 = vadd.f32 %v385, %v405
      %v425 = vadd.f32 %v386, %v405
      %v426 = vadd.f32 %v387, %v405
      %v427 = vadd.f32 %v388, %v405
      %v428 = vadd.f32 %v389, %v405
      %v429 = vadd.f32 %v390, %v405
      %v430 = vadd.f32 %v391, %v405
      %v431 = vadd.f32 %v392, %v405
      %v432 = vadd.f32 %v393, %v405
      %v433 = vadd.f32 %v394, %v405
      %v434 = vadd.f32 %v395, %v405
      %v435 = vadd.f32 %v396, %v405
      %v436 = vadd.f32 %v397, %v405
      %v437 = vadd.f32 %v398, %v405
      %v438 = vadd.f32 %v399, %v405
      %v439 = vpack.c.bf16 %v408, %v407
      %v440 = vpack.c.bf16 %v410, %v409
      %v441 = vpack.c.bf16 %v412, %v411
      %v442 = vpack.c.bf16 %v414, %v413
      %v443 = vpack.c.bf16 %v416, %v415
      %v444 = vpack.c.bf16 %v418, %v417
      %v445 = vpack.c.bf16 %v420, %v419
      %v446 = vpack.c.bf16 %v422, %v421
      %v447 = vpack.c.bf16 %v424, %v423
      %v448 = vpack.c.bf16 %v426, %v425
      %v449 = vpack.c.bf16 %v428, %v427
      %v450 = vpack.c.bf16 %v430, %v429
      %v451 = vpack.c.bf16 %v432, %v431
      %v452 = vpack.c.bf16 %v434, %v433
      %v453 = vpack.c.bf16 %v436, %v435
      %v454 = vpack.c.bf16 %v438, %v437
      %vm455 = vcmask 27648
      %456 = vst.msk [vmem:[#allocation2] sm:$0xf] %vm455, 0
      %457 = vst.msk [vmem:[#allocation2 + $0x4] sm:$0xf] %vm455, 0
      %vm458 = vcmask 24576
      %459 = vst.msk [vmem:[#allocation2 + $0x8] sm:$0x1] %vm458, 0
      %s460 = scalar_lea.vmem [#allocation2], 204
      %461 = vst.msk [vmem:[%s460] sm:$0xf] %vm455, 0
      %462 = vst.msk [vmem:[%s460 + $0x4] sm:$0xf] %vm455, 0
      %463 = vst.msk [vmem:[%s460 + $0x8] sm:$0x1] %vm458, 0
      %vm464 = vcmask 24576
      %vm465 = vsmask.f32 256
      %vm466 = vmand %vm464, %vm465
      %v467 = vld [vmem:[#allocation2] sm:$0x1]
      %v468 = vsel %vm466, 0, %v467
      %469 = vst [vmem:[#allocation2] sm:$0x1] %v468
      %v470 = vld [vmem:[#allocation2 + $0xc] sm:$0x1]
      %v471 = vsel %vm466, 0, %v470
      %472 = vst [vmem:[#allocation2 + $0xc] sm:$0x1] %v471
      %v473 = vld [vmem:[#allocation2 + $0x18] sm:$0x1]
      %v474 = vsel %vm466, 0, %v473
      %475 = vst [vmem:[#allocation2 + $0x18] sm:$0x1] %v474
      %v476 = vld [vmem:[#allocation2 + $0x24] sm:$0x1]
      %v477 = vsel %vm466, 0, %v476
      %478 = vst [vmem:[#allocation2 + $0x24] sm:$0x1] %v477
      %v479 = vld [vmem:[#allocation2 + $0x30] sm:$0x1]
      %v480 = vsel %vm466, 0, %v479
      %481 = vst [vmem:[#allocation2 + $0x30] sm:$0x1] %v480
      %v482 = vld [vmem:[#allocation2 + $0x3c] sm:$0x1]
      %v483 = vsel %vm466, 0, %v482
      %484 = vst [vmem:[#allocation2 + $0x3c] sm:$0x1] %v483
      %v485 = vld [vmem:[#allocation2 + $0x48] sm:$0x1]
      %v486 = vsel %vm466, 0, %v485
      %487 = vst [vmem:[#allocation2 + $0x48] sm:$0x1] %v486
      %v488 = vld [vmem:[#allocation2 + $0x54] sm:$0x1]
      %v489 = vsel %vm466, 0, %v488
      %490 = vst [vmem:[#allocation2 + $0x54] sm:$0x1] %v489
      %v491 = vld [vmem:[#allocation2 + $0x60] sm:$0x1]
      %v492 = vsel %vm466, 0, %v491
      %493 = vst [vmem:[#allocation2 + $0x60] sm:$0x1] %v492
      %v494 = vld [vmem:[#allocation2 + $0x6c] sm:$0x1]
      %v495 = vsel %vm466, 0, %v494
      %496 = vst [vmem:[#allocation2 + $0x6c] sm:$0x1] %v495
      %v497 = vld [vmem:[#allocation2 + $0x78] sm:$0x1]
      %v498 = vsel %vm466, 0, %v497
      %499 = vst [vmem:[#allocation2 + $0x78] sm:$0x1] %v498
      %v500 = vld [vmem:[#allocation2 + $0x84] sm:$0x1]
      %v501 = vsel %vm466, 0, %v500
      %502 = vst [vmem:[#allocation2 + $0x84] sm:$0x1] %v501
      %v503 = vld [vmem:[#allocation2 + $0x90] sm:$0x1]
      %v504 = vsel %vm466, 0, %v503
      %505 = vst [vmem:[#allocation2 + $0x90] sm:$0x1] %v504
      %v506 = vld [vmem:[#allocation2 + $0x9c] sm:$0x1]
      %v507 = vsel %vm466, 0, %v506
      %508 = vst [vmem:[#allocation2 + $0x9c] sm:$0x1] %v507
      %v509 = vld [vmem:[#allocation2 + $0xa8] sm:$0x1]
      %v510 = vsel %vm466, 0, %v509
      %511 = vst [vmem:[#allocation2 + $0xa8] sm:$0x1] %v510
      %v512 = vld [vmem:[#allocation2 + $0xb4] sm:$0x1]
      %v513 = vsel %vm466, 0, %v512
      %514 = vst [vmem:[#allocation2 + $0xb4] sm:$0x1] %v513
      %v515 = vld [vmem:[#allocation2 + $0xc0] sm:$0x1]
      %v516 = vsel %vm466, 0, %v515
      %517 = vst [vmem:[#allocation2 + $0xc0] sm:$0x1] %v516
      %v518 = vld [vmem:[#allocation2 + $0xcc] sm:$0x1]
      %v519 = vsel %vm466, 0, %v518
      %520 = vst [vmem:[#allocation2 + $0xcc] sm:$0x1] %v519
      %vm521 = vsmask.f32 7938
      %vm522 = vmand %vm464, %vm521
      %v523 = vld [vmem:[#allocation2 + $0x8] sm:$0x1]
      %v524 = vsel %vm522, 0, %v523
      %525 = vst [vmem:[#allocation2 + $0x8] sm:$0x1] %v524
      %v526 = vld [vmem:[#allocation2 + $0x14] sm:$0x1]
      %v527 = vsel %vm522, 0, %v526
      %528 = vst [vmem:[#allocation2 + $0x14] sm:$0x1] %v527
      %v529 = vld [vmem:[#allocation2 + $0x20] sm:$0x1]
      %v530 = vsel %vm522, 0, %v529
      %531 = vst [vmem:[#allocation2 + $0x20] sm:$0x1] %v530
      %v532 = vld [vmem:[#allocation2 + $0x2c] sm:$0x1]
      %v533 = vsel %vm522, 0, %v532
      %534 = vst [vmem:[#allocation2 + $0x2c] sm:$0x1] %v533
      %v535 = vld [vmem:[#allocation2 + $0x38] sm:$0x1]
      %v536 = vsel %vm522, 0, %v535
      %537 = vst [vmem:[#allocation2 + $0x38] sm:$0x1] %v536
      %v538 = vld [vmem:[#allocation2 + $0x44] sm:$0x1]
      %v539 = vsel %vm522, 0, %v538
      %540 = vst [vmem:[#allocation2 + $0x44] sm:$0x1] %v539
      %v541 = vld [vmem:[#allocation2 + $0x50] sm:$0x1]
      %v542 = vsel %vm522, 0, %v541
      %543 = vst [vmem:[#allocation2 + $0x50] sm:$0x1] %v542
      %v544 = vld [vmem:[#allocation2 + $0x5c] sm:$0x1]
      %v545 = vsel %vm522, 0, %v544
      %546 = vst [vmem:[#allocation2 + $0x5c] sm:$0x1] %v545
      %v547 = vld [vmem:[#allocation2 + $0x68] sm:$0x1]
      %v548 = vsel %vm522, 0, %v547
      %549 = vst [vmem:[#allocation2 + $0x68] sm:$0x1] %v548
      %v550 = vld [vmem:[#allocation2 + $0x74] sm:$0x1]
      %v551 = vsel %vm522, 0, %v550
      %552 = vst [vmem:[#allocation2 + $0x74] sm:$0x1] %v551
      %v553 = vld [vmem:[#allocation2 + $0x80] sm:$0x1]
      %v554 = vsel %vm522, 0, %v553
      %555 = vst [vmem:[#allocation2 + $0x80] sm:$0x1] %v554
      %v556 = vld [vmem:[#allocation2 + $0x8c] sm:$0x1]
      %v557 = vsel %vm522, 0, %v556
      %558 = vst [vmem:[#allocation2 + $0x8c] sm:$0x1] %v557
      %v559 = vld [vmem:[#allocation2 + $0x98] sm:$0x1]
      %v560 = vsel %vm522, 0, %v559
      %561 = vst [vmem:[#allocation2 + $0x98] sm:$0x1] %v560
      %v562 = vld [vmem:[#allocation2 + $0xa4] sm:$0x1]
      %v563 = vsel %vm522, 0, %v562
      %564 = vst [vmem:[#allocation2 + $0xa4] sm:$0x1] %v563
      %v565 = vld [vmem:[#allocation2 + $0xb0] sm:$0x1]
      %v566 = vsel %vm522, 0, %v565
      %567 = vst [vmem:[#allocation2 + $0xb0] sm:$0x1] %v566
      %v568 = vld [vmem:[#allocation2 + $0xbc] sm:$0x1]
      %v569 = vsel %vm522, 0, %v568
      %570 = vst [vmem:[#allocation2 + $0xbc] sm:$0x1] %v569
      %v571 = vld [vmem:[#allocation2 + $0xc8] sm:$0x1]
      %v572 = vsel %vm522, 0, %v571
      %573 = vst [vmem:[#allocation2 + $0xc8] sm:$0x1] %v572
      %v574 = vld [vmem:[#allocation2 + $0xd4] sm:$0x1]
      %v575 = vsel %vm522, 0, %v574
      %576 = vst [vmem:[#allocation2 + $0xd4] sm:$0x1] %v575
      %v593 = vunpack.c.l.b16 %v439
      %v594 = vunpack.c.h.b16 %v439
      %v595 = vunpack.c.l.b16 %v440
      %v596 = vunpack.c.h.b16 %v440
      %v597 = vunpack.c.l.b16 %v441
      %v598 = vunpack.c.h.b16 %v441
      %v599 = vunpack.c.l.b16 %v442
      %v600 = vunpack.c.h.b16 %v442
      %v601 = vunpack.c.l.b16 %v443
      %v602 = vunpack.c.h.b16 %v443
      %v603 = vunpack.c.l.b16 %v444
      %v604 = vunpack.c.h.b16 %v444
      %v605 = vunpack.c.l.b16 %v445
      %v606 = vunpack.c.h.b16 %v445
      %v607 = vunpack.c.l.b16 %v446
      %v608 = vunpack.c.h.b16 %v446
      %v609 = vunpack.c.l.b16 %v447
      %v610 = vunpack.c.h.b16 %v447
      %v611 = vunpack.c.l.b16 %v448
      %v612 = vunpack.c.h.b16 %v448
      %v613 = vunpack.c.l.b16 %v449
      %v614 = vunpack.c.h.b16 %v449
      %v615 = vunpack.c.l.b16 %v450
      %v616 = vunpack.c.h.b16 %v450
      %v617 = vunpack.c.l.b16 %v451
      %v618 = vunpack.c.h.b16 %v451
      %v619 = vunpack.c.l.b16 %v452
      %v620 = vunpack.c.h.b16 %v452
      %v621 = vunpack.c.l.b16 %v453
      %v622 = vunpack.c.h.b16 %v453
      %v623 = vunpack.c.l.b16 %v454
      %v624 = vunpack.c.h.b16 %v454
      %v625 = vpack.c.b16 %v593, %v593
      %v626 = vpack.c.b16 %v594, %v594
      %v627 = vpack.c.b16 %v595, %v595
      %v628 = vpack.c.b16 %v596, %v596
      %v629 = vpack.c.b16 %v597, %v597
      %v630 = vpack.c.b16 %v598, %v598
      %v631 = vpack.c.b16 %v599, %v599
      %v632 = vpack.c.b16 %v600, %v600
      %v633 = vpack.c.b16 %v601, %v601
      %v634 = vpack.c.b16 %v602, %v602
      %v635 = vpack.c.b16 %v603, %v603
      %v636 = vpack.c.b16 %v604, %v604
      %v637 = vpack.c.b16 %v605, %v605
      %v638 = vpack.c.b16 %v606, %v606
      %v639 = vpack.c.b16 %v607, %v607
      %v640 = vpack.c.b16 %v608, %v608
      %v641 = vpack.c.b16 %v609, %v609
      %v642 = vpack.c.b16 %v610, %v610
      %v643 = vpack.c.b16 %v611, %v611
      %v644 = vpack.c.b16 %v612, %v612
      %v645 = vpack.c.b16 %v613, %v613
      %v646 = vpack.c.b16 %v614, %v614
      %v647 = vpack.c.b16 %v615, %v615
      %v648 = vpack.c.b16 %v616, %v616
      %v649 = vpack.c.b16 %v617, %v617
      %v650 = vpack.c.b16 %v618, %v618
      %v651 = vpack.c.b16 %v619, %v619
      %v652 = vpack.c.b16 %v620, %v620
      %v653 = vpack.c.b16 %v621, %v621
      %v654 = vpack.c.b16 %v622, %v622
      %v655 = vpack.c.b16 %v623, %v623
      %v656 = vpack.c.b16 %v624, %v624
      %vm657 = vsmask.f32 4368
      %vm658 = vmor %vm465, %vm657
      %v660 = vshrl.u32 %v625, 16
      %v662 = vrot.slane %v660, 7
      %v663 = vshll.u32 %v625, 16
      %v665 = vor.u32 %v662, %v663
      %v666 = vrot.slane %v662, 4
      %v668 = vshrl.u32 %v626, 16
      %v670 = vrot.slane %v668, 7
      %v671 = vshll.u32 %v626, 16
      %v673 = vor.u32 %v670, %v671
      %v674 = vsel %vm658, %v666, %v673
      %v675 = vrot.slane %v670, 4
      %v677 = vshrl.u32 %v627, 16
      %v679 = vrot.slane %v677, 7
      %v680 = vshll.u32 %v627, 16
      %v682 = vor.u32 %v679, %v680
      %v683 = vrot.slane %v679, 4
      %v685 = vshrl.u32 %v628, 16
      %v687 = vrot.slane %v685, 7
      %v688 = vshll.u32 %v628, 16
      %v690 = vor.u32 %v687, %v688
      %v691 = vsel %vm658, %v683, %v690
      %v692 = vrot.slane %v687, 4
      %v694 = vshrl.u32 %v629, 16
      %v696 = vrot.slane %v694, 7
      %v697 = vshll.u32 %v629, 16
      %v699 = vor.u32 %v696, %v697
      %v700 = vrot.slane %v696, 4
      %v702 = vshrl.u32 %v630, 16
      %v704 = vrot.slane %v702, 7
      %v705 = vshll.u32 %v630, 16
      %v707 = vor.u32 %v704, %v705
      %v708 = vsel %vm658, %v700, %v707
      %v709 = vrot.slane %v704, 4
      %v711 = vshrl.u32 %v631, 16
      %v713 = vrot.slane %v711, 7
      %v714 = vshll.u32 %v631, 16
      %v716 = vor.u32 %v713, %v714
      %v717 = vrot.slane %v713, 4
      %v719 = vshrl.u32 %v632, 16
      %v721 = vrot.slane %v719, 7
      %v722 = vshll.u32 %v632, 16
      %v724 = vor.u32 %v721, %v722
      %v725 = vsel %vm658, %v717, %v724
      %v726 = vrot.slane %v721, 4
      %v728 = vshrl.u32 %v633, 16
      %v730 = vrot.slane %v728, 7
      %v731 = vshll.u32 %v633, 16
      %v733 = vor.u32 %v730, %v731
      %v734 = vrot.slane %v730, 4
      %v736 = vshrl.u32 %v634, 16
      %v738 = vrot.slane %v736, 7
      %v739 = vshll.u32 %v634, 16
      %v741 = vor.u32 %v738, %v739
      %v742 = vsel %vm658, %v734, %v741
      %v743 = vrot.slane %v738, 4
      %v745 = vshrl.u32 %v635, 16
      %v747 = vrot.slane %v745, 7
      %v748 = vshll.u32 %v635, 16
      %v750 = vor.u32 %v747, %v748
      %v751 = vrot.slane %v747, 4
      %v753 = vshrl.u32 %v636, 16
      %v755 = vrot.slane %v753, 7
      %v756 = vshll.u32 %v636, 16
      %v758 = vor.u32 %v755, %v756
      %v759 = vsel %vm658, %v751, %v758
      %v760 = vrot.slane %v755, 4
      %v762 = vshrl.u32 %v637, 16
      %v764 = vrot.slane %v762, 7
      %v765 = vshll.u32 %v637, 16
      %v767 = vor.u32 %v764, %v765
      %v768 = vrot.slane %v764, 4
      %v770 = vshrl.u32 %v638, 16
      %v772 = vrot.slane %v770, 7
      %v773 = vshll.u32 %v638, 16
      %v775 = vor.u32 %v772, %v773
      %v776 = vsel %vm658, %v768, %v775
      %v777 = vrot.slane %v772, 4
      %v779 = vshrl.u32 %v639, 16
      %v781 = vrot.slane %v779, 7
      %v782 = vshll.u32 %v639, 16
      %v784 = vor.u32 %v781, %v782
      %v785 = vrot.slane %v781, 4
      %v787 = vshrl.u32 %v640, 16
      %v789 = vrot.slane %v787, 7
      %v790 = vshll.u32 %v640, 16
      %v792 = vor.u32 %v789, %v790
      %v793 = vsel %vm658, %v785, %v792
      %v794 = vrot.slane %v789, 4
      %v796 = vshrl.u32 %v641, 16
      %v798 = vrot.slane %v796, 7
      %v799 = vshll.u32 %v641, 16
      %v801 = vor.u32 %v798, %v799
      %v802 = vrot.slane %v798, 4
      %v804 = vshrl.u32 %v642, 16
      %v806 = vrot.slane %v804, 7
      %v807 = vshll.u32 %v642, 16
      %v809 = vor.u32 %v806, %v807
      %v810 = vsel %vm658, %v802, %v809
      %v811 = vrot.slane %v806, 4
      %v813 = vshrl.u32 %v643, 16
      %v815 = vrot.slane %v813, 7
      %v816 = vshll.u32 %v643, 16
      %v818 = vor.u32 %v815, %v816
      %v819 = vrot.slane %v815, 4
      %v821 = vshrl.u32 %v644, 16
      %v823 = vrot.slane %v821, 7
      %v824 = vshll.u32 %v644, 16
      %v826 = vor.u32 %v823, %v824
      %v827 = vsel %vm658, %v819, %v826
      %v828 = vrot.slane %v823, 4
      %v830 = vshrl.u32 %v645, 16
      %v832 = vrot.slane %v830, 7
      %v833 = vshll.u32 %v645, 16
      %v835 = vor.u32 %v832, %v833
      %v836 = vrot.slane %v832, 4
      %v838 = vshrl.u32 %v646, 16
      %v840 = vrot.slane %v838, 7
      %v841 = vshll.u32 %v646, 16
      %v843 = vor.u32 %v840, %v841
      %v844 = vsel %vm658, %v836, %v843
      %v845 = vrot.slane %v840, 4
      %v847 = vshrl.u32 %v647, 16
      %v849 = vrot.slane %v847, 7
      %v850 = vshll.u32 %v647, 16
      %v852 = vor.u32 %v849, %v850
      %v853 = vrot.slane %v849, 4
      %v855 = vshrl.u32 %v648, 16
      %v857 = vrot.slane %v855, 7
      %v858 = vshll.u32 %v648, 16
      %v860 = vor.u32 %v857, %v858
      %v861 = vsel %vm658, %v853, %v860
      %v862 = vrot.slane %v857, 4
      %v864 = vshrl.u32 %v649, 16
      %v866 = vrot.slane %v864, 7
      %v867 = vshll.u32 %v649, 16
      %v869 = vor.u32 %v866, %v867
      %v870 = vrot.slane %v866, 4
      %v872 = vshrl.u32 %v650, 16
      %v874 = vrot.slane %v872, 7
      %v875 = vshll.u32 %v650, 16
      %v877 = vor.u32 %v874, %v875
      %v878 = vsel %vm658, %v870, %v877
      %v879 = vrot.slane %v874, 4
      %v881 = vshrl.u32 %v651, 16
      %v883 = vrot.slane %v881, 7
      %v884 = vshll.u32 %v651, 16
      %v886 = vor.u32 %v883, %v884
      %v887 = vrot.slane %v883, 4
      %v889 = vshrl.u32 %v652, 16
      %v891 = vrot.slane %v889, 7
      %v892 = vshll.u32 %v652, 16
      %v894 = vor.u32 %v891, %v892
      %v895 = vsel %vm658, %v887, %v894
      %v896 = vrot.slane %v891, 4
      %v898 = vshrl.u32 %v653, 16
      %v900 = vrot.slane %v898, 7
      %v901 = vshll.u32 %v653, 16
      %v903 = vor.u32 %v900, %v901
      %v904 = vrot.slane %v900, 4
      %v906 = vshrl.u32 %v654, 16
      %v908 = vrot.slane %v906, 7
      %v909 = vshll.u32 %v654, 16
      %v911 = vor.u32 %v908, %v909
      %v912 = vsel %vm658, %v904, %v911
      %v913 = vrot.slane %v908, 4
      %v915 = vshrl.u32 %v655, 16
      %v917 = vrot.slane %v915, 7
      %v918 = vshll.u32 %v655, 16
      %v920 = vor.u32 %v917, %v918
      %v921 = vrot.slane %v917, 4
      %v923 = vshrl.u32 %v656, 16
      %v925 = vrot.slane %v923, 7
      %v926 = vshll.u32 %v656, 16
      %v928 = vor.u32 %v925, %v926
      %v929 = vsel %vm658, %v921, %v928
      %v930 = vrot.slane %v925, 4
      %s979 = scalar_lea.vmem [#allocation2], 12
      %vm980 = vcmask 27648
      %vm981 = vmand %vm980, %vm521
      %v982 = vld [vmem:[%s979] sm:$0xf]
      %v983 = vsel %vm981, %v665, %v982
      %984 = vst [vmem:[%s979] sm:$0xf] %v983
      %985 = vst.msk [vmem:[%s979 + $0x4] sm:$0xf] %vm455, %v674
      %v986 = vld [vmem:[%s979 + $0x8] sm:$0x1]
      %v987 = vsel %vm466, %v675, %v986
      %988 = vst [vmem:[%s979 + $0x8] sm:$0x1] %v987
      %v989 = vld [vmem:[%s979 + $0xc] sm:$0xf]
      %v990 = vsel %vm981, %v682, %v989
      %991 = vst [vmem:[%s979 + $0xc] sm:$0xf] %v990
      %992 = vst.msk [vmem:[%s979 + $0x10] sm:$0xf] %vm455, %v691
      %v993 = vld [vmem:[%s979 + $0x14] sm:$0x1]
      %v994 = vsel %vm466, %v692, %v993
      %995 = vst [vmem:[%s979 + $0x14] sm:$0x1] %v994
      %v996 = vld [vmem:[%s979 + $0x18] sm:$0xf]
      %v997 = vsel %vm981, %v699, %v996
      %998 = vst [vmem:[%s979 + $0x18] sm:$0xf] %v997
      %999 = vst.msk [vmem:[%s979 + $0x1c] sm:$0xf] %vm455, %v708
      %v1000 = vld [vmem:[%s979 + $0x20] sm:$0x1]
      %v1001 = vsel %vm466, %v709, %v1000
      %1002 = vst [vmem:[%s979 + $0x20] sm:$0x1] %v1001
      %v1003 = vld [vmem:[%s979 + $0x24] sm:$0xf]
      %v1004 = vsel %vm981, %v716, %v1003
      %1005 = vst [vmem:[%s979 + $0x24] sm:$0xf] %v1004
      %1006 = vst.msk [vmem:[%s979 + $0x28] sm:$0xf] %vm455, %v725
      %v1007 = vld [vmem:[%s979 + $0x2c] sm:$0x1]
      %v1008 = vsel %vm466, %v726, %v1007
      %1009 = vst [vmem:[%s979 + $0x2c] sm:$0x1] %v1008
      %v1010 = vld [vmem:[%s979 + $0x30] sm:$0xf]
      %v1011 = vsel %vm981, %v733, %v1010
      %1012 = vst [vmem:[%s979 + $0x30] sm:$0xf] %v1011
      %1013 = vst.msk [vmem:[%s979 + $0x34] sm:$0xf] %vm455, %v742
      %v1014 = vld [vmem:[%s979 + $0x38] sm:$0x1]
      %v1015 = vsel %vm466, %v743, %v1014
      %1016 = vst [vmem:[%s979 + $0x38] sm:$0x1] %v1015
      %v1017 = vld [vmem:[%s979 + $0x3c] sm:$0xf]
      %v1018 = vsel %vm981, %v750, %v1017
      %1019 = vst [vmem:[%s979 + $0x3c] sm:$0xf] %v1018
      %1020 = vst.msk [vmem:[%s979 + $0x40] sm:$0xf] %vm455, %v759
      %v1021 = vld [vmem:[%s979 + $0x44] sm:$0x1]
      %v1022 = vsel %vm466, %v760, %v1021
      %1023 = vst [vmem:[%s979 + $0x44] sm:$0x1] %v1022
      %v1024 = vld [vmem:[%s979 + $0x48] sm:$0xf]
      %v1025 = vsel %vm981, %v767, %v1024
      %1026 = vst [vmem:[%s979 + $0x48] sm:$0xf] %v1025
      %1027 = vst.msk [vmem:[%s979 + $0x4c] sm:$0xf] %vm455, %v776
      %v1028 = vld [vmem:[%s979 + $0x50] sm:$0x1]
      %v1029 = vsel %vm466, %v777, %v1028
      %1030 = vst [vmem:[%s979 + $0x50] sm:$0x1] %v1029
      %v1031 = vld [vmem:[%s979 + $0x54] sm:$0xf]
      %v1032 = vsel %vm981, %v784, %v1031
      %1033 = vst [vmem:[%s979 + $0x54] sm:$0xf] %v1032
      %1034 = vst.msk [vmem:[%s979 + $0x58] sm:$0xf] %vm455, %v793
      %v1035 = vld [vmem:[%s979 + $0x5c] sm:$0x1]
      %v1036 = vsel %vm466, %v794, %v1035
      %1037 = vst [vmem:[%s979 + $0x5c] sm:$0x1] %v1036
      %v1038 = vld [vmem:[%s979 + $0x60] sm:$0xf]
      %v1039 = vsel %vm981, %v801, %v1038
      %1040 = vst [vmem:[%s979 + $0x60] sm:$0xf] %v1039
      %1041 = vst.msk [vmem:[%s979 + $0x64] sm:$0xf] %vm455, %v810
      %v1042 = vld [vmem:[%s979 + $0x68] sm:$0x1]
      %v1043 = vsel %vm466, %v811, %v1042
      %1044 = vst [vmem:[%s979 + $0x68] sm:$0x1] %v1043
      %v1045 = vld [vmem:[%s979 + $0x6c] sm:$0xf]
      %v1046 = vsel %vm981, %v818, %v1045
      %1047 = vst [vmem:[%s979 + $0x6c] sm:$0xf] %v1046
      %1048 = vst.msk [vmem:[%s979 + $0x70] sm:$0xf] %vm455, %v827
      %v1049 = vld [vmem:[%s979 + $0x74] sm:$0x1]
      %v1050 = vsel %vm466, %v828, %v1049
      %1051 = vst [vmem:[%s979 + $0x74] sm:$0x1] %v1050
      %v1052 = vld [vmem:[%s979 + $0x78] sm:$0xf]
      %v1053 = vsel %vm981, %v835, %v1052
      %1054 = vst [vmem:[%s979 + $0x78] sm:$0xf] %v1053
      %1055 = vst.msk [vmem:[%s979 + $0x7c] sm:$0xf] %vm455, %v844
      %v1056 = vld [vmem:[%s979 + $0x80] sm:$0x1]
      %v1057 = vsel %vm466, %v845, %v1056
      %1058 = vst [vmem:[%s979 + $0x80] sm:$0x1] %v1057
      %v1059 = vld [vmem:[%s979 + $0x84] sm:$0xf]
      %v1060 = vsel %vm981, %v852, %v1059
      %1061 = vst [vmem:[%s979 + $0x84] sm:$0xf] %v1060
      %1062 = vst.msk [vmem:[%s979 + $0x88] sm:$0xf] %vm455, %v861
      %v1063 = vld [vmem:[%s979 + $0x8c] sm:$0x1]
      %v1064 = vsel %vm466, %v862, %v1063
      %1065 = vst [vmem:[%s979 + $0x8c] sm:$0x1] %v1064
      %v1066 = vld [vmem:[%s979 + $0x90] sm:$0xf]
      %v1067 = vsel %vm981, %v869, %v1066
      %1068 = vst [vmem:[%s979 + $0x90] sm:$0xf] %v1067
      %1069 = vst.msk [vmem:[%s979 + $0x94] sm:$0xf] %vm455, %v878
      %v1070 = vld [vmem:[%s979 + $0x98] sm:$0x1]
      %v1071 = vsel %vm466, %v879, %v1070
      %1072 = vst [vmem:[%s979 + $0x98] sm:$0x1] %v1071
      %v1073 = vld [vmem:[%s979 + $0x9c] sm:$0xf]
      %v1074 = vsel %vm981, %v886, %v1073
      %1075 = vst [vmem:[%s979 + $0x9c] sm:$0xf] %v1074
      %1076 = vst.msk [vmem:[%s979 + $0xa0] sm:$0xf] %vm455, %v895
      %v1077 = vld [vmem:[%s979 + $0xa4] sm:$0x1]
      %v1078 = vsel %vm466, %v896, %v1077
      %1079 = vst [vmem:[%s979 + $0xa4] sm:$0x1] %v1078
      %v1080 = vld [vmem:[%s979 + $0xa8] sm:$0xf]
      %v1081 = vsel %vm981, %v903, %v1080
      %1082 = vst [vmem:[%s979 + $0xa8] sm:$0xf] %v1081
      %1083 = vst.msk [vmem:[%s979 + $0xac] sm:$0xf] %vm455, %v912
      %v1084 = vld [vmem:[%s979 + $0xb0] sm:$0x1]
      %v1085 = vsel %vm466, %v913, %v1084
      %1086 = vst [vmem:[%s979 + $0xb0] sm:$0x1] %v1085
      %v1087 = vld [vmem:[%s979 + $0xb4] sm:$0xf]
      %v1088 = vsel %vm981, %v920, %v1087
      %1089 = vst [vmem:[%s979 + $0xb4] sm:$0xf] %v1088
      %1090 = vst.msk [vmem:[%s979 + $0xb8] sm:$0xf] %vm455, %v929
      %v1091 = vld [vmem:[%s979 + $0xbc] sm:$0x1]
      %v1092 = vsel %vm466, %v930, %v1091
      %1093 = vst [vmem:[%s979 + $0xbc] sm:$0x1] %v1092
      %v1094 = vld [vmem:[%s3] sm:$0xf]
      %v1095 = vld [vmem:[%s3 + $0x4] sm:$0xf]
      %v1096 = vld [vmem:[%s3 + $0x8] sm:$0xf]
      %v1097 = vld [vmem:[%s3 + $0xc] sm:$0xf]
      %v1098 = vld [vmem:[%s3 + $0x10] sm:$0x3]
      %v1099 = vld [vmem:[%s4] sm:$0x1]
      %v1100 = vld [vmem:[#allocation2] sm:$0xf]
      %v1101 = vld [vmem:[#allocation2 + $0x4] sm:$0xf]
      %v1102 = vld [vmem:[#allocation2 + $0x8] sm:$0x1]
      %v1103 = vld [vmem:[#allocation2 + $0xc] sm:$0xf]
      %v1104 = vld [vmem:[#allocation2 + $0x10] sm:$0xf]
      %v1105 = vld [vmem:[#allocation2 + $0x14] sm:$0x1]
      %v1106 = vld [vmem:[#allocation2 + $0x18] sm:$0xf]
      %v1107 = vld [vmem:[#allocation2 + $0x1c] sm:$0xf]
      %v1108 = vld [vmem:[#allocation2 + $0x20] sm:$0x1]
      %v1109 = vld [vmem:[#allocation2 + $0x24] sm:$0xf]
      %v1110 = vld [vmem:[#allocation2 + $0x28] sm:$0xf]
      %v1111 = vld [vmem:[#allocation2 + $0x2c] sm:$0x1]
      %v1112 = vld [vmem:[#allocation2 + $0x30] sm:$0xf]
      %v1113 = vld [vmem:[#allocation2 + $0x34] sm:$0xf]
      %v1114 = vld [vmem:[#allocation2 + $0x38] sm:$0x1]
      %v1115 = vld [vmem:[#allocation2 + $0x3c] sm:$0xf]
      %v1116 = vld [vmem:[#allocation2 + $0x40] sm:$0xf]
      %v1117 = vld [vmem:[#allocation2 + $0x44] sm:$0x1]
      %v1118 = vld [vmem:[#allocation2 + $0x48] sm:$0xf]
      %v1119 = vld [vmem:[#allocation2 + $0x4c] sm:$0xf]
      %v1120 = vld [vmem:[#allocation2 + $0x50] sm:$0x1]
      %v1121 = vld [vmem:[#allocation2 + $0x54] sm:$0xf]
      %v1122 = vld [vmem:[#allocation2 + $0x58] sm:$0xf]
      %v1123 = vld [vmem:[#allocation2 + $0x5c] sm:$0x1]
      %v1124 = vld [vmem:[#allocation2 + $0x60] sm:$0xf]
      %v1125 = vld [vmem:[#allocation2 + $0x64] sm:$0xf]
      %v1126 = vld [vmem:[#allocation2 + $0x68] sm:$0x1]
      %v1127 = vld [vmem:[#allocation2 + $0x6c] sm:$0xf]
      %v1128 = vld [vmem:[#allocation2 + $0x70] sm:$0xf]
      %v1129 = vld [vmem:[#allocation2 + $0x74] sm:$0x1]
      %v1130 = vld [vmem:[#allocation2 + $0x78] sm:$0xf]
      %v1131 = vld [vmem:[#allocation2 + $0x7c] sm:$0xf]
      %v1132 = vld [vmem:[#allocation2 + $0x80] sm:$0x1]
      %v1133 = vld [vmem:[#allocation2 + $0x84] sm:$0xf]
      %v1134 = vld [vmem:[#allocation2 + $0x88] sm:$0xf]
      %v1135 = vld [vmem:[#allocation2 + $0x8c] sm:$0x1]
      %v1136 = vld [vmem:[#allocation2 + $0x90] sm:$0xf]
      %v1137 = vld [vmem:[#allocation2 + $0x94] sm:$0xf]
      %v1138 = vld [vmem:[#allocation2 + $0x98] sm:$0x1]
      %v1139 = vld [vmem:[#allocation2 + $0x9c] sm:$0xf]
      %v1140 = vld [vmem:[#allocation2 + $0xa0] sm:$0xf]
      %v1141 = vld [vmem:[#allocation2 + $0xa4] sm:$0x1]
      %v1142 = vld [vmem:[#allocation2 + $0xa8] sm:$0xf]
      %v1143 = vld [vmem:[#allocation2 + $0xac] sm:$0xf]
      %v1144 = vld [vmem:[#allocation2 + $0xb0] sm:$0x1]
      %v1145 = vld [vmem:[#allocation2 + $0xb4] sm:$0xf]
      %v1146 = vld [vmem:[#allocation2 + $0xb8] sm:$0xf]
      %v1147 = vld [vmem:[#allocation2 + $0xbc] sm:$0x1]
      %v1148 = vld [vmem:[#allocation2 + $0xc0] sm:$0xf]
      %v1149 = vld [vmem:[#allocation2 + $0xc4] sm:$0xf]
      %v1150 = vld [vmem:[#allocation2 + $0xc8] sm:$0x1]
      %v1151 = vld [vmem:[#allocation2 + $0xcc] sm:$0xf]
      %v1152 = vld [vmem:[#allocation2 + $0xd0] sm:$0xf]
      %v1153 = vld [vmem:[#allocation2 + $0xd4] sm:$0x1]
      %v1186 = vunpack.c.l.b16 %v1100
      %v1187 = vunpack.c.l.b16 %v1101
      %v1188 = vunpack.c.l.b16 %v1103
      %v1189 = vunpack.c.l.b16 %v1104
      %v1190 = vunpack.c.l.b16 %v1106
      %v1191 = vunpack.c.l.b16 %v1107
      %v1192 = vunpack.c.l.b16 %v1109
      %v1193 = vunpack.c.l.b16 %v1110
      %v1194 = vunpack.c.l.b16 %v1112
      %v1195 = vunpack.c.l.b16 %v1113
      %v1196 = vunpack.c.l.b16 %v1115
      %v1197 = vunpack.c.l.b16 %v1116
      %v1198 = vunpack.c.l.b16 %v1118
      %v1199 = vunpack.c.l.b16 %v1119
      %v1200 = vunpack.c.l.b16 %v1121
      %v1201 = vunpack.c.l.b16 %v1122
      %v1202 = vunpack.c.l.b16 %v1124
      %v1203 = vunpack.c.l.b16 %v1125
      %v1204 = vunpack.c.l.b16 %v1127
      %v1205 = vunpack.c.l.b16 %v1128
      %v1206 = vunpack.c.l.b16 %v1130
      %v1207 = vunpack.c.l.b16 %v1131
      %v1208 = vunpack.c.l.b16 %v1133
      %v1209 = vunpack.c.l.b16 %v1134
      %v1210 = vunpack.c.l.b16 %v1136
      %v1211 = vunpack.c.l.b16 %v1137
      %v1212 = vunpack.c.l.b16 %v1139
      %v1213 = vunpack.c.l.b16 %v1140
      %v1214 = vunpack.c.l.b16 %v1142
      %v1215 = vunpack.c.l.b16 %v1143
      %v1216 = vunpack.c.l.b16 %v1145
      %v1217 = vunpack.c.l.b16 %v1146
      %v1218 = vpack.c.b16 %v1187, %v1186
      %v1219 = vpack.c.b16 %v1189, %v1188
      %v1220 = vpack.c.b16 %v1191, %v1190
      %v1221 = vpack.c.b16 %v1193, %v1192
      %v1222 = vpack.c.b16 %v1195, %v1194
      %v1223 = vpack.c.b16 %v1197, %v1196
      %v1224 = vpack.c.b16 %v1199, %v1198
      %v1225 = vpack.c.b16 %v1201, %v1200
      %v1226 = vpack.c.b16 %v1203, %v1202
      %v1227 = vpack.c.b16 %v1205, %v1204
      %v1228 = vpack.c.b16 %v1207, %v1206
      %v1229 = vpack.c.b16 %v1209, %v1208
      %v1230 = vpack.c.b16 %v1211, %v1210
      %v1231 = vpack.c.b16 %v1213, %v1212
      %v1232 = vpack.c.b16 %v1215, %v1214
      %v1233 = vpack.c.b16 %v1217, %v1216
      %v1250 = vunpack.c.l.b16 %v1102
      %v1251 = vunpack.c.l.b16 %v1105
      %v1252 = vunpack.c.l.b16 %v1108
      %v1253 = vunpack.c.l.b16 %v1111
      %v1254 = vunpack.c.l.b16 %v1114
      %v1255 = vunpack.c.l.b16 %v1117
      %v1256 = vunpack.c.l.b16 %v1120
      %v1257 = vunpack.c.l.b16 %v1123
      %v1258 = vunpack.c.l.b16 %v1126
      %v1259 = vunpack.c.l.b16 %v1129
      %v1260 = vunpack.c.l.b16 %v1132
      %v1261 = vunpack.c.l.b16 %v1135
      %v1262 = vunpack.c.l.b16 %v1138
      %v1263 = vunpack.c.l.b16 %v1141
      %v1264 = vunpack.c.l.b16 %v1144
      %v1265 = vunpack.c.l.b16 %v1147
      %v1266 = vpack.c.b16 %v1250, %v1250
      %v1267 = vpack.c.b16 %v1251, %v1251
      %v1268 = vpack.c.b16 %v1252, %v1252
      %v1269 = vpack.c.b16 %v1253, %v1253
      %v1270 = vpack.c.b16 %v1254, %v1254
      %v1271 = vpack.c.b16 %v1255, %v1255
      %v1272 = vpack.c.b16 %v1256, %v1256
      %v1273 = vpack.c.b16 %v1257, %v1257
      %v1274 = vpack.c.b16 %v1258, %v1258
      %v1275 = vpack.c.b16 %v1259, %v1259
      %v1276 = vpack.c.b16 %v1260, %v1260
      %v1277 = vpack.c.b16 %v1261, %v1261
      %v1278 = vpack.c.b16 %v1262, %v1262
      %v1279 = vpack.c.b16 %v1263, %v1263
      %v1280 = vpack.c.b16 %v1264, %v1264
      %v1281 = vpack.c.b16 %v1265, %v1265
      %vm1282 = vsmask.f32 7424
      %v1284 = vshrl.u32 %v1218, 16
      %v1286 = vshll.u32 %v1218, 16
      %v1288 = vrot.slane %v1286, 1
      %v1289 = vor.u32 %v1284, %v1288
      %v1291 = vshll.u32 %v1266, 16
      %v1293 = vrot.slane %v1291, 1
      %v1294 = vsel %vm1282, %v1289, %v1293
      %v1296 = vshrl.u32 %v1219, 16
      %v1298 = vshll.u32 %v1219, 16
      %v1300 = vrot.slane %v1298, 1
      %v1301 = vor.u32 %v1296, %v1300
      %v1303 = vshll.u32 %v1267, 16
      %v1305 = vrot.slane %v1303, 1
      %v1306 = vsel %vm1282, %v1301, %v1305
      %v1308 = vshrl.u32 %v1220, 16
      %v1310 = vshll.u32 %v1220, 16
      %v1312 = vrot.slane %v1310, 1
      %v1313 = vor.u32 %v1308, %v1312
      %v1315 = vshll.u32 %v1268, 16
      %v1317 = vrot.slane %v1315, 1
      %v1318 = vsel %vm1282, %v1313, %v1317
      %v1320 = vshrl.u32 %v1221, 16
      %v1322 = vshll.u32 %v1221, 16
      %v1324 = vrot.slane %v1322, 1
      %v1325 = vor.u32 %v1320, %v1324
      %v1327 = vshll.u32 %v1269, 16
      %v1329 = vrot.slane %v1327, 1
      %v1330 = vsel %vm1282, %v1325, %v1329
      %v1332 = vshrl.u32 %v1222, 16
      %v1334 = vshll.u32 %v1222, 16
      %v1336 = vrot.slane %v1334, 1
      %v1337 = vor.u32 %v1332, %v1336
      %v1339 = vshll.u32 %v1270, 16
      %v1341 = vrot.slane %v1339, 1
      %v1342 = vsel %vm1282, %v1337, %v1341
      %v1344 = vshrl.u32 %v1223, 16
      %v1346 = vshll.u32 %v1223, 16
      %v1348 = vrot.slane %v1346, 1
      %v1349 = vor.u32 %v1344, %v1348
      %v1351 = vshll.u32 %v1271, 16
      %v1353 = vrot.slane %v1351, 1
      %v1354 = vsel %vm1282, %v1349, %v1353
      %v1356 = vshrl.u32 %v1224, 16
      %v1358 = vshll.u32 %v1224, 16
      %v1360 = vrot.slane %v1358, 1
      %v1361 = vor.u32 %v1356, %v1360
      %v1363 = vshll.u32 %v1272, 16
      %v1365 = vrot.slane %v1363, 1
      %v1366 = vsel %vm1282, %v1361, %v1365
      %v1368 = vshrl.u32 %v1225, 16
      %v1370 = vshll.u32 %v1225, 16
      %v1372 = vrot.slane %v1370, 1
      %v1373 = vor.u32 %v1368, %v1372
      %v1375 = vshll.u32 %v1273, 16
      %v1377 = vrot.slane %v1375, 1
      %v1378 = vsel %vm1282, %v1373, %v1377
      %v1380 = vshrl.u32 %v1226, 16
      %v1382 = vshll.u32 %v1226, 16
      %v1384 = vrot.slane %v1382, 1
      %v1385 = vor.u32 %v1380, %v1384
      %v1387 = vshll.u32 %v1274, 16
      %v1389 = vrot.slane %v1387, 1
      %v1390 = vsel %vm1282, %v1385, %v1389
      %v1392 = vshrl.u32 %v1227, 16
      %v1394 = vshll.u32 %v1227, 16
      %v1396 = vrot.slane %v1394, 1
      %v1397 = vor.u32 %v1392, %v1396
      %v1399 = vshll.u32 %v1275, 16
      %v1401 = vrot.slane %v1399, 1
      %v1402 = vsel %vm1282, %v1397, %v1401
      %v1404 = vshrl.u32 %v1228, 16
      %v1406 = vshll.u32 %v1228, 16
      %v1408 = vrot.slane %v1406, 1
      %v1409 = vor.u32 %v1404, %v1408
      %v1411 = vshll.u32 %v1276, 16
      %v1413 = vrot.slane %v1411, 1
      %v1414 = vsel %vm1282, %v1409, %v1413
      %v1416 = vshrl.u32 %v1229, 16
      %v1418 = vshll.u32 %v1229, 16
      %v1420 = vrot.slane %v1418, 1
      %v1421 = vor.u32 %v1416, %v1420
      %v1423 = vshll.u32 %v1277, 16
      %v1425 = vrot.slane %v1423, 1
      %v1426 = vsel %vm1282, %v1421, %v1425
      %v1428 = vshrl.u32 %v1230, 16
      %v1430 = vshll.u32 %v1230, 16
      %v1432 = vrot.slane %v1430, 1
      %v1433 = vor.u32 %v1428, %v1432
      %v1435 = vshll.u32 %v1278, 16
      %v1437 = vrot.slane %v1435, 1
      %v1438 = vsel %vm1282, %v1433, %v1437
      %v1440 = vshrl.u32 %v1231, 16
      %v1442 = vshll.u32 %v1231, 16
      %v1444 = vrot.slane %v1442, 1
      %v1445 = vor.u32 %v1440, %v1444
      %v1447 = vshll.u32 %v1279, 16
      %v1449 = vrot.slane %v1447, 1
      %v1450 = vsel %vm1282, %v1445, %v1449
      %v1452 = vshrl.u32 %v1232, 16
      %v1454 = vshll.u32 %v1232, 16
      %v1456 = vrot.slane %v1454, 1
      %v1457 = vor.u32 %v1452, %v1456
      %v1459 = vshll.u32 %v1280, 16
      %v1461 = vrot.slane %v1459, 1
      %v1462 = vsel %vm1282, %v1457, %v1461
      %v1464 = vshrl.u32 %v1233, 16
      %v1466 = vshll.u32 %v1233, 16
      %v1468 = vrot.slane %v1466, 1
      %v1469 = vor.u32 %v1464, %v1468
      %v1471 = vshll.u32 %v1281, 16
      %v1473 = vrot.slane %v1471, 1
      %v1474 = vsel %vm1282, %v1469, %v1473
      %1475 = vrot.lane.b32.xlu0 %v1294, 4
      %v1476 = vpop.permute.xlu0 %1475
      %1477 = vrot.lane.b32.xlu0 %v1306, 4
      %v1478 = vpop.permute.xlu0 %1477
      %1479 = vrot.lane.b32.xlu0 %v1318, 4
      %v1480 = vpop.permute.xlu0 %1479
      %1481 = vrot.lane.b32.xlu0 %v1330, 4
      %v1482 = vpop.permute.xlu0 %1481
      %1483 = vrot.lane.b32.xlu0 %v1342, 4
      %v1484 = vpop.permute.xlu0 %1483
      %1485 = vrot.lane.b32.xlu0 %v1354, 4
      %v1486 = vpop.permute.xlu0 %1485
      %1487 = vrot.lane.b32.xlu0 %v1366, 4
      %v1488 = vpop.permute.xlu0 %1487
      %1489 = vrot.lane.b32.xlu0 %v1378, 4
      %v1490 = vpop.permute.xlu0 %1489
      %1491 = vrot.lane.b32.xlu0 %v1390, 4
      %v1492 = vpop.permute.xlu0 %1491
      %1493 = vrot.lane.b32.xlu0 %v1402, 4
      %v1494 = vpop.permute.xlu0 %1493
      %1495 = vrot.lane.b32.xlu0 %v1414, 4
      %v1496 = vpop.permute.xlu0 %1495
      %1497 = vrot.lane.b32.xlu0 %v1426, 4
      %v1498 = vpop.permute.xlu0 %1497
      %1499 = vrot.lane.b32.xlu0 %v1438, 4
      %v1500 = vpop.permute.xlu0 %1499
      %1501 = vrot.lane.b32.xlu0 %v1450, 4
      %v1502 = vpop.permute.xlu0 %1501
      %1503 = vrot.lane.b32.xlu0 %v1462, 4
      %v1504 = vpop.permute.xlu0 %1503
      %1505 = vrot.lane.b32.xlu0 %v1474, 4
      %v1506 = vpop.permute.xlu0 %1505
      %vm1507 = vcmask 1046528
      %v1508 = vrot.slane %v1218, 1
      %v1509 = vrot.slane %v1266, 1
      %v1510 = vsel %vm1507, %v1508, %v1509
      %v1511 = vrot.slane %v1219, 1
      %v1512 = vrot.slane %v1267, 1
      %v1513 = vsel %vm1507, %v1511, %v1512
      %v1514 = vrot.slane %v1220, 1
      %v1515 = vrot.slane %v1268, 1
      %v1516 = vsel %vm1507, %v1514, %v1515
      %v1517 = vrot.slane %v1221, 1
      %v1518 = vrot.slane %v1269, 1
      %v1519 = vsel %vm1507, %v1517, %v1518
      %v1520 = vrot.slane %v1222, 1
      %v1521 = vrot.slane %v1270, 1
      %v1522 = vsel %vm1507, %v1520, %v1521
      %v1523 = vrot.slane %v1223, 1
      %v1524 = vrot.slane %v1271, 1
      %v1525 = vsel %vm1507, %v1523, %v1524
      %v1526 = vrot.slane %v1224, 1
      %v1527 = vrot.slane %v1272, 1
      %v1528 = vsel %vm1507, %v1526, %v1527
      %v1529 = vrot.slane %v1225, 1
      %v1530 = vrot.slane %v1273, 1
      %v1531 = vsel %vm1507, %v1529, %v1530
      %v1532 = vrot.slane %v1226, 1
      %v1533 = vrot.slane %v1274, 1
      %v1534 = vsel %vm1507, %v1532, %v1533
      %v1535 = vrot.slane %v1227, 1
      %v1536 = vrot.slane %v1275, 1
      %v1537 = vsel %vm1507, %v1535, %v1536
      %v1538 = vrot.slane %v1228, 1
      %v1539 = vrot.slane %v1276, 1
      %v1540 = vsel %vm1507, %v1538, %v1539
      %v1541 = vrot.slane %v1229, 1
      %v1542 = vrot.slane %v1277, 1
      %v1543 = vsel %vm1507, %v1541, %v1542
      %v1544 = vrot.slane %v1230, 1
      %v1545 = vrot.slane %v1278, 1
      %v1546 = vsel %vm1507, %v1544, %v1545
      %v1547 = vrot.slane %v1231, 1
      %v1548 = vrot.slane %v1279, 1
      %v1549 = vsel %vm1507, %v1547, %v1548
      %v1550 = vrot.slane %v1232, 1
      %v1551 = vrot.slane %v1280, 1
      %v1552 = vsel %vm1507, %v1550, %v1551
      %v1553 = vrot.slane %v1233, 1
      %v1554 = vrot.slane %v1281, 1
      %v1555 = vsel %vm1507, %v1553, %v1554
      %1556 = vrot.lane.b32.xlu0 %v1510, 8
      %v1557 = vpop.permute.xlu0 %1556
      %1558 = vrot.lane.b32.xlu0 %v1513, 8
      %v1559 = vpop.permute.xlu0 %1558
      %1560 = vrot.lane.b32.xlu0 %v1516, 8
      %v1561 = vpop.permute.xlu0 %1560
      %1562 = vrot.lane.b32.xlu0 %v1519, 8
      %v1563 = vpop.permute.xlu0 %1562
      %1564 = vrot.lane.b32.xlu0 %v1522, 8
      %v1565 = vpop.permute.xlu0 %1564
      %1566 = vrot.lane.b32.xlu0 %v1525, 8
      %v1567 = vpop.permute.xlu0 %1566
      %1568 = vrot.lane.b32.xlu0 %v1528, 8
      %v1569 = vpop.permute.xlu0 %1568
      %1570 = vrot.lane.b32.xlu0 %v1531, 8
      %v1571 = vpop.permute.xlu0 %1570
      %1572 = vrot.lane.b32.xlu0 %v1534, 8
      %v1573 = vpop.permute.xlu0 %1572
      %1574 = vrot.lane.b32.xlu0 %v1537, 8
      %v1575 = vpop.permute.xlu0 %1574
      %1576 = vrot.lane.b32.xlu0 %v1540, 8
      %v1577 = vpop.permute.xlu0 %1576
      %1578 = vrot.lane.b32.xlu0 %v1543, 8
      %v1579 = vpop.permute.xlu0 %1578
      %1580 = vrot.lane.b32.xlu0 %v1546, 8
      %v1581 = vpop.permute.xlu0 %1580
      %1582 = vrot.lane.b32.xlu0 %v1549, 8
      %v1583 = vpop.permute.xlu0 %1582
      %1584 = vrot.lane.b32.xlu0 %v1552, 8
      %v1585 = vpop.permute.xlu0 %1584
      %1586 = vrot.lane.b32.xlu0 %v1555, 8
      %v1587 = vpop.permute.xlu0 %1586
      %v1590 = vunpack.c.l.b16 %v1148
      %v1591 = vunpack.c.l.b16 %v1149
      %v1592 = vpack.c.b16 %v1591, %v1590
      %1593 = vrot.lane.b32.xlu0 %v1219, 12
      %v1594 = vpop.permute.xlu0 %1593
      %1595 = vrot.lane.b32.xlu0 %v1220, 12
      %v1596 = vpop.permute.xlu0 %1595
      %1597 = vrot.lane.b32.xlu0 %v1221, 12
      %v1598 = vpop.permute.xlu0 %1597
      %1599 = vrot.lane.b32.xlu0 %v1222, 12
      %v1600 = vpop.permute.xlu0 %1599
      %1601 = vrot.lane.b32.xlu0 %v1223, 12
      %v1602 = vpop.permute.xlu0 %1601
      %1603 = vrot.lane.b32.xlu0 %v1224, 12
      %v1604 = vpop.permute.xlu0 %1603
      %1605 = vrot.lane.b32.xlu0 %v1225, 12
      %v1606 = vpop.permute.xlu0 %1605
      %1607 = vrot.lane.b32.xlu0 %v1226, 12
      %v1608 = vpop.permute.xlu0 %1607
      %1609 = vrot.lane.b32.xlu0 %v1227, 12
      %v1610 = vpop.permute.xlu0 %1609
      %1611 = vrot.lane.b32.xlu0 %v1228, 12
      %v1612 = vpop.permute.xlu0 %1611
      %1613 = vrot.lane.b32.xlu0 %v1229, 12
      %v1614 = vpop.permute.xlu0 %1613
      %1615 = vrot.lane.b32.xlu0 %v1230, 12
      %v1616 = vpop.permute.xlu0 %1615
      %1617 = vrot.lane.b32.xlu0 %v1231, 12
      %v1618 = vpop.permute.xlu0 %1617
      %1619 = vrot.lane.b32.xlu0 %v1232, 12
      %v1620 = vpop.permute.xlu0 %1619
      %1621 = vrot.lane.b32.xlu0 %v1233, 12
      %v1622 = vpop.permute.xlu0 %1621
      %1623 = vrot.lane.b32.xlu0 %v1592, 12
      %v1624 = vpop.permute.xlu0 %1623
      %v1626 = vunpack.c.l.b16 %v1150
      %v1627 = vpack.c.b16 %v1626, %v1626
      %v1629 = vshrl.u32 %v1592, 16
      %v1631 = vshll.u32 %v1592, 16
      %v1633 = vrot.slane %v1631, 1
      %v1634 = vor.u32 %v1629, %v1633
      %v1636 = vshll.u32 %v1627, 16
      %v1638 = vrot.slane %v1636, 1
      %v1639 = vsel %vm1282, %v1634, %v1638
      %1640 = vrot.lane.b32.xlu0 %v1306, 16
      %v1641 = vpop.permute.xlu0 %1640
      %1642 = vrot.lane.b32.xlu0 %v1318, 16
      %v1643 = vpop.permute.xlu0 %1642
      %1644 = vrot.lane.b32.xlu0 %v1330, 16
      %v1645 = vpop.permute.xlu0 %1644
      %1646 = vrot.lane.b32.xlu0 %v1342, 16
      %v1647 = vpop.permute.xlu0 %1646
      %1648 = vrot.lane.b32.xlu0 %v1354, 16
      %v1649 = vpop.permute.xlu0 %1648
      %1650 = vrot.lane.b32.xlu0 %v1366, 16
      %v1651 = vpop.permute.xlu0 %1650
      %1652 = vrot.lane.b32.xlu0 %v1378, 16
      %v1653 = vpop.permute.xlu0 %1652
      %1654 = vrot.lane.b32.xlu0 %v1390, 16
      %v1655 = vpop.permute.xlu0 %1654
      %1656 = vrot.lane.b32.xlu0 %v1402, 16
      %v1657 = vpop.permute.xlu0 %1656
      %1658 = vrot.lane.b32.xlu0 %v1414, 16
      %v1659 = vpop.permute.xlu0 %1658
      %1660 = vrot.lane.b32.xlu0 %v1426, 16
      %v1661 = vpop.permute.xlu0 %1660
      %1662 = vrot.lane.b32.xlu0 %v1438, 16
      %v1663 = vpop.permute.xlu0 %1662
      %1664 = vrot.lane.b32.xlu0 %v1450, 16
      %v1665 = vpop.permute.xlu0 %1664
      %1666 = vrot.lane.b32.xlu0 %v1462, 16
      %v1667 = vpop.permute.xlu0 %1666
      %1668 = vrot.lane.b32.xlu0 %v1474, 16
      %v1669 = vpop.permute.xlu0 %1668
      %1670 = vrot.lane.b32.xlu0 %v1639, 16
      %v1671 = vpop.permute.xlu0 %1670
      %v1672 = vrot.slane %v1592, 1
      %v1673 = vrot.slane %v1627, 1
      %v1674 = vsel %vm1507, %v1672, %v1673
      %1675 = vrot.lane.b32.xlu0 %v1513, 20
      %v1676 = vpop.permute.xlu0 %1675
      %1677 = vrot.lane.b32.xlu0 %v1516, 20
      %v1678 = vpop.permute.xlu0 %1677
      %1679 = vrot.lane.b32.xlu0 %v1519, 20
      %v1680 = vpop.permute.xlu0 %1679
      %1681 = vrot.lane.b32.xlu0 %v1522, 20
      %v1682 = vpop.permute.xlu0 %1681
      %1683 = vrot.lane.b32.xlu0 %v1525, 20
      %v1684 = vpop.permute.xlu0 %1683
      %1685 = vrot.lane.b32.xlu0 %v1528, 20
      %v1686 = vpop.permute.xlu0 %1685
      %1687 = vrot.lane.b32.xlu0 %v1531, 20
      %v1688 = vpop.permute.xlu0 %1687
      %1689 = vrot.lane.b32.xlu0 %v1534, 20
      %v1690 = vpop.permute.xlu0 %1689
      %1691 = vrot.lane.b32.xlu0 %v1537, 20
      %v1692 = vpop.permute.xlu0 %1691
      %1693 = vrot.lane.b32.xlu0 %v1540, 20
      %v1694 = vpop.permute.xlu0 %1693
      %1695 = vrot.lane.b32.xlu0 %v1543, 20
      %v1696 = vpop.permute.xlu0 %1695
      %1697 = vrot.lane.b32.xlu0 %v1546, 20
      %v1698 = vpop.permute.xlu0 %1697
      %1699 = vrot.lane.b32.xlu0 %v1549, 20
      %v1700 = vpop.permute.xlu0 %1699
      %1701 = vrot.lane.b32.xlu0 %v1552, 20
      %v1702 = vpop.permute.xlu0 %1701
      %1703 = vrot.lane.b32.xlu0 %v1555, 20
      %v1704 = vpop.permute.xlu0 %1703
      %1705 = vrot.lane.b32.xlu0 %v1674, 20
      %v1706 = vpop.permute.xlu0 %1705
      %v1709 = vunpack.c.l.b16 %v1151
      %v1710 = vunpack.c.l.b16 %v1152
      %v1711 = vpack.c.b16 %v1710, %v1709
      %1712 = vrot.lane.b32.xlu0 %v1220, 24
      %v1713 = vpop.permute.xlu0 %1712
      %1714 = vrot.lane.b32.xlu0 %v1221, 24
      %v1715 = vpop.permute.xlu0 %1714
      %1716 = vrot.lane.b32.xlu0 %v1222, 24
      %v1717 = vpop.permute.xlu0 %1716
      %1718 = vrot.lane.b32.xlu0 %v1223, 24
      %v1719 = vpop.permute.xlu0 %1718
      %1720 = vrot.lane.b32.xlu0 %v1224, 24
      %v1721 = vpop.permute.xlu0 %1720
      %1722 = vrot.lane.b32.xlu0 %v1225, 24
      %v1723 = vpop.permute.xlu0 %1722
      %1724 = vrot.lane.b32.xlu0 %v1226, 24
      %v1725 = vpop.permute.xlu0 %1724
      %1726 = vrot.lane.b32.xlu0 %v1227, 24
      %v1727 = vpop.permute.xlu0 %1726
      %1728 = vrot.lane.b32.xlu0 %v1228, 24
      %v1729 = vpop.permute.xlu0 %1728
      %1730 = vrot.lane.b32.xlu0 %v1229, 24
      %v1731 = vpop.permute.xlu0 %1730
      %1732 = vrot.lane.b32.xlu0 %v1230, 24
      %v1733 = vpop.permute.xlu0 %1732
      %1734 = vrot.lane.b32.xlu0 %v1231, 24
      %v1735 = vpop.permute.xlu0 %1734
      %1736 = vrot.lane.b32.xlu0 %v1232, 24
      %v1737 = vpop.permute.xlu0 %1736
      %1738 = vrot.lane.b32.xlu0 %v1233, 24
      %v1739 = vpop.permute.xlu0 %1738
      %1740 = vrot.lane.b32.xlu0 %v1592, 24
      %v1741 = vpop.permute.xlu0 %1740
      %1742 = vrot.lane.b32.xlu0 %v1711, 24
      %v1743 = vpop.permute.xlu0 %1742
      %v1745 = vunpack.c.l.b16 %v1153
      %v1746 = vpack.c.b16 %v1745, %v1745
      %v1748 = vshrl.u32 %v1711, 16
      %v1750 = vshll.u32 %v1711, 16
      %v1752 = vrot.slane %v1750, 1
      %v1753 = vor.u32 %v1748, %v1752
      %v1755 = vshll.u32 %v1746, 16
      %v1757 = vrot.slane %v1755, 1
      %v1758 = vsel %vm1282, %v1753, %v1757
      %1759 = vrot.lane.b32.xlu0 %v1318, 28
      %v1760 = vpop.permute.xlu0 %1759
      %1761 = vrot.lane.b32.xlu0 %v1330, 28
      %v1762 = vpop.permute.xlu0 %1761
      %1763 = vrot.lane.b32.xlu0 %v1342, 28
      %v1764 = vpop.permute.xlu0 %1763
      %1765 = vrot.lane.b32.xlu0 %v1354, 28
      %v1766 = vpop.permute.xlu0 %1765
      %1767 = vrot.lane.b32.xlu0 %v1366, 28
      %v1768 = vpop.permute.xlu0 %1767
      %1769 = vrot.lane.b32.xlu0 %v1378, 28
      %v1770 = vpop.permute.xlu0 %1769
      %1771 = vrot.lane.b32.xlu0 %v1390, 28
      %v1772 = vpop.permute.xlu0 %1771
      %1773 = vrot.lane.b32.xlu0 %v1402, 28
      %v1774 = vpop.permute.xlu0 %1773
      %1775 = vrot.lane.b32.xlu0 %v1414, 28
      %v1776 = vpop.permute.xlu0 %1775
      %1777 = vrot.lane.b32.xlu0 %v1426, 28
      %v1778 = vpop.permute.xlu0 %1777
      %1779 = vrot.lane.b32.xlu0 %v1438, 28
      %v1780 = vpop.permute.xlu0 %1779
      %1781 = vrot.lane.b32.xlu0 %v1450, 28
      %v1782 = vpop.permute.xlu0 %1781
      %1783 = vrot.lane.b32.xlu0 %v1462, 28
      %v1784 = vpop.permute.xlu0 %1783
      %1785 = vrot.lane.b32.xlu0 %v1474, 28
      %v1786 = vpop.permute.xlu0 %1785
      %1787 = vrot.lane.b32.xlu0 %v1639, 28
      %v1788 = vpop.permute.xlu0 %1787
      %1789 = vrot.lane.b32.xlu0 %v1758, 28
      %v1790 = vpop.permute.xlu0 %1789
      %v1791 = vrot.slane %v1711, 1
      %v1792 = vrot.slane %v1746, 1
      %v1793 = vsel %vm1507, %v1791, %v1792
      %1794 = vrot.lane.b32.xlu0 %v1516, 32
      %v1795 = vpop.permute.xlu0 %1794
      %1796 = vrot.lane.b32.xlu0 %v1519, 32
      %v1797 = vpop.permute.xlu0 %1796
      %1798 = vrot.lane.b32.xlu0 %v1522, 32
      %v1799 = vpop.permute.xlu0 %1798
      %1800 = vrot.lane.b32.xlu0 %v1525, 32
      %v1801 = vpop.permute.xlu0 %1800
      %1802 = vrot.lane.b32.xlu0 %v1528, 32
      %v1803 = vpop.permute.xlu0 %1802
      %1804 = vrot.lane.b32.xlu0 %v1531, 32
      %v1805 = vpop.permute.xlu0 %1804
      %1806 = vrot.lane.b32.xlu0 %v1534, 32
      %v1807 = vpop.permute.xlu0 %1806
      %1808 = vrot.lane.b32.xlu0 %v1537, 32
      %v1809 = vpop.permute.xlu0 %1808
      %1810 = vrot.lane.b32.xlu0 %v1540, 32
      %v1811 = vpop.permute.xlu0 %1810
      %1812 = vrot.lane.b32.xlu0 %v1543, 32
      %v1813 = vpop.permute.xlu0 %1812
      %1814 = vrot.lane.b32.xlu0 %v1546, 32
      %v1815 = vpop.permute.xlu0 %1814
      %1816 = vrot.lane.b32.xlu0 %v1549, 32
      %v1817 = vpop.permute.xlu0 %1816
      %1818 = vrot.lane.b32.xlu0 %v1552, 32
      %v1819 = vpop.permute.xlu0 %1818
      %1820 = vrot.lane.b32.xlu0 %v1555, 32
      %v1821 = vpop.permute.xlu0 %1820
      %1822 = vrot.lane.b32.xlu0 %v1674, 32
      %v1823 = vpop.permute.xlu0 %1822
      %1824 = vrot.lane.b32.xlu0 %v1793, 32
      %v1825 = vpop.permute.xlu0 %1824
      %vm1826 = vcmask 31744
      %v1828 = vsel %vm1826, %v1218, %v1476
      %v1830 = vsel %vm1826, %v1219, %v1478
      %v1832 = vsel %vm1826, %v1220, %v1480
      %v1834 = vsel %vm1826, %v1221, %v1482
      %v1836 = vsel %vm1826, %v1222, %v1484
      %v1838 = vsel %vm1826, %v1223, %v1486
      %v1840 = vsel %vm1826, %v1224, %v1488
      %v1842 = vsel %vm1826, %v1225, %v1490
      %v1844 = vsel %vm1826, %v1226, %v1492
      %v1846 = vsel %vm1826, %v1227, %v1494
      %v1848 = vsel %vm1826, %v1228, %v1496
      %v1850 = vsel %vm1826, %v1229, %v1498
      %v1852 = vsel %vm1826, %v1230, %v1500
      %v1854 = vsel %vm1826, %v1231, %v1502
      %v1856 = vsel %vm1826, %v1232, %v1504
      %v1858 = vsel %vm1826, %v1233, %v1506
      %vm1859 = vcmask 64512
      %v1861 = vsel %vm1859, %v1828, %v1557
      %v1863 = vsel %vm1859, %v1830, %v1559
      %v1865 = vsel %vm1859, %v1832, %v1561
      %v1867 = vsel %vm1859, %v1834, %v1563
      %v1869 = vsel %vm1859, %v1836, %v1565
      %v1871 = vsel %vm1859, %v1838, %v1567
      %v1873 = vsel %vm1859, %v1840, %v1569
      %v1875 = vsel %vm1859, %v1842, %v1571
      %v1877 = vsel %vm1859, %v1844, %v1573
      %v1879 = vsel %vm1859, %v1846, %v1575
      %v1881 = vsel %vm1859, %v1848, %v1577
      %v1883 = vsel %vm1859, %v1850, %v1579
      %v1885 = vsel %vm1859, %v1852, %v1581
      %v1887 = vsel %vm1859, %v1854, %v1583
      %v1889 = vsel %vm1859, %v1856, %v1585
      %v1891 = vsel %vm1859, %v1858, %v1587
      %vm1892 = vcmask 97280
      %v1894 = vsel %vm1892, %v1861, %v1594
      %v1896 = vsel %vm1892, %v1863, %v1596
      %v1898 = vsel %vm1892, %v1865, %v1598
      %v1900 = vsel %vm1892, %v1867, %v1600
      %v1902 = vsel %vm1892, %v1869, %v1602
      %v1904 = vsel %vm1892, %v1871, %v1604
      %v1906 = vsel %vm1892, %v1873, %v1606
      %v1908 = vsel %vm1892, %v1875, %v1608
      %v1910 = vsel %vm1892, %v1877, %v1610
      %v1912 = vsel %vm1892, %v1879, %v1612
      %v1914 = vsel %vm1892, %v1881, %v1614
      %v1916 = vsel %vm1892, %v1883, %v1616
      %v1918 = vsel %vm1892, %v1885, %v1618
      %v1920 = vsel %vm1892, %v1887, %v1620
      %v1922 = vsel %vm1892, %v1889, %v1622
      %v1924 = vsel %vm1892, %v1891, %v1624
      %vm1925 = vcmask 130048
      %v1927 = vsel %vm1925, %v1894, %v1641
      %v1929 = vsel %vm1925, %v1896, %v1643
      %v1931 = vsel %vm1925, %v1898, %v1645
      %v1933 = vsel %vm1925, %v1900, %v1647
      %v1935 = vsel %vm1925, %v1902, %v1649
      %v1937 = vsel %vm1925, %v1904, %v1651
      %v1939 = vsel %vm1925, %v1906, %v1653
      %v1941 = vsel %vm1925, %v1908, %v1655
      %v1943 = vsel %vm1925, %v1910, %v1657
      %v1945 = vsel %vm1925, %v1912, %v1659
      %v1947 = vsel %vm1925, %v1914, %v1661
      %v1949 = vsel %vm1925, %v1916, %v1663
      %v1951 = vsel %vm1925, %v1918, %v1665
      %v1953 = vsel %vm1925, %v1920, %v1667
      %v1955 = vsel %vm1925, %v1922, %v1669
      %v1957 = vsel %vm1925, %v1924, %v1671
      %vm1958 = vcmask 162816
      %v1960 = vsel %vm1958, %v1927, %v1676
      %v1962 = vsel %vm1958, %v1929, %v1678
      %v1964 = vsel %vm1958, %v1931, %v1680
      %v1966 = vsel %vm1958, %v1933, %v1682
      %v1968 = vsel %vm1958, %v1935, %v1684
      %v1970 = vsel %vm1958, %v1937, %v1686
      %v1972 = vsel %vm1958, %v1939, %v1688
      %v1974 = vsel %vm1958, %v1941, %v1690
      %v1976 = vsel %vm1958, %v1943, %v1692
      %v1978 = vsel %vm1958, %v1945, %v1694
      %v1980 = vsel %vm1958, %v1947, %v1696
      %v1982 = vsel %vm1958, %v1949, %v1698
      %v1984 = vsel %vm1958, %v1951, %v1700
      %v1986 = vsel %vm1958, %v1953, %v1702
      %v1988 = vsel %vm1958, %v1955, %v1704
      %v1990 = vsel %vm1958, %v1957, %v1706
      %vm1991 = vcmask 195584
      %v1993 = vsel %vm1991, %v1960, %v1713
      %v1995 = vsel %vm1991, %v1962, %v1715
      %v1997 = vsel %vm1991, %v1964, %v1717
      %v1999 = vsel %vm1991, %v1966, %v1719
      %v2001 = vsel %vm1991, %v1968, %v1721
      %v2003 = vsel %vm1991, %v1970, %v1723
      %v2005 = vsel %vm1991, %v1972, %v1725
      %v2007 = vsel %vm1991, %v1974, %v1727
      %v2009 = vsel %vm1991, %v1976, %v1729
      %v2011 = vsel %vm1991, %v1978, %v1731
      %v2013 = vsel %vm1991, %v1980, %v1733
      %v2015 = vsel %vm1991, %v1982, %v1735
      %v2017 = vsel %vm1991, %v1984, %v1737
      %v2019 = vsel %vm1991, %v1986, %v1739
      %v2021 = vsel %vm1991, %v1988, %v1741
      %v2023 = vsel %vm1991, %v1990, %v1743
      %vm2024 = vcmask 228352
      %v2026 = vsel %vm2024, %v1993, %v1760
      %v2028 = vsel %vm2024, %v1995, %v1762
      %v2030 = vsel %vm2024, %v1997, %v1764
      %v2032 = vsel %vm2024, %v1999, %v1766
      %v2034 = vsel %vm2024, %v2001, %v1768
      %v2036 = vsel %vm2024, %v2003, %v1770
      %v2038 = vsel %vm2024, %v2005, %v1772
      %v2040 = vsel %vm2024, %v2007, %v1774
      %v2042 = vsel %vm2024, %v2009, %v1776
      %v2044 = vsel %vm2024, %v2011, %v1778
      %v2046 = vsel %vm2024, %v2013, %v1780
      %v2048 = vsel %vm2024, %v2015, %v1782
      %v2050 = vsel %vm2024, %v2017, %v1784
      %v2052 = vsel %vm2024, %v2019, %v1786
      %v2054 = vsel %vm2024, %v2021, %v1788
      %v2056 = vsel %vm2024, %v2023, %v1790
      %vm2057 = vcmask 261120
      %v2059 = vsel %vm2057, %v2026, %v1795
      %v2061 = vsel %vm2057, %v2028, %v1797
      %v2063 = vsel %vm2057, %v2030, %v1799
      %v2065 = vsel %vm2057, %v2032, %v1801
      %v2067 = vsel %vm2057, %v2034, %v1803
      %v2069 = vsel %vm2057, %v2036, %v1805
      %v2071 = vsel %vm2057, %v2038, %v1807
      %v2073 = vsel %vm2057, %v2040, %v1809
      %v2075 = vsel %vm2057, %v2042, %v1811
      %v2077 = vsel %vm2057, %v2044, %v1813
      %v2079 = vsel %vm2057, %v2046, %v1815
      %v2081 = vsel %vm2057, %v2048, %v1817
      %v2083 = vsel %vm2057, %v2050, %v1819
      %v2085 = vsel %vm2057, %v2052, %v1821
      %v2087 = vsel %vm2057, %v2054, %v1823
      %v2089 = vsel %vm2057, %v2056, %v1825
      %v2091 = vlaneseq
      %v2092 = vshrl.u32 %v2091, 7
      %v2093 = vsub.s32 0, %v2092
      %v2094 = vrot.slane %v1099, %v2093
      %v2101 = vunpack.c.l.b16 %v1094
      %v2102 = vunpack.c.l.b16 %v1095
      %v2103 = vunpack.c.l.b16 %v1096
      %v2104 = vunpack.c.l.b16 %v1097
      %v2105 = vunpack.c.l.b16 %v1098
      %v2106 = vpack.c.b16 %v2102, %v2101
      %v2107 = vpack.c.b16 %v2104, %v2103
      %v2108 = vpack.c.b16 %v2105, %v2105
      %vm2111 = vcmask 293888
      %v2112 = vsel %vm2111, %v2059, 0
      %v2114 = vsel %vm2111, %v2061, 0
      %v2116 = vsel %vm2111, %v2063, 0
      %v2118 = vsel %vm2111, %v2065, 0
      %v2120 = vsel %vm2111, %v2067, 0
      %v2122 = vsel %vm2111, %v2069, 0
      %v2124 = vsel %vm2111, %v2071, 0
      %v2126 = vsel %vm2111, %v2073, 0
      %v2128 = vsel %vm2111, %v2075, 0
      %v2130 = vsel %vm2111, %v2077, 0
      %v2132 = vsel %vm2111, %v2079, 0
      %v2134 = vsel %vm2111, %v2081, 0
      %v2136 = vsel %vm2111, %v2083, 0
      %v2138 = vsel %vm2111, %v2085, 0
      %v2140 = vsel %vm2111, %v2087, 0
      %v2142 = vsel %vm2111, %v2089, 0
      %vm2144 = vcmask 1041408
      %v2146 = vsel %vm2144, %v2108, 0
      %2148 = vmatprep.subr.bf16.mxu0 0
      %2149 = vmatpush1.bf16.msra.mxu0 %v2106
      %2150 = vmatprep.subr.bf16.mxu0 0
      %2151 = vmatpush1.bf16.msra.mxu0 %v2107
      %2152 = vmatprep.subr.bf16.mxu0 0
      %2153 = vmatpush1.bf16.msra.mxu0 %v2146
      %2154 = vmatprep.subr.bf16.mxu0 0
      %2155 = vmatpush1.bf16.msra.mxu0 0
      %2156 = vmatprep.subr.bf16.mxu0 0
      %2157 = vmatpush1.bf16.msra.mxu0 0
      %2158 = vmatprep.subr.bf16.mxu0 0
      %2159 = vmatpush1.bf16.msra.mxu0 0
      %2160 = vmatprep.subr.bf16.mxu0 0
      %2161 = vmatpush1.bf16.msra.mxu0 0
      %2162 = vmatprep.subr.bf16.mxu0 0
      %2163 = vmatpush1.bf16.msra.mxu0 0
      %2164 = vmatprep.subr.bf16.mxu0 0
      %2165 = vmatpush1.bf16.msra.mxu0 0
      %2166 = vmatprep.subr.bf16.mxu0 0
      %2167 = vmatpush1.bf16.msra.mxu0 0
      %2168 = vmatprep.subr.bf16.mxu0 0
      %2169 = vmatpush1.bf16.msra.mxu0 0
      %2170 = vmatprep.subr.bf16.mxu0 0
      %2171 = vmatpush1.bf16.msra.mxu0 0
      %2172 = vmatprep.subr.bf16.mxu0 0
      %2173 = vmatpush1.bf16.msra.mxu0 0
      %2174 = vmatprep.subr.bf16.mxu0 0
      %2175 = vmatpush1.bf16.msra.mxu0 0
      %2176 = vmatprep.subr.bf16.mxu0 0
      %2177 = vmatpush1.bf16.msra.mxu0 0
      %2178 = vmatprep.subr.bf16.mxu0 0
      %2179 = vmatpush1.bf16.msra.mxu0 0
      %2180 = vmatprep.mubr.bf16.mxu0 0
      %2181 = vmatmul.mubr.bf16.gmra.mrb[0].mxu0 %v2112
      %v2182 = vpop.f32.mrb[0].mxu0
      %v2183 = vadd.f32 %v2094, %v2182
      %v2184 = vpop.f32.mrb[0].mxu0
      %v2185 = vpop.f32.mrb[0].mxu0
      %v2186 = vadd.f32 %v2094, %v2185
      %v2187 = vpop.f32.mrb[0].mxu0
      %2188 = vmatprep.mubr.bf16.mxu0 0
      %2189 = vmatmul.mubr.bf16.gmra.mrb[0].mxu0 %v2114
      %v2190 = vpop.f32.mrb[0].mxu0
      %v2191 = vadd.f32 %v2094, %v2190
      %v2192 = vpop.f32.mrb[0].mxu0
      %v2193 = vpop.f32.mrb[0].mxu0
      %v2194 = vadd.f32 %v2094, %v2193
      %v2195 = vpop.f32.mrb[0].mxu0
      %2196 = vmatprep.mubr.bf16.mxu0 0
      %2197 = vmatmul.mubr.bf16.gmra.mrb[0].mxu0 %v2116
      %v2198 = vpop.f32.mrb[0].mxu0
      %v2199 = vadd.f32 %v2094, %v2198
      %v2200 = vpop.f32.mrb[0].mxu0
      %v2201 = vpop.f32.mrb[0].mxu0
      %v2202 = vadd.f32 %v2094, %v2201
      %v2203 = vpop.f32.mrb[0].mxu0
      %2204 = vmatprep.mubr.bf16.mxu0 0
      %2205 = vmatmul.mubr.bf16.gmra.mrb[0].mxu0 %v2118
      %v2206 = vpop.f32.mrb[0].mxu0
      %v2207 = vadd.f32 %v2094, %v2206
      %v2208 = vpop.f32.mrb[0].mxu0
      %v2209 = vpop.f32.mrb[0].mxu0
      %v2210 = vadd.f32 %v2094, %v2209
      %v2211 = vpop.f32.mrb[0].mxu0
      %2212 = vmatprep.mubr.bf16.mxu0 0
      %2213 = vmatmul.mubr.bf16.gmra.mrb[0].mxu0 %v2120
      %v2214 = vpop.f32.mrb[0].mxu0
      %v2215 = vadd.f32 %v2094, %v2214
      %v2216 = vpop.f32.mrb[0].mxu0
      %v2217 = vpop.f32.mrb[0].mxu0
      %v2218 = vadd.f32 %v2094, %v2217
      %v2219 = vpop.f32.mrb[0].mxu0
      %2220 = vmatprep.mubr.bf16.mxu0 0
      %2221 = vmatmul.mubr.bf16.gmra.mrb[0].mxu0 %v2122
      %v2222 = vpop.f32.mrb[0].mxu0
      %v2223 = vadd.f32 %v2094, %v2222
      %v2224 = vpop.f32.mrb[0].mxu0
      %v2225 = vpop.f32.mrb[0].mxu0
      %v2226 = vadd.f32 %v2094, %v2225
      %v2227 = vpop.f32.mrb[0].mxu0
      %2228 = vmatprep.mubr.bf16.mxu0 0
      %2229 = vmatmul.mubr.bf16.gmra.mrb[0].mxu0 %v2124
      %v2230 = vpop.f32.mrb[0].mxu0
      %v2231 = vadd.f32 %v2094, %v2230
      %v2232 = vpop.f32.mrb[0].mxu0
      %v2233 = vpop.f32.mrb[0].mxu0
      %v2234 = vadd.f32 %v2094, %v2233
      %v2235 = vpop.f32.mrb[0].mxu0
      %2236 = vmatprep.mubr.bf16.mxu0 0
      %2237 = vmatmul.mubr.bf16.gmra.mrb[0].mxu0 %v2126
      %v2238 = vpop.f32.mrb[0].mxu0
      %v2239 = vadd.f32 %v2094, %v2238
      %v2240 = vpop.f32.mrb[0].mxu0
      %v2241 = vpop.f32.mrb[0].mxu0
      %v2242 = vadd.f32 %v2094, %v2241
      %v2243 = vpop.f32.mrb[0].mxu0
      %2244 = vmatprep.mubr.bf16.mxu0 0
      %2245 = vmatmul.mubr.bf16.gmra.mrb[0].mxu0 %v2128
      %v2246 = vpop.f32.mrb[0].mxu0
      %v2247 = vadd.f32 %v2094, %v2246
      %v2248 = vpop.f32.mrb[0].mxu0
      %v2249 = vpop.f32.mrb[0].mxu0
      %v2250 = vadd.f32 %v2094, %v2249
      %v2251 = vpop.f32.mrb[0].mxu0
      %2252 = vmatprep.mubr.bf16.mxu0 0
      %2253 = vmatmul.mubr.bf16.gmra.mrb[0].mxu0 %v2130
      %v2254 = vpop.f32.mrb[0].mxu0
      %v2255 = vadd.f32 %v2094, %v2254
      %v2256 = vpop.f32.mrb[0].mxu0
      %v2257 = vpop.f32.mrb[0].mxu0
      %v2258 = vadd.f32 %v2094, %v2257
      %v2259 = vpop.f32.mrb[0].mxu0
      %2260 = vmatprep.mubr.bf16.mxu0 0
      %2261 = vmatmul.mubr.bf16.gmra.mrb[0].mxu0 %v2132
      %v2262 = vpop.f32.mrb[0].mxu0
      %v2263 = vadd.f32 %v2094, %v2262
      %v2264 = vpop.f32.mrb[0].mxu0
      %v2265 = vpop.f32.mrb[0].mxu0
      %v2266 = vadd.f32 %v2094, %v2265
      %v2267 = vpop.f32.mrb[0].mxu0
      %2268 = vmatprep.mubr.bf16.mxu0 0
      %2269 = vmatmul.mubr.bf16.gmra.mrb[0].mxu0 %v2134
      %v2270 = vpop.f32.mrb[0].mxu0
      %v2271 = vadd.f32 %v2094, %v2270
      %v2272 = vpop.f32.mrb[0].mxu0
      %v2273 = vpop.f32.mrb[0].mxu0
      %v2274 = vadd.f32 %v2094, %v2273
      %v2275 = vpop.f32.mrb[0].mxu0
      %2276 = vmatprep.mubr.bf16.mxu0 0
      %2277 = vmatmul.mubr.bf16.gmra.mrb[0].mxu0 %v2136
      %v2278 = vpop.f32.mrb[0].mxu0
      %v2279 = vadd.f32 %v2094, %v2278
      %v2280 = vpop.f32.mrb[0].mxu0
      %v2281 = vpop.f32.mrb[0].mxu0
      %v2282 = vadd.f32 %v2094, %v2281
      %v2283 = vpop.f32.mrb[0].mxu0
      %2284 = vmatprep.mubr.bf16.mxu0 0
      %2285 = vmatmul.mubr.bf16.gmra.mrb[0].mxu0 %v2138
      %v2286 = vpop.f32.mrb[0].mxu0
      %v2287 = vadd.f32 %v2094, %v2286
      %v2288 = vpop.f32.mrb[0].mxu0
      %v2289 = vpop.f32.mrb[0].mxu0
      %v2290 = vadd.f32 %v2094, %v2289
      %v2291 = vpop.f32.mrb[0].mxu0
      %2292 = vmatprep.mubr.bf16.mxu0 0
      %2293 = vmatmul.mubr.bf16.gmra.mrb[0].mxu0 %v2140
      %v2294 = vpop.f32.mrb[0].mxu0
      %v2295 = vadd.f32 %v2094, %v2294
      %v2296 = vpop.f32.mrb[0].mxu0
      %v2297 = vpop.f32.mrb[0].mxu0
      %v2298 = vadd.f32 %v2094, %v2297
      %v2299 = vpop.f32.mrb[0].mxu0
      %2300 = vmatprep.mubr.bf16.mxu0 0
      %2301 = vmatmul.mubr.bf16.gmra.mrb[0].mxu0 %v2142
      %v2302 = vpop.f32.mrb[0].mxu0
      %v2303 = vadd.f32 %v2094, %v2302
      %v2304 = vpop.f32.mrb[0].mxu0
      %v2305 = vpop.f32.mrb[0].mxu0
      %v2306 = vadd.f32 %v2094, %v2305
      %v2307 = vpop.f32.mrb[0].mxu0
      %2308 = vdwg.mxu0
      %v2309 = vmax.f32 %v2183, 0.0
      %v2310 = vmax.f32 %v2186, 0.0
      %v2311 = vmax.f32 %v2191, 0.0
      %v2312 = vmax.f32 %v2194, 0.0
      %v2313 = vmax.f32 %v2199, 0.0
      %v2314 = vmax.f32 %v2202, 0.0
      %v2315 = vmax.f32 %v2207, 0.0
      %v2316 = vmax.f32 %v2210, 0.0
      %v2317 = vmax.f32 %v2215, 0.0
      %v2318 = vmax.f32 %v2218, 0.0
      %v2319 = vmax.f32 %v2223, 0.0
      %v2320 = vmax.f32 %v2226, 0.0
      %v2321 = vmax.f32 %v2231, 0.0
      %v2322 = vmax.f32 %v2234, 0.0
      %v2323 = vmax.f32 %v2239, 0.0
      %v2324 = vmax.f32 %v2242, 0.0
      %v2325 = vmax.f32 %v2247, 0.0
      %v2326 = vmax.f32 %v2250, 0.0
      %v2327 = vmax.f32 %v2255, 0.0
      %v2328 = vmax.f32 %v2258, 0.0
      %v2329 = vmax.f32 %v2263, 0.0
      %v2330 = vmax.f32 %v2266, 0.0
      %v2331 = vmax.f32 %v2271, 0.0
      %v2332 = vmax.f32 %v2274, 0.0
      %v2333 = vmax.f32 %v2279, 0.0
      %v2334 = vmax.f32 %v2282, 0.0
      %v2335 = vmax.f32 %v2287, 0.0
      %v2336 = vmax.f32 %v2290, 0.0
      %v2337 = vmax.f32 %v2295, 0.0
      %v2338 = vmax.f32 %v2298, 0.0
      %v2339 = vmax.f32 %v2303, 0.0
      %v2340 = vmax.f32 %v2306, 0.0
      %v2341 = vpack.c.bf16 %v2310, %v2309
      %v2342 = vpack.c.bf16 %v2312, %v2311
      %v2343 = vpack.c.bf16 %v2314, %v2313
      %v2344 = vpack.c.bf16 %v2316, %v2315
      %v2345 = vpack.c.bf16 %v2318, %v2317
      %v2346 = vpack.c.bf16 %v2320, %v2319
      %v2347 = vpack.c.bf16 %v2322, %v2321
      %v2348 = vpack.c.bf16 %v2324, %v2323
      %v2349 = vpack.c.bf16 %v2326, %v2325
      %v2350 = vpack.c.bf16 %v2328, %v2327
      %v2351 = vpack.c.bf16 %v2330, %v2329
      %v2352 = vpack.c.bf16 %v2332, %v2331
      %v2353 = vpack.c.bf16 %v2334, %v2333
      %v2354 = vpack.c.bf16 %v2336, %v2335
      %v2355 = vpack.c.bf16 %v2338, %v2337
      %v2356 = vpack.c.bf16 %v2340, %v2339
      %v2373 = vunpack.c.l.b16 %v2341
      %v2374 = vunpack.c.h.b16 %v2341
      %v2375 = vunpack.c.l.b16 %v2342
      %v2376 = vunpack.c.h.b16 %v2342
      %v2377 = vunpack.c.l.b16 %v2343
      %v2378 = vunpack.c.h.b16 %v2343
      %v2379 = vunpack.c.l.b16 %v2344
      %v2380 = vunpack.c.h.b16 %v2344
      %v2381 = vunpack.c.l.b16 %v2345
      %v2382 = vunpack.c.h.b16 %v2345
      %v2383 = vunpack.c.l.b16 %v2346
      %v2384 = vunpack.c.h.b16 %v2346
      %v2385 = vunpack.c.l.b16 %v2347
      %v2386 = vunpack.c.h.b16 %v2347
      %v2387 = vunpack.c.l.b16 %v2348
      %v2388 = vunpack.c.h.b16 %v2348
      %v2389 = vunpack.c.l.b16 %v2349
      %v2390 = vunpack.c.h.b16 %v2349
      %v2391 = vunpack.c.l.b16 %v2350
      %v2392 = vunpack.c.h.b16 %v2350
      %v2393 = vunpack.c.l.b16 %v2351
      %v2394 = vunpack.c.h.b16 %v2351
      %v2395 = vunpack.c.l.b16 %v2352
      %v2396 = vunpack.c.h.b16 %v2352
      %v2397 = vunpack.c.l.b16 %v2353
      %v2398 = vunpack.c.h.b16 %v2353
      %v2399 = vunpack.c.l.b16 %v2354
      %v2400 = vunpack.c.h.b16 %v2354
      %v2401 = vunpack.c.l.b16 %v2355
      %v2402 = vunpack.c.h.b16 %v2355
      %v2403 = vunpack.c.l.b16 %v2356
      %v2404 = vunpack.c.h.b16 %v2356
      %v2405 = vpack.c.b16 %v2373, %v2373
      %v2406 = vpack.c.b16 %v2374, %v2374
      %v2407 = vpack.c.b16 %v2375, %v2375
      %v2408 = vpack.c.b16 %v2376, %v2376
      %v2409 = vpack.c.b16 %v2377, %v2377
      %v2410 = vpack.c.b16 %v2378, %v2378
      %v2411 = vpack.c.b16 %v2379, %v2379
      %v2412 = vpack.c.b16 %v2380, %v2380
      %v2413 = vpack.c.b16 %v2381, %v2381
      %v2414 = vpack.c.b16 %v2382, %v2382
      %v2415 = vpack.c.b16 %v2383, %v2383
      %v2416 = vpack.c.b16 %v2384, %v2384
      %v2417 = vpack.c.b16 %v2385, %v2385
      %v2418 = vpack.c.b16 %v2386, %v2386
      %v2419 = vpack.c.b16 %v2387, %v2387
      %v2420 = vpack.c.b16 %v2388, %v2388
      %v2421 = vpack.c.b16 %v2389, %v2389
      %v2422 = vpack.c.b16 %v2390, %v2390
      %v2423 = vpack.c.b16 %v2391, %v2391
      %v2424 = vpack.c.b16 %v2392, %v2392
      %v2425 = vpack.c.b16 %v2393, %v2393
      %v2426 = vpack.c.b16 %v2394, %v2394
      %v2427 = vpack.c.b16 %v2395, %v2395
      %v2428 = vpack.c.b16 %v2396, %v2396
      %v2429 = vpack.c.b16 %v2397, %v2397
      %v2430 = vpack.c.b16 %v2398, %v2398
      %v2431 = vpack.c.b16 %v2399, %v2399
      %v2432 = vpack.c.b16 %v2400, %v2400
      %v2433 = vpack.c.b16 %v2401, %v2401
      %v2434 = vpack.c.b16 %v2402, %v2402
      %v2435 = vpack.c.b16 %v2403, %v2403
      %v2436 = vpack.c.b16 %v2404, %v2404
      %2469 = vst.msk [vmem:[%s289] sm:$0xf] %vm455, %v2405
      %2470 = vst.msk [vmem:[%s289 + $0x4] sm:$0xf] %vm455, %v2406
      %2471 = vst.msk [vmem:[%s289 + $0x8] sm:$0xf] %vm455, %v2407
      %2472 = vst.msk [vmem:[%s289 + $0xc] sm:$0xf] %vm455, %v2408
      %2473 = vst.msk [vmem:[%s289 + $0x10] sm:$0xf] %vm455, %v2409
      %2474 = vst.msk [vmem:[%s289 + $0x14] sm:$0xf] %vm455, %v2410
      %2475 = vst.msk [vmem:[%s289 + $0x18] sm:$0xf] %vm455, %v2411
      %2476 = vst.msk [vmem:[%s289 + $0x1c] sm:$0xf] %vm455, %v2412
      %2477 = vst.msk [vmem:[%s289 + $0x20] sm:$0xf] %vm455, %v2413
      %2478 = vst.msk [vmem:[%s289 + $0x24] sm:$0xf] %vm455, %v2414
      %2479 = vst.msk [vmem:[%s289 + $0x28] sm:$0xf] %vm455, %v2415
      %2480 = vst.msk [vmem:[%s289 + $0x2c] sm:$0xf] %vm455, %v2416
      %2481 = vst.msk [vmem:[%s289 + $0x30] sm:$0xf] %vm455, %v2417
      %2482 = vst.msk [vmem:[%s289 + $0x34] sm:$0xf] %vm455, %v2418
      %2483 = vst.msk [vmem:[%s289 + $0x38] sm:$0xf] %vm455, %v2419
      %2484 = vst.msk [vmem:[%s289 + $0x3c] sm:$0xf] %vm455, %v2420
      %2485 = vst.msk [vmem:[%s289 + $0x40] sm:$0xf] %vm455, %v2421
      %2486 = vst.msk [vmem:[%s289 + $0x44] sm:$0xf] %vm455, %v2422
      %2487 = vst.msk [vmem:[%s289 + $0x48] sm:$0xf] %vm455, %v2423
      %2488 = vst.msk [vmem:[%s289 + $0x4c] sm:$0xf] %vm455, %v2424
      %2489 = vst.msk [vmem:[%s289 + $0x50] sm:$0xf] %vm455, %v2425
      %2490 = vst.msk [vmem:[%s289 + $0x54] sm:$0xf] %vm455, %v2426
      %2491 = vst.msk [vmem:[%s289 + $0x58] sm:$0xf] %vm455, %v2427
      %2492 = vst.msk [vmem:[%s289 + $0x5c] sm:$0xf] %vm455, %v2428
      %2493 = vst.msk [vmem:[%s289 + $0x60] sm:$0xf] %vm455, %v2429
      %2494 = vst.msk [vmem:[%s289 + $0x64] sm:$0xf] %vm455, %v2430
      %2495 = vst.msk [vmem:[%s289 + $0x68] sm:$0xf] %vm455, %v2431
      %2496 = vst.msk [vmem:[%s289 + $0x6c] sm:$0xf] %vm455, %v2432
      %2497 = vst.msk [vmem:[%s289 + $0x70] sm:$0xf] %vm455, %v2433
      %2498 = vst.msk [vmem:[%s289 + $0x74] sm:$0xf] %vm455, %v2434
      %2499 = vst.msk [vmem:[%s289 + $0x78] sm:$0xf] %vm455, %v2435
      %2500 = vst.msk [vmem:[%s289 + $0x7c] sm:$0xf] %vm455, %v2436
      %v2501 = vunpack.c.l.bf16 %v2341
      %v2502 = vunpack.c.h.bf16 %v2341
      %v2503 = vunpack.c.l.bf16 %v2342
      %v2504 = vunpack.c.h.bf16 %v2342
      %v2505 = vunpack.c.l.bf16 %v2343
      %v2506 = vunpack.c.h.bf16 %v2343
      %v2507 = vunpack.c.l.bf16 %v2344
      %v2508 = vunpack.c.h.bf16 %v2344
      %v2509 = vunpack.c.l.bf16 %v2345
      %v2510 = vunpack.c.h.bf16 %v2345
      %v2511 = vunpack.c.l.bf16 %v2346
      %v2512 = vunpack.c.h.bf16 %v2346
      %v2513 = vunpack.c.l.bf16 %v2347
      %v2514 = vunpack.c.h.bf16 %v2347
      %v2515 = vunpack.c.l.bf16 %v2348
      %v2516 = vunpack.c.h.bf16 %v2348
      %v2517 = vunpack.c.l.bf16 %v2349
      %v2518 = vunpack.c.h.bf16 %v2349
      %v2519 = vunpack.c.l.bf16 %v2350
      %v2520 = vunpack.c.h.bf16 %v2350
      %v2521 = vunpack.c.l.bf16 %v2351
      %v2522 = vunpack.c.h.bf16 %v2351
      %v2523 = vunpack.c.l.bf16 %v2352
      %v2524 = vunpack.c.h.bf16 %v2352
      %v2525 = vunpack.c.l.bf16 %v2353
      %v2526 = vunpack.c.h.bf16 %v2353
      %v2527 = vunpack.c.l.bf16 %v2354
      %v2528 = vunpack.c.h.bf16 %v2354
      %v2529 = vunpack.c.l.bf16 %v2355
      %v2530 = vunpack.c.h.bf16 %v2355
      %v2531 = vunpack.c.l.bf16 %v2356
      %v2532 = vunpack.c.h.bf16 %v2356
      %v2533 = vsel %vm1826, %v2501, 0.0
      %v2534 = vsel %vm1826, %v2502, 0.0
      %v2535 = vadd.f32 %v2533, %v2534
      %v2536 = vsel %vm1826, %v2503, 0.0
      %v2537 = vadd.f32 %v2535, %v2536
      %v2538 = vsel %vm1826, %v2504, 0.0
      %v2539 = vadd.f32 %v2537, %v2538
      %v2540 = vsel %vm1826, %v2505, 0.0
      %v2541 = vadd.f32 %v2539, %v2540
      %v2542 = vsel %vm1826, %v2506, 0.0
      %v2543 = vadd.f32 %v2541, %v2542
      %v2544 = vsel %vm1826, %v2507, 0.0
      %v2545 = vadd.f32 %v2543, %v2544
      %v2546 = vsel %vm1826, %v2508, 0.0
      %v2547 = vadd.f32 %v2545, %v2546
      %v2548 = vsel %vm1826, %v2509, 0.0
      %v2549 = vadd.f32 %v2547, %v2548
      %v2550 = vsel %vm1826, %v2510, 0.0
      %v2551 = vadd.f32 %v2549, %v2550
      %v2552 = vsel %vm1826, %v2511, 0.0
      %v2553 = vadd.f32 %v2551, %v2552
      %v2554 = vsel %vm1826, %v2512, 0.0
      %v2555 = vadd.f32 %v2553, %v2554
      %v2556 = vsel %vm1826, %v2513, 0.0
      %v2557 = vadd.f32 %v2555, %v2556
      %v2558 = vsel %vm1826, %v2514, 0.0
      %v2559 = vadd.f32 %v2557, %v2558
      %v2560 = vsel %vm1826, %v2515, 0.0
      %v2561 = vadd.f32 %v2559, %v2560
      %v2562 = vsel %vm1826, %v2516, 0.0
      %v2563 = vadd.f32 %v2561, %v2562
      %v2564 = vsel %vm1826, %v2517, 0.0
      %v2565 = vadd.f32 %v2563, %v2564
      %v2566 = vsel %vm1826, %v2518, 0.0
      %v2567 = vadd.f32 %v2565, %v2566
      %v2568 = vsel %vm1826, %v2519, 0.0
      %v2569 = vadd.f32 %v2567, %v2568
      %v2570 = vsel %vm1826, %v2520, 0.0
      %v2571 = vadd.f32 %v2569, %v2570
      %v2572 = vsel %vm1826, %v2521, 0.0
      %v2573 = vadd.f32 %v2571, %v2572
      %v2574 = vsel %vm1826, %v2522, 0.0
      %v2575 = vadd.f32 %v2573, %v2574
      %v2576 = vsel %vm1826, %v2523, 0.0
      %v2577 = vadd.f32 %v2575, %v2576
      %v2578 = vsel %vm1826, %v2524, 0.0
      %v2579 = vadd.f32 %v2577, %v2578
      %v2580 = vsel %vm1826, %v2525, 0.0
      %v2581 = vadd.f32 %v2579, %v2580
      %v2582 = vsel %vm1826, %v2526, 0.0
      %v2583 = vadd.f32 %v2581, %v2582
      %v2584 = vsel %vm1826, %v2527, 0.0
      %v2585 = vadd.f32 %v2583, %v2584
      %v2586 = vsel %vm1826, %v2528, 0.0
      %v2587 = vadd.f32 %v2585, %v2586
      %v2588 = vsel %vm1826, %v2529, 0.0
      %v2589 = vadd.f32 %v2587, %v2588
      %v2590 = vsel %vm1826, %v2530, 0.0
      %v2591 = vadd.f32 %v2589, %v2590
      %v2592 = vsel %vm1826, %v2531, 0.0
      %v2593 = vadd.f32 %v2591, %v2592
      %v2594 = vsel %vm1826, %v2532, 0.0
      %v2595 = vadd.f32 %v2593, %v2594
      %v2596 = vrot.slane %v2595, 4
      %v2597 = vadd.f32 %v2595, %v2596
      %v2598 = vrot.slane %v2597, 2
      %v2599 = vadd.f32 %v2597, %v2598
      %v2600 = vrot.slane %v2599, 1
      %v2601 = vadd.f32 %v2599, %v2600
      %v2602 = vadd.f32 %v2601, 0.0
      %v2603 = vmul.f32 %v2501, %v2501
      %v2604 = vmul.f32 %v2502, %v2502
      %v2605 = vmul.f32 %v2503, %v2503
      %v2606 = vmul.f32 %v2504, %v2504
      %v2607 = vmul.f32 %v2505, %v2505
      %v2608 = vmul.f32 %v2506, %v2506
      %v2609 = vmul.f32 %v2507, %v2507
      %v2610 = vmul.f32 %v2508, %v2508
      %v2611 = vmul.f32 %v2509, %v2509
      %v2612 = vmul.f32 %v2510, %v2510
      %v2613 = vmul.f32 %v2511, %v2511
      %v2614 = vmul.f32 %v2512, %v2512
      %v2615 = vmul.f32 %v2513, %v2513
      %v2616 = vmul.f32 %v2514, %v2514
      %v2617 = vmul.f32 %v2515, %v2515
      %v2618 = vmul.f32 %v2516, %v2516
      %v2619 = vmul.f32 %v2517, %v2517
      %v2620 = vmul.f32 %v2518, %v2518
      %v2621 = vmul.f32 %v2519, %v2519
      %v2622 = vmul.f32 %v2520, %v2520
      %v2623 = vmul.f32 %v2521, %v2521
      %v2624 = vmul.f32 %v2522, %v2522
      %v2625 = vmul.f32 %v2523, %v2523
      %v2626 = vmul.f32 %v2524, %v2524
      %v2627 = vmul.f32 %v2525, %v2525
      %v2628 = vmul.f32 %v2526, %v2526
      %v2629 = vmul.f32 %v2527, %v2527
      %v2630 = vmul.f32 %v2528, %v2528
      %v2631 = vmul.f32 %v2529, %v2529
      %v2632 = vmul.f32 %v2530, %v2530
      %v2633 = vmul.f32 %v2531, %v2531
      %v2634 = vmul.f32 %v2532, %v2532
      %v2635 = vsel %vm1826, %v2603, 0.0
      %v2636 = vsel %vm1826, %v2604, 0.0
      %v2637 = vadd.f32 %v2635, %v2636
      %v2638 = vsel %vm1826, %v2605, 0.0
      %v2639 = vadd.f32 %v2637, %v2638
      %v2640 = vsel %vm1826, %v2606, 0.0
      %v2641 = vadd.f32 %v2639, %v2640
      %v2642 = vsel %vm1826, %v2607, 0.0
      %v2643 = vadd.f32 %v2641, %v2642
      %v2644 = vsel %vm1826, %v2608, 0.0
      %v2645 = vadd.f32 %v2643, %v2644
      %v2646 = vsel %vm1826, %v2609, 0.0
      %v2647 = vadd.f32 %v2645, %v2646
      %v2648 = vsel %vm1826, %v2610, 0.0
      %v2649 = vadd.f32 %v2647, %v2648
      %v2650 = vsel %vm1826, %v2611, 0.0
      %v2651 = vadd.f32 %v2649, %v2650
      %v2652 = vsel %vm1826, %v2612, 0.0
      %v2653 = vadd.f32 %v2651, %v2652
      %v2654 = vsel %vm1826, %v2613, 0.0
      %v2655 = vadd.f32 %v2653, %v2654
      %v2656 = vsel %vm1826, %v2614, 0.0
      %v2657 = vadd.f32 %v2655, %v2656
      %v2658 = vsel %vm1826, %v2615, 0.0
      %v2659 = vadd.f32 %v2657, %v2658
      %v2660 = vsel %vm1826, %v2616, 0.0
      %v2661 = vadd.f32 %v2659, %v2660
      %v2662 = vsel %vm1826, %v2617, 0.0
      %v2663 = vadd.f32 %v2661, %v2662
      %v2664 = vsel %vm1826, %v2618, 0.0
      %v2665 = vadd.f32 %v2663, %v2664
      %v2666 = vsel %vm1826, %v2619, 0.0
      %v2667 = vadd.f32 %v2665, %v2666
      %v2668 = vsel %vm1826, %v2620, 0.0
      %v2669 = vadd.f32 %v2667, %v2668
      %v2670 = vsel %vm1826, %v2621, 0.0
      %v2671 = vadd.f32 %v2669, %v2670
      %v2672 = vsel %vm1826, %v2622, 0.0
      %v2673 = vadd.f32 %v2671, %v2672
      %v2674 = vsel %vm1826, %v2623, 0.0
      %v2675 = vadd.f32 %v2673, %v2674
      %v2676 = vsel %vm1826, %v2624, 0.0
      %v2677 = vadd.f32 %v2675, %v2676
      %v2678 = vsel %vm1826, %v2625, 0.0
      %v2679 = vadd.f32 %v2677, %v2678
      %v2680 = vsel %vm1826, %v2626, 0.0
      %v2681 = vadd.f32 %v2679, %v2680
      %v2682 = vsel %vm1826, %v2627, 0.0
      %v2683 = vadd.f32 %v2681, %v2682
      %v2684 = vsel %vm1826, %v2628, 0.0
      %v2685 = vadd.f32 %v2683, %v2684
      %v2686 = vsel %vm1826, %v2629, 0.0
      %v2687 = vadd.f32 %v2685, %v2686
      %v2688 = vsel %vm1826, %v2630, 0.0
      %v2689 = vadd.f32 %v2687, %v2688
      %v2690 = vsel %vm1826, %v2631, 0.0
      %v2691 = vadd.f32 %v2689, %v2690
      %v2692 = vsel %vm1826, %v2632, 0.0
      %v2693 = vadd.f32 %v2691, %v2692
      %v2694 = vsel %vm1826, %v2633, 0.0
      %v2695 = vadd.f32 %v2693, %v2694
      %v2696 = vsel %vm1826, %v2634, 0.0
      %v2697 = vadd.f32 %v2695, %v2696
      %v2698 = vrot.slane %v2697, 4
      %v2699 = vadd.f32 %v2697, %v2698
      %v2700 = vrot.slane %v2699, 2
      %v2701 = vadd.f32 %v2699, %v2700
      %v2702 = vrot.slane %v2701, 1
      %v2703 = vadd.f32 %v2701, %v2702
      %v2704 = vadd.f32 %v2703, 0.0
      %2705 = vst.msk [vmem:[%s292] sm:$0x1] %vm458, %v2602
      %2706 = vst.msk [vmem:[%s295] sm:$0x1] %vm458, %v2704
      %p2707 = scmp.lt.s32.totalorder %s19, 1
      %s2708 = scalar_select %p2707, %s19, 1
      %s2709 = smul.addr %s2708, 32
      %s2710 = smul.addr %s2709, 4
      %s2711 = scalar_lea.vmem %s5, %s2710
      %p2712 = scmp.lt.s32.totalorder %s19, 1
      %s2713 = scalar_select %p2712, %s19, 1
      %s2714 = scalar_lea.vmem %s6, %s2713
      %p2715 = scmp.lt.s32.totalorder %s19, 1
      %s2716 = scalar_select %p2715, %s19, 1
      %s2717 = scalar_lea.vmem %s7, %s2716
      // Predicated region
      $region41: #{_lambda_.10} parent=39 // pred_check
        %p2718 = pneg %p147
      $region42: #{_lambda_.10} parent=39 // pred_check_branch
        %2720 = sbr.rel (%p2718) target = $region44
      $region43: #{_lambda_.10} parent=39 // pred_region
        _
      $region44: #{_lambda_.10} parent=39 // pred_fallthru
        _
      // Predicated region
      $region45: #{_lambda_.10} parent=39 // pred_check
        %p2721 = pneg %p173
      $region46: #{_lambda_.10} parent=39 // pred_check_branch
        %2723 = sbr.rel (%p2721) target = $region48
      $region47: #{_lambda_.10} parent=39 // pred_region
        _
      $region48: #{_lambda_.10} parent=39 // pred_fallthru
        _
      // Predicated region
      $region49: #{_lambda_.10} parent=39 // pred_check
        %p2724 = pneg %p199
      $region50: #{_lambda_.10} parent=39 // pred_check_branch
        %2726 = sbr.rel (%p2724) target = $region52
      $region51: #{_lambda_.10} parent=39 // pred_region
        _
      $region52: #{_lambda_.10} parent=39 // pred_fallthru
        _
    $region40: #{_lambda_.10} parent=5 // pred_fallthru
      _
    %p2727 = scmp.le.s32.totalorder 2, %s14
    // Predicated region
    $region53: #{_lambda_.10} parent=5 // pred_check
      %p2728 = pneg %p2727
    $region54: #{_lambda_.10} parent=5 // pred_check_branch
      %2730 = sbr.rel (%p2728) target = $region56
    $region55: #{_lambda_.10} parent=5 // pred_region
      %s2731 = ssub.s32 %s14, 2
      // Predicated region
      $region57: #{_lambda_.10} parent=55 // pred_check
        %p2732 = pneg %p153
      $region58: #{_lambda_.10} parent=55 // pred_check_branch
        %2734 = sbr.rel (%p2732) target = $region60
      $region59: #{_lambda_.10} parent=55 // pred_region
        %p2735 = scmp.lt.s32.totalorder %s20, 1
        %s2736 = scalar_select %p2735, %s20, 1
        %s2737 = smul.addr %s2736, 32
        %s2738 = smul.addr %s2737, 4
        %s2739 = scalar_lea.vmem %s5, %s2738
      $region60: #{_lambda_.10} parent=55 // pred_fallthru
        _
      // Predicated region
      $region61: #{_lambda_.10} parent=55 // pred_check
        %p2740 = pneg %p179
      $region62: #{_lambda_.10} parent=55 // pred_check_branch
        %2742 = sbr.rel (%p2740) target = $region64
      $region63: #{_lambda_.10} parent=55 // pred_region
        %p2743 = scmp.lt.s32.totalorder %s20, 1
        %s2744 = scalar_select %p2743, %s20, 1
        %s2745 = scalar_lea.vmem %s6, %s2744
      $region64: #{_lambda_.10} parent=55 // pred_fallthru
        _
      // Predicated region
      $region65: #{_lambda_.10} parent=55 // pred_check
        %p2746 = pneg %p205
      $region66: #{_lambda_.10} parent=55 // pred_check_branch
        %2748 = sbr.rel (%p2746) target = $region68
      $region67: #{_lambda_.10} parent=55 // pred_region
        %p2749 = scmp.lt.s32.totalorder %s20, 1
        %s2750 = scalar_select %p2749, %s20, 1
        %s2751 = scalar_lea.vmem %s7, %s2750
      $region68: #{_lambda_.10} parent=55 // pred_fallthru
        _
    $region56: #{_lambda_.10} parent=5 // pred_fallthru
      _
  $region6: #{_lambda_.10} parent=0 // loop_footer
    %s18 = sadd.s32 1, %s14
  $region7: #{_lambda_.10} parent=0 // loop_footer_branch
    %13 = sbr.rel target = $region3
  $region8: #{_lambda_.10} parent=0 // loop_exit
    _

// kernel: _lambda_.17
$region0: #{_lambda_.17}
  #allocation0 [shape = 'u32[]', space=smem, size = 0x4, offset = 0x4, fixed_abs, tag = 'smem constant byte address 0x4 - core index']
  #allocation1 [shape = 'u32[144,128]{1,0:T(1,128)}', space=vmem, size = 0x12000, scoped, tag = 'internal scratch']
  %s0 = inlined_call_operand.vmem [shape: bf16[2,1024], index: 0, kind: input, shape index: {}]
  %s1 = inlined_call_operand.vmem [shape: f32[1,1024], index: 1, kind: input, shape index: {}]
  %s2 = inlined_call_operand.vmem [shape: f32[1,1024], index: 2, kind: input, shape index: {}]
  %s3 = inlined_call_operand.vmem [shape: f32[2,1024], index: 3, kind: output, shape index: {}]
  %s4 = sld [smem:[#allocation0]]
  $region22: #{_lambda_.17} parent=0
    _
  %s6 = ssub.s32 1, %s4
  %s7 = scalar_select 0, %s6, %s4
  // Predicated region
  $region2: #{_lambda_.17} parent=0 // pred_check
    _
  $region3: #{_lambda_.17} parent=0 // pred_check_branch
    %9 = sbr.rel (0) target = $region5
  $region4: #{_lambda_.17} parent=0 // pred_region
    _
  $region5: #{_lambda_.17} parent=0 // pred_fallthru
    _
  // Predicated region
  $region6: #{_lambda_.17} parent=0 // pred_check
    _
  $region7: #{_lambda_.17} parent=0 // pred_check_branch
    %11 = sbr.rel (0) target = $region9
  $region8: #{_lambda_.17} parent=0 // pred_region
    _
  $region9: #{_lambda_.17} parent=0 // pred_fallthru
    _
  // Predicated region
  $region10: #{_lambda_.17} parent=0 // pred_check
    _
  $region11: #{_lambda_.17} parent=0 // pred_check_branch
    %13 = sbr.rel (0) target = $region13
  $region12: #{_lambda_.17} parent=0 // pred_region
    _
  $region13: #{_lambda_.17} parent=0 // pred_fallthru
    _
  %v14 = vld [vmem:[%s0] sm:$0xff]
  %v15 = vunpack.c.l.bf16 %v14
  %v16 = vunpack.c.h.bf16 %v14
  %v17 = vld [vmem:[%s1] sm:$0xff]
  %v19 = vlaneseq
  %v20 = vshrl.u32 %v19, 7
  %v21 = vsub.s32 0, %v20
  %v22 = vrot.slane %v17, %v21
  %v23 = vlaneseq
  %v24 = vshrl.u32 %v23, 7
  %v25 = vsub.s32 1, %v24
  %v26 = vrot.slane %v17, %v25
  %v27 = vlaneseq
  %v28 = vshrl.u32 %v27, 7
  %v29 = vsub.s32 2, %v28
  %v30 = vrot.slane %v17, %v29
  %v31 = vlaneseq
  %v32 = vshrl.u32 %v31, 7
  %v33 = vsub.s32 3, %v32
  %v34 = vrot.slane %v17, %v33
  %v35 = vlaneseq
  %v36 = vshrl.u32 %v35, 7
  %v37 = vsub.s32 4, %v36
  %v38 = vrot.slane %v17, %v37
  %v39 = vlaneseq
  %v40 = vshrl.u32 %v39, 7
  %v41 = vsub.s32 5, %v40
  %v42 = vrot.slane %v17, %v41
  %v43 = vlaneseq
  %v44 = vshrl.u32 %v43, 7
  %v45 = vsub.s32 6, %v44
  %v46 = vrot.slane %v17, %v45
  %v47 = vlaneseq
  %v48 = vshrl.u32 %v47, 7
  %v49 = vsub.s32 7, %v48
  %v50 = vrot.slane %v17, %v49
  %v51 = vcombine.low %v22, %v26
  %v52 = vcombine.low %v30, %v34
  %v54 = vunpack.c.l.s4 1983009808
  %v55 = vunpack.c.0.s8 %v54
  %v56 = vlaneseq
  %v57 = vshrl.u32 %v56, 7
  %v58 = vsub.s32 %v55, %v57
  %v59 = vrot.slane %v51, %v58
  %v61 = vunpack.c.l.s4 1983009808
  %v62 = vunpack.c.0.s8 %v61
  %v63 = vlaneseq
  %v64 = vshrl.u32 %v63, 7
  %v65 = vsub.s32 %v62, %v64
  %v66 = vrot.slane %v52, %v65
  %v67 = vcombine.low %v59, %v66
  %v68 = vcombine.low %v38, %v42
  %v69 = vcombine.low %v46, %v50
  %v71 = vunpack.c.l.s4 1983009808
  %v72 = vunpack.c.0.s8 %v71
  %v73 = vlaneseq
  %v74 = vshrl.u32 %v73, 7
  %v75 = vsub.s32 %v72, %v74
  %v76 = vrot.slane %v68, %v75
  %v78 = vunpack.c.l.s4 1983009808
  %v79 = vunpack.c.0.s8 %v78
  %v80 = vlaneseq
  %v81 = vshrl.u32 %v80, 7
  %v82 = vsub.s32 %v79, %v81
  %v83 = vrot.slane %v69, %v82
  %v84 = vcombine.low %v76, %v83
  %v87 = vmul.f32 %v15, %v67
  %v88 = vmul.f32 %v16, %v84
  %v89 = vld [vmem:[%s2] sm:$0xff]
  %v91 = vlaneseq
  %v92 = vshrl.u32 %v91, 7
  %v93 = vsub.s32 0, %v92
  %v94 = vrot.slane %v89, %v93
  %v95 = vlaneseq
  %v96 = vshrl.u32 %v95, 7
  %v97 = vsub.s32 1, %v96
  %v98 = vrot.slane %v89, %v97
  %v99 = vlaneseq
  %v100 = vshrl.u32 %v99, 7
  %v101 = vsub.s32 2, %v100
  %v102 = vrot.slane %v89, %v101
  %v103 = vlaneseq
  %v104 = vshrl.u32 %v103, 7
  %v105 = vsub.s32 3, %v104
  %v106 = vrot.slane %v89, %v105
  %v107 = vlaneseq
  %v108 = vshrl.u32 %v107, 7
  %v109 = vsub.s32 4, %v108
  %v110 = vrot.slane %v89, %v109
  %v111 = vlaneseq
  %v112 = vshrl.u32 %v111, 7
  %v113 = vsub.s32 5, %v112
  %v114 = vrot.slane %v89, %v113
  %v115 = vlaneseq
  %v116 = vshrl.u32 %v115, 7
  %v117 = vsub.s32 6, %v116
  %v118 = vrot.slane %v89, %v117
  %v119 = vlaneseq
  %v120 = vshrl.u32 %v119, 7
  %v121 = vsub.s32 7, %v120
  %v122 = vrot.slane %v89, %v121
  %v123 = vcombine.low %v94, %v98
  %v124 = vcombine.low %v102, %v106
  %v126 = vunpack.c.l.s4 1983009808
  %v127 = vunpack.c.0.s8 %v126
  %v128 = vlaneseq
  %v129 = vshrl.u32 %v128, 7
  %v130 = vsub.s32 %v127, %v129
  %v131 = vrot.slane %v123, %v130
  %v133 = vunpack.c.l.s4 1983009808
  %v134 = vunpack.c.0.s8 %v133
  %v135 = vlaneseq
  %v136 = vshrl.u32 %v135, 7
  %v137 = vsub.s32 %v134, %v136
  %v138 = vrot.slane %v124, %v137
  %v139 = vcombine.low %v131, %v138
  %v140 = vcombine.low %v110, %v114
  %v141 = vcombine.low %v118, %v122
  %v143 = vunpack.c.l.s4 1983009808
  %v144 = vunpack.c.0.s8 %v143
  %v145 = vlaneseq
  %v146 = vshrl.u32 %v145, 7
  %v147 = vsub.s32 %v144, %v146
  %v148 = vrot.slane %v140, %v147
  %v150 = vunpack.c.l.s4 1983009808
  %v151 = vunpack.c.0.s8 %v150
  %v152 = vlaneseq
  %v153 = vshrl.u32 %v152, 7
  %v154 = vsub.s32 %v151, %v153
  %v155 = vrot.slane %v141, %v154
  %v156 = vcombine.low %v148, %v155
  %v159 = vadd.f32 %v87, %v139
  %v160 = vadd.f32 %v88, %v156
  %161 = vst [vmem:[%s3] sm:$0xff] %v159
  %162 = vst [vmem:[%s3 + $0x8] sm:$0xff] %v160
  // Predicated region
  $region14: #{_lambda_.17} parent=0 // pred_check
    _
  $region15: #{_lambda_.17} parent=0 // pred_check_branch
    %164 = sbr.rel (0) target = $region17
  $region16: #{_lambda_.17} parent=0 // pred_region
    _
  $region17: #{_lambda_.17} parent=0 // pred_fallthru
    _
  // Predicated region
  $region18: #{_lambda_.17} parent=0 // pred_check
    _
  $region19: #{_lambda_.17} parent=0 // pred_check_branch
    %166 = sbr.rel (0) target = $region21
  $region20: #{_lambda_.17} parent=0 // pred_region
    _
  $region21: #{_lambda_.17} parent=0 // pred_fallthru
    _

</llo_original>
